<compile_context>
chip_gen: v6e
topology: v6e:2x2x1
jax: 0.10.0
libtpu: 0.0.40
codegen_flags: <defaults>
</compile_context>

<pallas_src>
import functools

import jax
import jax.numpy as jnp
from jax import lax
from jax.experimental import pallas as pl
from jax.experimental.pallas import tpu as pltpu

EPS = 1e-12
_LANE = 128


def _round_up(x, m):
    return ((x + m - 1) // m) * m


def tdcn_block_kernel(x_ref,
                      wb_ref, bb_ref, g1_ref, be1_ref,
                      wdw_ref, bdw_ref, g2_ref, be2_ref,
                      wos_ref, bos_ref,
                      out_ref, skip_ref,
                      hpad_ref,
                      *, num_layers, kernel_size, dilations, pad_lefts,
                      store_off, num_features, t_true, eps):
    """Full TimeDilatedConvBlock1d forward for ONE batch element.

    x_ref   : (1, N, Tp)  input, zero-padded on the time axis to Tp (multiple of 128)
    w*_ref  : per-layer parameters stacked along a leading layer axis
    out_ref : (1, N, Tp),  skip_ref : (1, S, Tp)
    hpad_ref: (H, W)  scratch with zero halos for the dilated depthwise conv
    """
    n_feat = num_features
    t_pad = x_ref.shape[2]
    n_hidden = wb_ref.shape[1]
    scratch_w = hpad_ref.shape[1]

    # Zero only the halo regions; [store_off, store_off+t_pad) is fully overwritten
    # every layer, so the halos stay zero for the whole grid step.
    if store_off > 0:
        hpad_ref[:, :store_off] = jnp.zeros((n_hidden, store_off), jnp.float32)
    if scratch_w > store_off + t_pad:
        hpad_ref[:, store_off + t_pad:] = jnp.zeros(
            (n_hidden, scratch_w - store_off - t_pad), jnp.float32)

    # Lane mask selecting the valid time steps (compare against a *static* bound).
    if t_true < t_pad:
        lane_mask = (lax.broadcasted_iota(jnp.int32, (1, t_pad), 1)
                     < t_true).astype(jnp.float32)
    else:
        lane_mask = None

    def mask_t(v):
        return v if lane_mask is None else v * lane_mask

    inv_count = 1.0 / float(n_hidden * t_true)

    def gln(v, gamma, beta):
        # Global layer norm over (channels, valid time); single-pass statistics:
        # var = E[x^2] - mu^2, clamped >= 0 to guard f32 cancellation.
        vm = mask_t(v)
        s1 = jnp.sum(vm)
        s2 = jnp.sum(vm * vm)
        mu = s1 * inv_count
        var = jnp.maximum(s2 * inv_count - mu * mu, 0.0)
        return gamma * (v - mu) * lax.rsqrt(var + eps) + beta

    x_cur = x_ref[0]                                     # (N, Tp) residual / layer input
    skip_acc = jnp.zeros(skip_ref.shape[1:], jnp.float32)

    for layer in range(num_layers):
        dil = dilations[layer]            # static (2**layer)
        pad_left = pad_lefts[layer]       # static

        # ---- bottleneck 1x1 conv: (H, N) @ (N, Tp) ----
        h = jnp.dot(wb_ref[layer], x_cur,
                    preferred_element_type=jnp.float32) + bb_ref[layer]

        # ---- gLN, then emulate F.pad's zeros outside the valid time range ----
        h = mask_t(gln(h, g1_ref[layer], be1_ref[layer]))

        # ---- dilated depthwise conv ("same" padding) via the zero-halo scratch ----
        # h lives at a 128-aligned offset; taps are plain static-offset slices.
        hpad_ref[:, store_off:store_off + t_pad] = h
        y = None
        for k in range(kernel_size):
            off = store_off - pad_left + k * dil          # static offset
            tap = hpad_ref[:, off:off + t_pad] * wdw_ref[layer, k]
            y = tap if y is None else y + tap
        y = y + bdw_ref[layer]

        # ---- gLN ----
        y = mask_t(gln(y, g2_ref[layer], be2_ref[layer]))

        # ---- fused output + skip pointwise convs: one (N+S, H) @ (H, Tp) matmul ----
        proj = jnp.dot(wos_ref[layer], y,
                       preferred_element_type=jnp.float32) + bos_ref[layer]
        x_cur = proj[:n_feat] + x_cur                     # residual connection
        skip_acc = skip_acc + proj[n_feat:]               # skip accumulation in-kernel

    out_ref[0] = x_cur.astype(out_ref.dtype)
    skip_ref[0] = skip_acc.astype(skip_ref.dtype)


def init_layer_params(key, num_features, hidden_channels, skip_channels, kernel_size):
    """Deterministic synthetic parameters for one ResidualBlock1d layer."""
    N, H, S, K = num_features, hidden_channels, skip_channels, kernel_size
    ks = jax.random.split(key, 6)
    scale = 0.1
    return {
        "wb":  scale * jax.random.normal(ks[0], (H, N), jnp.float32),
        "bb":  scale * jax.random.normal(ks[1], (H, 1), jnp.float32),
        "g1":  jnp.ones((H, 1), jnp.float32),
        "be1": jnp.zeros((H, 1), jnp.float32),
        "wdw": scale * jax.random.normal(ks[2], (H, K), jnp.float32),
        "bdw": scale * jax.random.normal(ks[3], (H, 1), jnp.float32),
        "g2":  jnp.ones((H, 1), jnp.float32),
        "be2": jnp.zeros((H, 1), jnp.float32),
        "wo":  scale * jax.random.normal(ks[4], (N, H), jnp.float32),
        "bo":  jnp.zeros((N, 1), jnp.float32),
        "ws":  scale * jax.random.normal(ks[5], (S, H), jnp.float32),
        "bs":  jnp.zeros((S, 1), jnp.float32),
    }


def _stack_params(layer_params):
    """Stack per-layer params along a leading layer axis; fuse out+skip projections."""
    f32 = jnp.float32
    wb = jnp.stack([p["wb"] for p in layer_params]).astype(f32)              # (L,H,N)
    bb = jnp.stack([p["bb"] for p in layer_params]).astype(f32)              # (L,H,1)
    g1 = jnp.stack([p["g1"] for p in layer_params]).astype(f32)
    be1 = jnp.stack([p["be1"] for p in layer_params]).astype(f32)
    # Depthwise weights: (H, K) -> (K, H, 1) so each tap broadcasts along lanes.
    wdw = jnp.stack([jnp.transpose(p["wdw"])[:, :, None]
                     for p in layer_params]).astype(f32)                     # (L,K,H,1)
    bdw = jnp.stack([p["bdw"] for p in layer_params]).astype(f32)
    g2 = jnp.stack([p["g2"] for p in layer_params]).astype(f32)
    be2 = jnp.stack([p["be2"] for p in layer_params]).astype(f32)
    wos = jnp.stack([jnp.concatenate([p["wo"], p["ws"]], axis=0)
                     for p in layer_params]).astype(f32)                     # (L,N+S,H)
    bos = jnp.stack([jnp.concatenate([p["bo"], p["bs"]], axis=0)
                     for p in layer_params]).astype(f32)                     # (L,N+S,1)
    return (wb, bb, g1, be1, wdw, bdw, g2, be2, wos, bos)


def time_dilated_conv_block_1d(x, layer_params, *, kernel_size=3, eps=EPS):
    """TimeDilatedConvBlock1d.forward as one fused Pallas call.

    x: (B, num_features, T) -> (out (B, num_features, T), skip (B, skip_channels, T)).
    """
    B, N, T = x.shape
    L = len(layer_params)
    H = layer_params[0]["wb"].shape[0]
    S = layer_params[0]["ws"].shape[0]
    K = kernel_size

    # dilated=True branch: stride=1, dilation=2**idx; causal=False "same" padding.
    dilations = tuple(2 ** idx for idx in range(L))
    paddings = tuple((T - 1) - T + (K - 1) * d + 1 for d in dilations)   # == (K-1)*d
    pad_lefts = tuple(p // 2 for p in paddings)
    pad_rights = tuple(p - lft for p, lft in zip(paddings, pad_lefts))

    # Lane-dense time: pad T up to a multiple of 128 (statistics masked in-kernel).
    t_pad = max(_LANE, _round_up(T, _LANE))
    # Depthwise scratch: h stored at a 128-aligned offset (lane-aligned store); halos
    # on both sides sized for the largest dilation so every tap slice stays in bounds.
    store_off = _round_up(max(pad_lefts), _LANE) if max(pad_lefts) > 0 else 0
    halo_r = _round_up(max(pad_rights), _LANE) if max(pad_rights) > 0 else 0
    scratch_w = store_off + t_pad + halo_r

    x_p = x.astype(jnp.float32)
    if t_pad != T:
        x_p = jnp.pad(x_p, ((0, 0), (0, 0), (0, t_pad - T)))

    stacked = _stack_params(layer_params)

    kern = functools.partial(
        tdcn_block_kernel,
        num_layers=L, kernel_size=K, dilations=dilations, pad_lefts=pad_lefts,
        store_off=store_off, num_features=N, t_true=T, eps=eps)

    def const_spec(arr):
        zeros = (0,) * arr.ndim
        return pl.BlockSpec(arr.shape, lambda b, _z=zeros: _z)

    in_specs = [pl.BlockSpec((1, N, t_pad), lambda b: (b, 0, 0))]
    in_specs += [const_spec(a) for a in stacked]
    out_specs = [pl.BlockSpec((1, N, t_pad), lambda b: (b, 0, 0)),
                 pl.BlockSpec((1, S, t_pad), lambda b: (b, 0, 0))]
    out_shape = (jax.ShapeDtypeStruct((B, N, t_pad), jnp.float32),
                 jax.ShapeDtypeStruct((B, S, t_pad), jnp.float32))

    # Advisory cost + explicit VMEM budget (sized for the whole resident working set).
    flops = 2 * B * L * T * (H * N + H * K + (N + S) * H)
    param_bytes = sum(int(a.size) * a.dtype.itemsize for a in stacked)
    io_bytes = 4 * (2 * B * N * t_pad + B * S * t_pad) + param_bytes
    cost = pl.CostEstimate(flops=flops, transcendentals=2 * B * L,
                           bytes_accessed=io_bytes)
    working_set = (2 * param_bytes                             # params (buffered)
                   + 4 * 2 * (2 * N + S) * t_pad               # in/out blocks, dbl-buffered
                   + 4 * H * scratch_w                         # depthwise scratch
                   + 4 * (4 * H + 2 * (N + S)) * t_pad)        # live intermediates headroom
    vmem_limit = int(min(max(2 * working_set, 16 << 20), 64 << 20))

    fn = pl.pallas_call(
        kern,
        grid=(B,),
        in_specs=in_specs,
        out_specs=out_specs,
        out_shape=out_shape,
        scratch_shapes=[pltpu.VMEM((H, scratch_w), jnp.float32)],
        compiler_params=pltpu.CompilerParams(
            dimension_semantics=("parallel",),
            vmem_limit_bytes=vmem_limit),
        cost_estimate=cost,
    )
    out_p, skip_p = fn(x_p, *stacked)
    return out_p[:, :, :T], skip_p[:, :, :T]


def _reference_forward(x, layer_params, *, kernel_size, eps=EPS):
    """Pure-JAX (XLA) reference with the same gLN assumption, for validation."""
    B, N, T = x.shape
    skip_total = 0.0
    for idx, p in enumerate(layer_params):
        d = 2 ** idx
        res = x
        h = jnp.einsum("hn,bnt->bht", p["wb"], x) + p["bb"][None]
        mu = jnp.mean(h, axis=(1, 2), keepdims=True)
        var = jnp.mean((h - mu) ** 2, axis=(1, 2), keepdims=True)
        h = p["g1"][None] * (h - mu) / jnp.sqrt(var + eps) + p["be1"][None]
        pad = (kernel_size - 1) * d
        lft, rgt = pad // 2, pad - pad // 2
        h_pad = jnp.pad(h, ((0, 0), (0, 0), (lft, rgt)))
        y = sum(p["wdw"][None, :, k:k + 1] * h_pad[:, :, k * d:k * d + T]
                for k in range(kernel_size)) + p["bdw"][None]
        mu = jnp.mean(y, axis=(1, 2), keepdims=True)
        var = jnp.mean((y - mu) ** 2, axis=(1, 2), keepdims=True)
        y = p["g2"][None] * (y - mu) / jnp.sqrt(var + eps) + p["be2"][None]
        out = jnp.einsum("oh,bht->bot", p["wo"], y) + p["bo"][None] + res
        skip = jnp.einsum("sh,bht->bst", p["ws"], y) + p["bs"][None]
        x = out
        skip_total = skip_total + skip
    return x, skip_total


if __name__ == "__main__":
    batch = 2
    num_features = 16
    hidden_channels = 32
    skip_channels = 16
    num_samples = 16
    kernel_size = 3
    num_layers = 3

    key = jax.random.PRNGKey(0)
    key, xk = jax.random.split(key)
    x = jax.random.normal(xk, (batch, num_features, num_samples), jnp.float32)

    layer_keys = jax.random.split(key, num_layers)
    layer_params = [
        init_layer_params(layer_keys[i], num_features, hidden_channels,
                          skip_channels, kernel_size)
        for i in range(num_layers)
    ]

    out, skip = time_dilated_conv_block_1d(x, layer_params, kernel_size=kernel_size)
    out = jax.block_until_ready(out)
    skip = jax.block_until_ready(skip)

    assert out.shape == (batch, num_features, num_samples)
    assert skip.shape == (batch, skip_channels, num_samples)

    # Validate against the pure-JAX reference (loose f32 tolerance).
    ref_out, ref_skip = _reference_forward(x, layer_params, kernel_size=kernel_size)
    assert float(jnp.max(jnp.abs(out - ref_out))) < 1e-3
    assert float(jnp.max(jnp.abs(skip - ref_skip))) < 1e-3

    print("KERNEL_OK")
</pallas_src>

<mosaic_0001>
module attributes {stable_mosaic.version = 11 : i64} {
  func.func @tdcn_block_kernel(%arg0: i32, %arg1: memref<1x16x128xf32, #tpu.memory_space<vmem>>, %arg2: memref<3x32x16xf32, #tpu.memory_space<vmem>>, %arg3: memref<3x32x1xf32, #tpu.memory_space<vmem>>, %arg4: memref<3x32x1xf32, #tpu.memory_space<vmem>>, %arg5: memref<3x32x1xf32, #tpu.memory_space<vmem>>, %arg6: memref<3x3x32x1xf32, #tpu.memory_space<vmem>>, %arg7: memref<3x32x1xf32, #tpu.memory_space<vmem>>, %arg8: memref<3x32x1xf32, #tpu.memory_space<vmem>>, %arg9: memref<3x32x1xf32, #tpu.memory_space<vmem>>, %arg10: memref<3x32x32xf32, #tpu.memory_space<vmem>>, %arg11: memref<3x32x1xf32, #tpu.memory_space<vmem>>, %arg12: memref<1x16x128xf32, #tpu.memory_space<vmem>>, %arg13: memref<1x16x128xf32, #tpu.memory_space<vmem>>, %arg14: memref<32x384xf32, #tpu.memory_space<vmem>>) attributes {dimension_semantics = [#tpu.dimension_semantics<parallel>], iteration_bounds = array<i64: 2>, scalar_prefetch = 0 : i64, scratch_operands = 1 : i64, tpu.core_type = #tpu.core_type<tc>, window_params = [{transform_indices = @transform_0, window_bounds = array<i64: 1, 16, 128>}, {pipeline_mode = #tpu.pipeline_mode<synchronous>, transform_indices = @transform_1, window_bounds = array<i64: 3, 32, 16>}, {pipeline_mode = #tpu.pipeline_mode<synchronous>, transform_indices = @transform_2, window_bounds = array<i64: 3, 32, 1>}, {pipeline_mode = #tpu.pipeline_mode<synchronous>, transform_indices = @transform_3, window_bounds = array<i64: 3, 32, 1>}, {pipeline_mode = #tpu.pipeline_mode<synchronous>, transform_indices = @transform_4, window_bounds = array<i64: 3, 32, 1>}, {pipeline_mode = #tpu.pipeline_mode<synchronous>, transform_indices = @transform_5, window_bounds = array<i64: 3, 3, 32, 1>}, {pipeline_mode = #tpu.pipeline_mode<synchronous>, transform_indices = @transform_6, window_bounds = array<i64: 3, 32, 1>}, {pipeline_mode = #tpu.pipeline_mode<synchronous>, transform_indices = @transform_7, window_bounds = array<i64: 3, 32, 1>}, {pipeline_mode = #tpu.pipeline_mode<synchronous>, transform_indices = @transform_8, window_bounds = array<i64: 3, 32, 1>}, {pipeline_mode = #tpu.pipeline_mode<synchronous>, transform_indices = @transform_9, window_bounds = array<i64: 3, 32, 32>}, {pipeline_mode = #tpu.pipeline_mode<synchronous>, transform_indices = @transform_10, window_bounds = array<i64: 3, 32, 1>}, {transform_indices = @transform_11, window_bounds = array<i64: 1, 16, 128>}, {transform_indices = @transform_12, window_bounds = array<i64: 1, 16, 128>}]} {
    %cst = arith.constant 0.000000e+00 : f32
    %0 = vector.broadcast %cst : f32 to vector<32x128xf32>
    %c0 = arith.constant 0 : index
    %c0_0 = arith.constant 0 : index
    %1 = vector.load %arg14[%c0, %c0_0] : memref<32x384xf32, #tpu.memory_space<vmem>>, vector<32x128xf32>
    tpu.vector_store %arg14[%c0, %c0_0], %0 {strides = array<i32>} : memref<32x384xf32, #tpu.memory_space<vmem>>, vector<32x128xf32>,
    %cst_1 = arith.constant 0.000000e+00 : f32
    %2 = vector.broadcast %cst_1 : f32 to vector<32x128xf32>
    %c0_2 = arith.constant 0 : index
    %c256 = arith.constant 256 : index
    %3 = vector.load %arg14[%c0_2, %c256] : memref<32x384xf32, #tpu.memory_space<vmem>>, vector<32x128xf32>
    tpu.vector_store %arg14[%c0_2, %c256], %2 {strides = array<i32>} : memref<32x384xf32, #tpu.memory_space<vmem>>, vector<32x128xf32>,
    %4 = tpu.iota {dimensions = array<i32: 1>} : vector<1x128xi32>
    %c16_i32 = arith.constant 16 : i32
    %5 = vector.broadcast %c16_i32 : i32 to vector<1x128xi32>
    %6 = arith.cmpi slt, %4, %5 : vector<1x128xi32>
    %7 = arith.extui %6 : vector<1x128xi1> to vector<1x128xi32>
    %8 = arith.sitofp %7 : vector<1x128xi32> to vector<1x128xf32>
    %c0_3 = arith.constant 0 : index
    %c0_4 = arith.constant 0 : index
    %c0_5 = arith.constant 0 : index
    %9 = vector.load %arg1[%c0_3, %c0_4, %c0_5] : memref<1x16x128xf32, #tpu.memory_space<vmem>>, vector<1x16x128xf32>
    %10 = vector.shape_cast %9 : vector<1x16x128xf32> to vector<16x128xf32>
    %cst_6 = arith.constant 0.000000e+00 : f32
    %11 = vector.broadcast %cst_6 : f32 to vector<16x128xf32>
    %c0_7 = arith.constant 0 : index
    %c0_8 = arith.constant 0 : index
    %c0_9 = arith.constant 0 : index
    %12 = vector.load %arg2[%c0_7, %c0_8, %c0_9] : memref<3x32x16xf32, #tpu.memory_space<vmem>>, vector<1x32x16xf32>
    %13 = vector.shape_cast %12 : vector<1x32x16xf32> to vector<32x16xf32>
    %cst_10 = arith.constant dense<0.000000e+00> : vector<32x128xf32>
    %14 = tpu.matmul %13, %10, %cst_10 {dimension_numbers = #tpu.dot_dimension_numbers<[1], [0], [0], [1], [0, 0, 1, 1], [], []>} : vector<32x16xf32>, vector<16x128xf32>, vector<32x128xf32> -> vector<32x128xf32>
    %c0_11 = arith.constant 0 : index
    %c0_12 = arith.constant 0 : index
    %c0_13 = arith.constant 0 : index
    %15 = vector.load %arg3[%c0_11, %c0_12, %c0_13] : memref<3x32x1xf32, #tpu.memory_space<vmem>>, vector<1x32x1xf32>
    %16 = vector.shape_cast %15 : vector<1x32x1xf32> to vector<32x1xf32>
    %17 = vector.broadcast %16 : vector<32x1xf32> to vector<32x128xf32>
    %18 = arith.addf %14, %17 : vector<32x128xf32>
    %c0_14 = arith.constant 0 : index
    %c0_15 = arith.constant 0 : index
    %c0_16 = arith.constant 0 : index
    %19 = vector.load %arg4[%c0_14, %c0_15, %c0_16] : memref<3x32x1xf32, #tpu.memory_space<vmem>>, vector<1x32x1xf32>
    %20 = vector.shape_cast %19 : vector<1x32x1xf32> to vector<32x1xf32>
    %c0_17 = arith.constant 0 : index
    %c0_18 = arith.constant 0 : index
    %c0_19 = arith.constant 0 : index
    %21 = vector.load %arg5[%c0_17, %c0_18, %c0_19] : memref<3x32x1xf32, #tpu.memory_space<vmem>>, vector<1x32x1xf32>
    %22 = vector.shape_cast %21 : vector<1x32x1xf32> to vector<32x1xf32>
    %23 = vector.broadcast %8 : vector<1x128xf32> to vector<32x128xf32>
    %24 = arith.mulf %18, %23 : vector<32x128xf32>
    %25 = vector.shape_cast %24 : vector<32x128xf32> to vector<1x32x128xf32>
    %cst_20 = arith.constant dense<0.000000e+00> : vector<1xf32>
    %26 = vector.multi_reduction <add>, %25, %cst_20 [1, 2] : vector<1x32x128xf32> to vector<1xf32>
    %27 = vector.shape_cast %26 : vector<1xf32> to vector<1x1x1xf32>
    %28 = vector.extract %27[0, 0, 0] : f32 from vector<1x1x1xf32>
    %29 = arith.mulf %24, %24 : vector<32x128xf32>
    %30 = vector.shape_cast %29 : vector<32x128xf32> to vector<1x32x128xf32>
    %cst_21 = arith.constant dense<0.000000e+00> : vector<1xf32>
    %31 = vector.multi_reduction <add>, %30, %cst_21 [1, 2] : vector<1x32x128xf32> to vector<1xf32>
    %32 = vector.shape_cast %31 : vector<1xf32> to vector<1x1x1xf32>
    %33 = vector.extract %32[0, 0, 0] : f32 from vector<1x1x1xf32>
    %cst_22 = arith.constant 0.001953125 : f32
    %34 = arith.mulf %28, %cst_22 : f32
    %cst_23 = arith.constant 0.001953125 : f32
    %35 = arith.mulf %33, %cst_23 : f32
    %36 = arith.mulf %34, %34 : f32
    %37 = arith.subf %35, %36 : f32
    %cst_24 = arith.constant 0.000000e+00 : f32
    %38 = arith.maximumf %37, %cst_24 : f32
    %39 = vector.broadcast %34 : f32 to vector<32x128xf32>
    %40 = arith.subf %18, %39 : vector<32x128xf32>
    %41 = vector.broadcast %20 : vector<32x1xf32> to vector<32x128xf32>
    %42 = arith.mulf %41, %40 : vector<32x128xf32>
    %cst_25 = arith.constant 9.99999996E-13 : f32
    %43 = arith.addf %38, %cst_25 : f32
    %44 = math.rsqrt %43 : f32
    %45 = vector.broadcast %44 : f32 to vector<32x128xf32>
    %46 = arith.mulf %42, %45 : vector<32x128xf32>
    %47 = vector.broadcast %22 : vector<32x1xf32> to vector<32x128xf32>
    %48 = arith.addf %46, %47 : vector<32x128xf32>
    %49 = vector.broadcast %8 : vector<1x128xf32> to vector<32x128xf32>
    %50 = arith.mulf %48, %49 : vector<32x128xf32>
    %c0_26 = arith.constant 0 : index
    %c128 = arith.constant 128 : index
    %51 = vector.load %arg14[%c0_26, %c128] : memref<32x384xf32, #tpu.memory_space<vmem>>, vector<32x128xf32>
    tpu.vector_store %arg14[%c0_26, %c128], %50 {strides = array<i32>} : memref<32x384xf32, #tpu.memory_space<vmem>>, vector<32x128xf32>,
    %c0_27 = arith.constant 0 : index
    %c127 = arith.constant 127 : index
    %52 = vector.load %arg14[%c0_27, %c127] : memref<32x384xf32, #tpu.memory_space<vmem>>, vector<32x128xf32>
    %c0_28 = arith.constant 0 : index
    %c0_29 = arith.constant 0 : index
    %c0_30 = arith.constant 0 : index
    %c0_31 = arith.constant 0 : index
    %53 = vector.load %arg6[%c0_28, %c0_29, %c0_30, %c0_31] : memref<3x3x32x1xf32, #tpu.memory_space<vmem>>, vector<1x1x32x1xf32>
    %54 = vector.shape_cast %53 : vector<1x1x32x1xf32> to vector<32x1xf32>
    %55 = vector.broadcast %54 : vector<32x1xf32> to vector<32x128xf32>
    %56 = arith.mulf %52, %55 : vector<32x128xf32>
    %c0_32 = arith.constant 0 : index
    %c128_33 = arith.constant 128 : index
    %57 = vector.load %arg14[%c0_32, %c128_33] : memref<32x384xf32, #tpu.memory_space<vmem>>, vector<32x128xf32>
    %c0_34 = arith.constant 0 : index
    %c1 = arith.constant 1 : index
    %c0_35 = arith.constant 0 : index
    %c0_36 = arith.constant 0 : index
    %58 = vector.load %arg6[%c0_34, %c1, %c0_35, %c0_36] : memref<3x3x32x1xf32, #tpu.memory_space<vmem>>, vector<1x1x32x1xf32>
    %59 = vector.shape_cast %58 : vector<1x1x32x1xf32> to vector<32x1xf32>
    %60 = vector.broadcast %59 : vector<32x1xf32> to vector<32x128xf32>
    %61 = arith.mulf %57, %60 : vector<32x128xf32>
    %62 = arith.addf %56, %61 : vector<32x128xf32>
    %c0_37 = arith.constant 0 : index
    %c129 = arith.constant 129 : index
    %63 = vector.load %arg14[%c0_37, %c129] : memref<32x384xf32, #tpu.memory_space<vmem>>, vector<32x128xf32>
    %c0_38 = arith.constant 0 : index
    %c2 = arith.constant 2 : index
    %c0_39 = arith.constant 0 : index
    %c0_40 = arith.constant 0 : index
    %64 = vector.load %arg6[%c0_38, %c2, %c0_39, %c0_40] : memref<3x3x32x1xf32, #tpu.memory_space<vmem>>, vector<1x1x32x1xf32>
    %65 = vector.shape_cast %64 : vector<1x1x32x1xf32> to vector<32x1xf32>
    %66 = vector.broadcast %65 : vector<32x1xf32> to vector<32x128xf32>
    %67 = arith.mulf %63, %66 : vector<32x128xf32>
    %68 = arith.addf %62, %67 : vector<32x128xf32>
    %c0_41 = arith.constant 0 : index
    %c0_42 = arith.constant 0 : index
    %c0_43 = arith.constant 0 : index
    %69 = vector.load %arg7[%c0_41, %c0_42, %c0_43] : memref<3x32x1xf32, #tpu.memory_space<vmem>>, vector<1x32x1xf32>
    %70 = vector.shape_cast %69 : vector<1x32x1xf32> to vector<32x1xf32>
    %71 = vector.broadcast %70 : vector<32x1xf32> to vector<32x128xf32>
    %72 = arith.addf %68, %71 : vector<32x128xf32>
    %c0_44 = arith.constant 0 : index
    %c0_45 = arith.constant 0 : index
    %c0_46 = arith.constant 0 : index
    %73 = vector.load %arg8[%c0_44, %c0_45, %c0_46] : memref<3x32x1xf32, #tpu.memory_space<vmem>>, vector<1x32x1xf32>
    %74 = vector.shape_cast %73 : vector<1x32x1xf32> to vector<32x1xf32>
    %c0_47 = arith.constant 0 : index
    %c0_48 = arith.constant 0 : index
    %c0_49 = arith.constant 0 : index
    %75 = vector.load %arg9[%c0_47, %c0_48, %c0_49] : memref<3x32x1xf32, #tpu.memory_space<vmem>>, vector<1x32x1xf32>
    %76 = vector.shape_cast %75 : vector<1x32x1xf32> to vector<32x1xf32>
    %77 = vector.broadcast %8 : vector<1x128xf32> to vector<32x128xf32>
    %78 = arith.mulf %72, %77 : vector<32x128xf32>
    %79 = vector.shape_cast %78 : vector<32x128xf32> to vector<1x32x128xf32>
    %cst_50 = arith.constant dense<0.000000e+00> : vector<1xf32>
    %80 = vector.multi_reduction <add>, %79, %cst_50 [1, 2] : vector<1x32x128xf32> to vector<1xf32>
    %81 = vector.shape_cast %80 : vector<1xf32> to vector<1x1x1xf32>
    %82 = vector.extract %81[0, 0, 0] : f32 from vector<1x1x1xf32>
    %83 = arith.mulf %78, %78 : vector<32x128xf32>
    %84 = vector.shape_cast %83 : vector<32x128xf32> to vector<1x32x128xf32>
    %cst_51 = arith.constant dense<0.000000e+00> : vector<1xf32>
    %85 = vector.multi_reduction <add>, %84, %cst_51 [1, 2] : vector<1x32x128xf32> to vector<1xf32>
    %86 = vector.shape_cast %85 : vector<1xf32> to vector<1x1x1xf32>
    %87 = vector.extract %86[0, 0, 0] : f32 from vector<1x1x1xf32>
    %cst_52 = arith.constant 0.001953125 : f32
    %88 = arith.mulf %82, %cst_52 : f32
    %cst_53 = arith.constant 0.001953125 : f32
    %89 = arith.mulf %87, %cst_53 : f32
    %90 = arith.mulf %88, %88 : f32
    %91 = arith.subf %89, %90 : f32
    %cst_54 = arith.constant 0.000000e+00 : f32
    %92 = arith.maximumf %91, %cst_54 : f32
    %93 = vector.broadcast %88 : f32 to vector<32x128xf32>
    %94 = arith.subf %72, %93 : vector<32x128xf32>
    %95 = vector.broadcast %74 : vector<32x1xf32> to vector<32x128xf32>
    %96 = arith.mulf %95, %94 : vector<32x128xf32>
    %cst_55 = arith.constant 9.99999996E-13 : f32
    %97 = arith.addf %92, %cst_55 : f32
    %98 = math.rsqrt %97 : f32
    %99 = vector.broadcast %98 : f32 to vector<32x128xf32>
    %100 = arith.mulf %96, %99 : vector<32x128xf32>
    %101 = vector.broadcast %76 : vector<32x1xf32> to vector<32x128xf32>
    %102 = arith.addf %100, %101 : vector<32x128xf32>
    %103 = vector.broadcast %8 : vector<1x128xf32> to vector<32x128xf32>
    %104 = arith.mulf %102, %103 : vector<32x128xf32>
    %c0_56 = arith.constant 0 : index
    %c0_57 = arith.constant 0 : index
    %c0_58 = arith.constant 0 : index
    %105 = vector.load %arg10[%c0_56, %c0_57, %c0_58] : memref<3x32x32xf32, #tpu.memory_space<vmem>>, vector<1x32x32xf32>
    %106 = vector.shape_cast %105 : vector<1x32x32xf32> to vector<32x32xf32>
    %cst_59 = arith.constant dense<0.000000e+00> : vector<32x128xf32>
    %107 = tpu.matmul %106, %104, %cst_59 {dimension_numbers = #tpu.dot_dimension_numbers<[1], [0], [0], [1], [0, 0, 1, 1], [], []>} : vector<32x32xf32>, vector<32x128xf32>, vector<32x128xf32> -> vector<32x128xf32>
    %c0_60 = arith.constant 0 : index
    %c0_61 = arith.constant 0 : index
    %c0_62 = arith.constant 0 : index
    %108 = vector.load %arg11[%c0_60, %c0_61, %c0_62] : memref<3x32x1xf32, #tpu.memory_space<vmem>>, vector<1x32x1xf32>
    %109 = vector.shape_cast %108 : vector<1x32x1xf32> to vector<32x1xf32>
    %110 = vector.broadcast %109 : vector<32x1xf32> to vector<32x128xf32>
    %111 = arith.addf %107, %110 : vector<32x128xf32>
    %112 = vector.extract_strided_slice %111 {offsets = [0, 0], sizes = [16, 128], strides = [1, 1]} : vector<32x128xf32> to vector<16x128xf32>
    %113 = arith.addf %112, %10 : vector<16x128xf32>
    %114 = vector.extract_strided_slice %111 {offsets = [16, 0], sizes = [16, 128], strides = [1, 1]} : vector<32x128xf32> to vector<16x128xf32>
    %115 = arith.addf %11, %114 : vector<16x128xf32>
    %c1_63 = arith.constant 1 : index
    %c0_64 = arith.constant 0 : index
    %c0_65 = arith.constant 0 : index
    %116 = vector.load %arg2[%c1_63, %c0_64, %c0_65] : memref<3x32x16xf32, #tpu.memory_space<vmem>>, vector<1x32x16xf32>
    %117 = vector.shape_cast %116 : vector<1x32x16xf32> to vector<32x16xf32>
    %cst_66 = arith.constant dense<0.000000e+00> : vector<32x128xf32>
    %118 = tpu.matmul %117, %113, %cst_66 {dimension_numbers = #tpu.dot_dimension_numbers<[1], [0], [0], [1], [0, 0, 1, 1], [], []>} : vector<32x16xf32>, vector<16x128xf32>, vector<32x128xf32> -> vector<32x128xf32>
    %c1_67 = arith.constant 1 : index
    %c0_68 = arith.constant 0 : index
    %c0_69 = arith.constant 0 : index
    %119 = vector.load %arg3[%c1_67, %c0_68, %c0_69] : memref<3x32x1xf32, #tpu.memory_space<vmem>>, vector<1x32x1xf32>
    %120 = vector.shape_cast %119 : vector<1x32x1xf32> to vector<32x1xf32>
    %121 = vector.broadcast %120 : vector<32x1xf32> to vector<32x128xf32>
    %122 = arith.addf %118, %121 : vector<32x128xf32>
    %c1_70 = arith.constant 1 : index
    %c0_71 = arith.constant 0 : index
    %c0_72 = arith.constant 0 : index
    %123 = vector.load %arg4[%c1_70, %c0_71, %c0_72] : memref<3x32x1xf32, #tpu.memory_space<vmem>>, vector<1x32x1xf32>
    %124 = vector.shape_cast %123 : vector<1x32x1xf32> to vector<32x1xf32>
    %c1_73 = arith.constant 1 : index
    %c0_74 = arith.constant 0 : index
    %c0_75 = arith.constant 0 : index
    %125 = vector.load %arg5[%c1_73, %c0_74, %c0_75] : memref<3x32x1xf32, #tpu.memory_space<vmem>>, vector<1x32x1xf32>
    %126 = vector.shape_cast %125 : vector<1x32x1xf32> to vector<32x1xf32>
    %127 = vector.broadcast %8 : vector<1x128xf32> to vector<32x128xf32>
    %128 = arith.mulf %122, %127 : vector<32x128xf32>
    %129 = vector.shape_cast %128 : vector<32x128xf32> to vector<1x32x128xf32>
    %cst_76 = arith.constant dense<0.000000e+00> : vector<1xf32>
    %130 = vector.multi_reduction <add>, %129, %cst_76 [1, 2] : vector<1x32x128xf32> to vector<1xf32>
    %131 = vector.shape_cast %130 : vector<1xf32> to vector<1x1x1xf32>
    %132 = vector.extract %131[0, 0, 0] : f32 from vector<1x1x1xf32>
    %133 = arith.mulf %128, %128 : vector<32x128xf32>
    %134 = vector.shape_cast %133 : vector<32x128xf32> to vector<1x32x128xf32>
    %cst_77 = arith.constant dense<0.000000e+00> : vector<1xf32>
    %135 = vector.multi_reduction <add>, %134, %cst_77 [1, 2] : vector<1x32x128xf32> to vector<1xf32>
    %136 = vector.shape_cast %135 : vector<1xf32> to vector<1x1x1xf32>
    %137 = vector.extract %136[0, 0, 0] : f32 from vector<1x1x1xf32>
    %cst_78 = arith.constant 0.001953125 : f32
    %138 = arith.mulf %132, %cst_78 : f32
    %cst_79 = arith.constant 0.001953125 : f32
    %139 = arith.mulf %137, %cst_79 : f32
    %140 = arith.mulf %138, %138 : f32
    %141 = arith.subf %139, %140 : f32
    %cst_80 = arith.constant 0.000000e+00 : f32
    %142 = arith.maximumf %141, %cst_80 : f32
    %143 = vector.broadcast %138 : f32 to vector<32x128xf32>
    %144 = arith.subf %122, %143 : vector<32x128xf32>
    %145 = vector.broadcast %124 : vector<32x1xf32> to vector<32x128xf32>
    %146 = arith.mulf %145, %144 : vector<32x128xf32>
    %cst_81 = arith.constant 9.99999996E-13 : f32
    %147 = arith.addf %142, %cst_81 : f32
    %148 = math.rsqrt %147 : f32
    %149 = vector.broadcast %148 : f32 to vector<32x128xf32>
    %150 = arith.mulf %146, %149 : vector<32x128xf32>
    %151 = vector.broadcast %126 : vector<32x1xf32> to vector<32x128xf32>
    %152 = arith.addf %150, %151 : vector<32x128xf32>
    %153 = vector.broadcast %8 : vector<1x128xf32> to vector<32x128xf32>
    %154 = arith.mulf %152, %153 : vector<32x128xf32>
    %c0_82 = arith.constant 0 : index
    %c128_83 = arith.constant 128 : index
    %155 = vector.load %arg14[%c0_82, %c128_83] : memref<32x384xf32, #tpu.memory_space<vmem>>, vector<32x128xf32>
    tpu.vector_store %arg14[%c0_82, %c128_83], %154 {strides = array<i32>} : memref<32x384xf32, #tpu.memory_space<vmem>>, vector<32x128xf32>,
    %c0_84 = arith.constant 0 : index
    %c126 = arith.constant 126 : index
    %156 = vector.load %arg14[%c0_84, %c126] : memref<32x384xf32, #tpu.memory_space<vmem>>, vector<32x128xf32>
    %c1_85 = arith.constant 1 : index
    %c0_86 = arith.constant 0 : index
    %c0_87 = arith.constant 0 : index
    %c0_88 = arith.constant 0 : index
    %157 = vector.load %arg6[%c1_85, %c0_86, %c0_87, %c0_88] : memref<3x3x32x1xf32, #tpu.memory_space<vmem>>, vector<1x1x32x1xf32>
    %158 = vector.shape_cast %157 : vector<1x1x32x1xf32> to vector<32x1xf32>
    %159 = vector.broadcast %158 : vector<32x1xf32> to vector<32x128xf32>
    %160 = arith.mulf %156, %159 : vector<32x128xf32>
    %c0_89 = arith.constant 0 : index
    %c128_90 = arith.constant 128 : index
    %161 = vector.load %arg14[%c0_89, %c128_90] : memref<32x384xf32, #tpu.memory_space<vmem>>, vector<32x128xf32>
    %c1_91 = arith.constant 1 : index
    %c1_92 = arith.constant 1 : index
    %c0_93 = arith.constant 0 : index
    %c0_94 = arith.constant 0 : index
    %162 = vector.load %arg6[%c1_91, %c1_92, %c0_93, %c0_94] : memref<3x3x32x1xf32, #tpu.memory_space<vmem>>, vector<1x1x32x1xf32>
    %163 = vector.shape_cast %162 : vector<1x1x32x1xf32> to vector<32x1xf32>
    %164 = vector.broadcast %163 : vector<32x1xf32> to vector<32x128xf32>
    %165 = arith.mulf %161, %164 : vector<32x128xf32>
    %166 = arith.addf %160, %165 : vector<32x128xf32>
    %c0_95 = arith.constant 0 : index
    %c130 = arith.constant 130 : index
    %167 = vector.load %arg14[%c0_95, %c130] : memref<32x384xf32, #tpu.memory_space<vmem>>, vector<32x128xf32>
    %c1_96 = arith.constant 1 : index
    %c2_97 = arith.constant 2 : index
    %c0_98 = arith.constant 0 : index
    %c0_99 = arith.constant 0 : index
    %168 = vector.load %arg6[%c1_96, %c2_97, %c0_98, %c0_99] : memref<3x3x32x1xf32, #tpu.memory_space<vmem>>, vector<1x1x32x1xf32>
    %169 = vector.shape_cast %168 : vector<1x1x32x1xf32> to vector<32x1xf32>
    %170 = vector.broadcast %169 : vector<32x1xf32> to vector<32x128xf32>
    %171 = arith.mulf %167, %170 : vector<32x128xf32>
    %172 = arith.addf %166, %171 : vector<32x128xf32>
    %c1_100 = arith.constant 1 : index
    %c0_101 = arith.constant 0 : index
    %c0_102 = arith.constant 0 : index
    %173 = vector.load %arg7[%c1_100, %c0_101, %c0_102] : memref<3x32x1xf32, #tpu.memory_space<vmem>>, vector<1x32x1xf32>
    %174 = vector.shape_cast %173 : vector<1x32x1xf32> to vector<32x1xf32>
    %175 = vector.broadcast %174 : vector<32x1xf32> to vector<32x128xf32>
    %176 = arith.addf %172, %175 : vector<32x128xf32>
    %c1_103 = arith.constant 1 : index
    %c0_104 = arith.constant 0 : index
    %c0_105 = arith.constant 0 : index
    %177 = vector.load %arg8[%c1_103, %c0_104, %c0_105] : memref<3x32x1xf32, #tpu.memory_space<vmem>>, vector<1x32x1xf32>
    %178 = vector.shape_cast %177 : vector<1x32x1xf32> to vector<32x1xf32>
    %c1_106 = arith.constant 1 : index
    %c0_107 = arith.constant 0 : index
    %c0_108 = arith.constant 0 : index
    %179 = vector.load %arg9[%c1_106, %c0_107, %c0_108] : memref<3x32x1xf32, #tpu.memory_space<vmem>>, vector<1x32x1xf32>
    %180 = vector.shape_cast %179 : vector<1x32x1xf32> to vector<32x1xf32>
    %181 = vector.broadcast %8 : vector<1x128xf32> to vector<32x128xf32>
    %182 = arith.mulf %176, %181 : vector<32x128xf32>
    %183 = vector.shape_cast %182 : vector<32x128xf32> to vector<1x32x128xf32>
    %cst_109 = arith.constant dense<0.000000e+00> : vector<1xf32>
    %184 = vector.multi_reduction <add>, %183, %cst_109 [1, 2] : vector<1x32x128xf32> to vector<1xf32>
    %185 = vector.shape_cast %184 : vector<1xf32> to vector<1x1x1xf32>
    %186 = vector.extract %185[0, 0, 0] : f32 from vector<1x1x1xf32>
    %187 = arith.mulf %182, %182 : vector<32x128xf32>
    %188 = vector.shape_cast %187 : vector<32x128xf32> to vector<1x32x128xf32>
    %cst_110 = arith.constant dense<0.000000e+00> : vector<1xf32>
    %189 = vector.multi_reduction <add>, %188, %cst_110 [1, 2] : vector<1x32x128xf32> to vector<1xf32>
    %190 = vector.shape_cast %189 : vector<1xf32> to vector<1x1x1xf32>
    %191 = vector.extract %190[0, 0, 0] : f32 from vector<1x1x1xf32>
    %cst_111 = arith.constant 0.001953125 : f32
    %192 = arith.mulf %186, %cst_111 : f32
    %cst_112 = arith.constant 0.001953125 : f32
    %193 = arith.mulf %191, %cst_112 : f32
    %194 = arith.mulf %192, %192 : f32
    %195 = arith.subf %193, %194 : f32
    %cst_113 = arith.constant 0.000000e+00 : f32
    %196 = arith.maximumf %195, %cst_113 : f32
    %197 = vector.broadcast %192 : f32 to vector<32x128xf32>
    %198 = arith.subf %176, %197 : vector<32x128xf32>
    %199 = vector.broadcast %178 : vector<32x1xf32> to vector<32x128xf32>
    %200 = arith.mulf %199, %198 : vector<32x128xf32>
    %cst_114 = arith.constant 9.99999996E-13 : f32
    %201 = arith.addf %196, %cst_114 : f32
    %202 = math.rsqrt %201 : f32
    %203 = vector.broadcast %202 : f32 to vector<32x128xf32>
    %204 = arith.mulf %200, %203 : vector<32x128xf32>
    %205 = vector.broadcast %180 : vector<32x1xf32> to vector<32x128xf32>
    %206 = arith.addf %204, %205 : vector<32x128xf32>
    %207 = vector.broadcast %8 : vector<1x128xf32> to vector<32x128xf32>
    %208 = arith.mulf %206, %207 : vector<32x128xf32>
    %c1_115 = arith.constant 1 : index
    %c0_116 = arith.constant 0 : index
    %c0_117 = arith.constant 0 : index
    %209 = vector.load %arg10[%c1_115, %c0_116, %c0_117] : memref<3x32x32xf32, #tpu.memory_space<vmem>>, vector<1x32x32xf32>
    %210 = vector.shape_cast %209 : vector<1x32x32xf32> to vector<32x32xf32>
    %cst_118 = arith.constant dense<0.000000e+00> : vector<32x128xf32>
    %211 = tpu.matmul %210, %208, %cst_118 {dimension_numbers = #tpu.dot_dimension_numbers<[1], [0], [0], [1], [0, 0, 1, 1], [], []>} : vector<32x32xf32>, vector<32x128xf32>, vector<32x128xf32> -> vector<32x128xf32>
    %c1_119 = arith.constant 1 : index
    %c0_120 = arith.constant 0 : index
    %c0_121 = arith.constant 0 : index
    %212 = vector.load %arg11[%c1_119, %c0_120, %c0_121] : memref<3x32x1xf32, #tpu.memory_space<vmem>>, vector<1x32x1xf32>
    %213 = vector.shape_cast %212 : vector<1x32x1xf32> to vector<32x1xf32>
    %214 = vector.broadcast %213 : vector<32x1xf32> to vector<32x128xf32>
    %215 = arith.addf %211, %214 : vector<32x128xf32>
    %216 = vector.extract_strided_slice %215 {offsets = [0, 0], sizes = [16, 128], strides = [1, 1]} : vector<32x128xf32> to vector<16x128xf32>
    %217 = arith.addf %216, %113 : vector<16x128xf32>
    %218 = vector.extract_strided_slice %215 {offsets = [16, 0], sizes = [16, 128], strides = [1, 1]} : vector<32x128xf32> to vector<16x128xf32>
    %219 = arith.addf %115, %218 : vector<16x128xf32>
    %c2_122 = arith.constant 2 : index
    %c0_123 = arith.constant 0 : index
    %c0_124 = arith.constant 0 : index
    %220 = vector.load %arg2[%c2_122, %c0_123, %c0_124] : memref<3x32x16xf32, #tpu.memory_space<vmem>>, vector<1x32x16xf32>
    %221 = vector.shape_cast %220 : vector<1x32x16xf32> to vector<32x16xf32>
    %cst_125 = arith.constant dense<0.000000e+00> : vector<32x128xf32>
    %222 = tpu.matmul %221, %217, %cst_125 {dimension_numbers = #tpu.dot_dimension_numbers<[1], [0], [0], [1], [0, 0, 1, 1], [], []>} : vector<32x16xf32>, vector<16x128xf32>, vector<32x128xf32> -> vector<32x128xf32>
    %c2_126 = arith.constant 2 : index
    %c0_127 = arith.constant 0 : index
    %c0_128 = arith.constant 0 : index
    %223 = vector.load %arg3[%c2_126, %c0_127, %c0_128] : memref<3x32x1xf32, #tpu.memory_space<vmem>>, vector<1x32x1xf32>
    %224 = vector.shape_cast %223 : vector<1x32x1xf32> to vector<32x1xf32>
    %225 = vector.broadcast %224 : vector<32x1xf32> to vector<32x128xf32>
    %226 = arith.addf %222, %225 : vector<32x128xf32>
    %c2_129 = arith.constant 2 : index
    %c0_130 = arith.constant 0 : index
    %c0_131 = arith.constant 0 : index
    %227 = vector.load %arg4[%c2_129, %c0_130, %c0_131] : memref<3x32x1xf32, #tpu.memory_space<vmem>>, vector<1x32x1xf32>
    %228 = vector.shape_cast %227 : vector<1x32x1xf32> to vector<32x1xf32>
    %c2_132 = arith.constant 2 : index
    %c0_133 = arith.constant 0 : index
    %c0_134 = arith.constant 0 : index
    %229 = vector.load %arg5[%c2_132, %c0_133, %c0_134] : memref<3x32x1xf32, #tpu.memory_space<vmem>>, vector<1x32x1xf32>
    %230 = vector.shape_cast %229 : vector<1x32x1xf32> to vector<32x1xf32>
    %231 = vector.broadcast %8 : vector<1x128xf32> to vector<32x128xf32>
    %232 = arith.mulf %226, %231 : vector<32x128xf32>
    %233 = vector.shape_cast %232 : vector<32x128xf32> to vector<1x32x128xf32>
    %cst_135 = arith.constant dense<0.000000e+00> : vector<1xf32>
    %234 = vector.multi_reduction <add>, %233, %cst_135 [1, 2] : vector<1x32x128xf32> to vector<1xf32>
    %235 = vector.shape_cast %234 : vector<1xf32> to vector<1x1x1xf32>
    %236 = vector.extract %235[0, 0, 0] : f32 from vector<1x1x1xf32>
    %237 = arith.mulf %232, %232 : vector<32x128xf32>
    %238 = vector.shape_cast %237 : vector<32x128xf32> to vector<1x32x128xf32>
    %cst_136 = arith.constant dense<0.000000e+00> : vector<1xf32>
    %239 = vector.multi_reduction <add>, %238, %cst_136 [1, 2] : vector<1x32x128xf32> to vector<1xf32>
    %240 = vector.shape_cast %239 : vector<1xf32> to vector<1x1x1xf32>
    %241 = vector.extract %240[0, 0, 0] : f32 from vector<1x1x1xf32>
    %cst_137 = arith.constant 0.001953125 : f32
    %242 = arith.mulf %236, %cst_137 : f32
    %cst_138 = arith.constant 0.001953125 : f32
    %243 = arith.mulf %241, %cst_138 : f32
    %244 = arith.mulf %242, %242 : f32
    %245 = arith.subf %243, %244 : f32
    %cst_139 = arith.constant 0.000000e+00 : f32
    %246 = arith.maximumf %245, %cst_139 : f32
    %247 = vector.broadcast %242 : f32 to vector<32x128xf32>
    %248 = arith.subf %226, %247 : vector<32x128xf32>
    %249 = vector.broadcast %228 : vector<32x1xf32> to vector<32x128xf32>
    %250 = arith.mulf %249, %248 : vector<32x128xf32>
    %cst_140 = arith.constant 9.99999996E-13 : f32
    %251 = arith.addf %246, %cst_140 : f32
    %252 = math.rsqrt %251 : f32
    %253 = vector.broadcast %252 : f32 to vector<32x128xf32>
    %254 = arith.mulf %250, %253 : vector<32x128xf32>
    %255 = vector.broadcast %230 : vector<32x1xf32> to vector<32x128xf32>
    %256 = arith.addf %254, %255 : vector<32x128xf32>
    %257 = vector.broadcast %8 : vector<1x128xf32> to vector<32x128xf32>
    %258 = arith.mulf %256, %257 : vector<32x128xf32>
    %c0_141 = arith.constant 0 : index
    %c128_142 = arith.constant 128 : index
    %259 = vector.load %arg14[%c0_141, %c128_142] : memref<32x384xf32, #tpu.memory_space<vmem>>, vector<32x128xf32>
    tpu.vector_store %arg14[%c0_141, %c128_142], %258 {strides = array<i32>} : memref<32x384xf32, #tpu.memory_space<vmem>>, vector<32x128xf32>,
    %c0_143 = arith.constant 0 : index
    %c124 = arith.constant 124 : index
    %260 = vector.load %arg14[%c0_143, %c124] : memref<32x384xf32, #tpu.memory_space<vmem>>, vector<32x128xf32>
    %c2_144 = arith.constant 2 : index
    %c0_145 = arith.constant 0 : index
    %c0_146 = arith.constant 0 : index
    %c0_147 = arith.constant 0 : index
    %261 = vector.load %arg6[%c2_144, %c0_145, %c0_146, %c0_147] : memref<3x3x32x1xf32, #tpu.memory_space<vmem>>, vector<1x1x32x1xf32>
    %262 = vector.shape_cast %261 : vector<1x1x32x1xf32> to vector<32x1xf32>
    %263 = vector.broadcast %262 : vector<32x1xf32> to vector<32x128xf32>
    %264 = arith.mulf %260, %263 : vector<32x128xf32>
    %c0_148 = arith.constant 0 : index
    %c128_149 = arith.constant 128 : index
    %265 = vector.load %arg14[%c0_148, %c128_149] : memref<32x384xf32, #tpu.memory_space<vmem>>, vector<32x128xf32>
    %c2_150 = arith.constant 2 : index
    %c1_151 = arith.constant 1 : index
    %c0_152 = arith.constant 0 : index
    %c0_153 = arith.constant 0 : index
    %266 = vector.load %arg6[%c2_150, %c1_151, %c0_152, %c0_153] : memref<3x3x32x1xf32, #tpu.memory_space<vmem>>, vector<1x1x32x1xf32>
    %267 = vector.shape_cast %266 : vector<1x1x32x1xf32> to vector<32x1xf32>
    %268 = vector.broadcast %267 : vector<32x1xf32> to vector<32x128xf32>
    %269 = arith.mulf %265, %268 : vector<32x128xf32>
    %270 = arith.addf %264, %269 : vector<32x128xf32>
    %c0_154 = arith.constant 0 : index
    %c132 = arith.constant 132 : index
    %271 = vector.load %arg14[%c0_154, %c132] : memref<32x384xf32, #tpu.memory_space<vmem>>, vector<32x128xf32>
    %c2_155 = arith.constant 2 : index
    %c2_156 = arith.constant 2 : index
    %c0_157 = arith.constant 0 : index
    %c0_158 = arith.constant 0 : index
    %272 = vector.load %arg6[%c2_155, %c2_156, %c0_157, %c0_158] : memref<3x3x32x1xf32, #tpu.memory_space<vmem>>, vector<1x1x32x1xf32>
    %273 = vector.shape_cast %272 : vector<1x1x32x1xf32> to vector<32x1xf32>
    %274 = vector.broadcast %273 : vector<32x1xf32> to vector<32x128xf32>
    %275 = arith.mulf %271, %274 : vector<32x128xf32>
    %276 = arith.addf %270, %275 : vector<32x128xf32>
    %c2_159 = arith.constant 2 : index
    %c0_160 = arith.constant 0 : index
    %c0_161 = arith.constant 0 : index
    %277 = vector.load %arg7[%c2_159, %c0_160, %c0_161] : memref<3x32x1xf32, #tpu.memory_space<vmem>>, vector<1x32x1xf32>
    %278 = vector.shape_cast %277 : vector<1x32x1xf32> to vector<32x1xf32>
    %279 = vector.broadcast %278 : vector<32x1xf32> to vector<32x128xf32>
    %280 = arith.addf %276, %279 : vector<32x128xf32>
    %c2_162 = arith.constant 2 : index
    %c0_163 = arith.constant 0 : index
    %c0_164 = arith.constant 0 : index
    %281 = vector.load %arg8[%c2_162, %c0_163, %c0_164] : memref<3x32x1xf32, #tpu.memory_space<vmem>>, vector<1x32x1xf32>
    %282 = vector.shape_cast %281 : vector<1x32x1xf32> to vector<32x1xf32>
    %c2_165 = arith.constant 2 : index
    %c0_166 = arith.constant 0 : index
    %c0_167 = arith.constant 0 : index
    %283 = vector.load %arg9[%c2_165, %c0_166, %c0_167] : memref<3x32x1xf32, #tpu.memory_space<vmem>>, vector<1x32x1xf32>
    %284 = vector.shape_cast %283 : vector<1x32x1xf32> to vector<32x1xf32>
    %285 = vector.broadcast %8 : vector<1x128xf32> to vector<32x128xf32>
    %286 = arith.mulf %280, %285 : vector<32x128xf32>
    %287 = vector.shape_cast %286 : vector<32x128xf32> to vector<1x32x128xf32>
    %cst_168 = arith.constant dense<0.000000e+00> : vector<1xf32>
    %288 = vector.multi_reduction <add>, %287, %cst_168 [1, 2] : vector<1x32x128xf32> to vector<1xf32>
    %289 = vector.shape_cast %288 : vector<1xf32> to vector<1x1x1xf32>
    %290 = vector.extract %289[0, 0, 0] : f32 from vector<1x1x1xf32>
    %291 = arith.mulf %286, %286 : vector<32x128xf32>
    %292 = vector.shape_cast %291 : vector<32x128xf32> to vector<1x32x128xf32>
    %cst_169 = arith.constant dense<0.000000e+00> : vector<1xf32>
    %293 = vector.multi_reduction <add>, %292, %cst_169 [1, 2] : vector<1x32x128xf32> to vector<1xf32>
    %294 = vector.shape_cast %293 : vector<1xf32> to vector<1x1x1xf32>
    %295 = vector.extract %294[0, 0, 0] : f32 from vector<1x1x1xf32>
    %cst_170 = arith.constant 0.001953125 : f32
    %296 = arith.mulf %290, %cst_170 : f32
    %cst_171 = arith.constant 0.001953125 : f32
    %297 = arith.mulf %295, %cst_171 : f32
    %298 = arith.mulf %296, %296 : f32
    %299 = arith.subf %297, %298 : f32
    %cst_172 = arith.constant 0.000000e+00 : f32
    %300 = arith.maximumf %299, %cst_172 : f32
    %301 = vector.broadcast %296 : f32 to vector<32x128xf32>
    %302 = arith.subf %280, %301 : vector<32x128xf32>
    %303 = vector.broadcast %282 : vector<32x1xf32> to vector<32x128xf32>
    %304 = arith.mulf %303, %302 : vector<32x128xf32>
    %cst_173 = arith.constant 9.99999996E-13 : f32
    %305 = arith.addf %300, %cst_173 : f32
    %306 = math.rsqrt %305 : f32
    %307 = vector.broadcast %306 : f32 to vector<32x128xf32>
    %308 = arith.mulf %304, %307 : vector<32x128xf32>
    %309 = vector.broadcast %284 : vector<32x1xf32> to vector<32x128xf32>
    %310 = arith.addf %308, %309 : vector<32x128xf32>
    %311 = vector.broadcast %8 : vector<1x128xf32> to vector<32x128xf32>
    %312 = arith.mulf %310, %311 : vector<32x128xf32>
    %c2_174 = arith.constant 2 : index
    %c0_175 = arith.constant 0 : index
    %c0_176 = arith.constant 0 : index
    %313 = vector.load %arg10[%c2_174, %c0_175, %c0_176] : memref<3x32x32xf32, #tpu.memory_space<vmem>>, vector<1x32x32xf32>
    %314 = vector.shape_cast %313 : vector<1x32x32xf32> to vector<32x32xf32>
    %cst_177 = arith.constant dense<0.000000e+00> : vector<32x128xf32>
    %315 = tpu.matmul %314, %312, %cst_177 {dimension_numbers = #tpu.dot_dimension_numbers<[1], [0], [0], [1], [0, 0, 1, 1], [], []>} : vector<32x32xf32>, vector<32x128xf32>, vector<32x128xf32> -> vector<32x128xf32>
    %c2_178 = arith.constant 2 : index
    %c0_179 = arith.constant 0 : index
    %c0_180 = arith.constant 0 : index
    %316 = vector.load %arg11[%c2_178, %c0_179, %c0_180] : memref<3x32x1xf32, #tpu.memory_space<vmem>>, vector<1x32x1xf32>
    %317 = vector.shape_cast %316 : vector<1x32x1xf32> to vector<32x1xf32>
    %318 = vector.broadcast %317 : vector<32x1xf32> to vector<32x128xf32>
    %319 = arith.addf %315, %318 : vector<32x128xf32>
    %320 = vector.extract_strided_slice %319 {offsets = [0, 0], sizes = [16, 128], strides = [1, 1]} : vector<32x128xf32> to vector<16x128xf32>
    %321 = arith.addf %320, %217 : vector<16x128xf32>
    %322 = vector.extract_strided_slice %319 {offsets = [16, 0], sizes = [16, 128], strides = [1, 1]} : vector<32x128xf32> to vector<16x128xf32>
    %323 = arith.addf %219, %322 : vector<16x128xf32>
    %c0_181 = arith.constant 0 : index
    %c0_182 = arith.constant 0 : index
    %c0_183 = arith.constant 0 : index
    %324 = vector.load %arg12[%c0_181, %c0_182, %c0_183] : memref<1x16x128xf32, #tpu.memory_space<vmem>>, vector<1x16x128xf32>
    %325 = vector.shape_cast %324 : vector<1x16x128xf32> to vector<16x128xf32>
    %326 = vector.shape_cast %321 : vector<16x128xf32> to vector<1x16x128xf32>
    tpu.vector_store %arg12[%c0_181, %c0_182, %c0_183], %326 {strides = array<i32>} : memref<1x16x128xf32, #tpu.memory_space<vmem>>, vector<1x16x128xf32>,
    %c0_184 = arith.constant 0 : index
    %c0_185 = arith.constant 0 : index
    %c0_186 = arith.constant 0 : index
    %327 = vector.load %arg13[%c0_184, %c0_185, %c0_186] : memref<1x16x128xf32, #tpu.memory_space<vmem>>, vector<1x16x128xf32>
    %328 = vector.shape_cast %327 : vector<1x16x128xf32> to vector<16x128xf32>
    %329 = vector.shape_cast %323 : vector<16x128xf32> to vector<1x16x128xf32>
    tpu.vector_store %arg13[%c0_184, %c0_185, %c0_186], %329 {strides = array<i32>} : memref<1x16x128xf32, #tpu.memory_space<vmem>>, vector<1x16x128xf32>,
    return
  }
  func.func @transform_0(%arg0: i32) -> (i32, i32, i32) {
    %c0_i32 = arith.constant 0 : i32
    %c0_i32_0 = arith.constant 0 : i32
    %c0_i32_1 = arith.constant 0 : i32
    return %arg0, %c0_i32, %c0_i32_0 : i32, i32, i32
  }
  func.func @transform_1(%arg0: i32) -> (i32, i32, i32) {
    %c0_i32 = arith.constant 0 : i32
    %c0_i32_0 = arith.constant 0 : i32
    %c0_i32_1 = arith.constant 0 : i32
    %c0_i32_2 = arith.constant 0 : i32
    return %c0_i32, %c0_i32_0, %c0_i32_1 : i32, i32, i32
  }
  func.func @transform_2(%arg0: i32) -> (i32, i32, i32) {
    %c0_i32 = arith.constant 0 : i32
    %c0_i32_0 = arith.constant 0 : i32
    %c0_i32_1 = arith.constant 0 : i32
    %c0_i32_2 = arith.constant 0 : i32
    return %c0_i32, %c0_i32_0, %c0_i32_1 : i32, i32, i32
  }
  func.func @transform_3(%arg0: i32) -> (i32, i32, i32) {
    %c0_i32 = arith.constant 0 : i32
    %c0_i32_0 = arith.constant 0 : i32
    %c0_i32_1 = arith.constant 0 : i32
    %c0_i32_2 = arith.constant 0 : i32
    return %c0_i32, %c0_i32_0, %c0_i32_1 : i32, i32, i32
  }
  func.func @transform_4(%arg0: i32) -> (i32, i32, i32) {
    %c0_i32 = arith.constant 0 : i32
    %c0_i32_0 = arith.constant 0 : i32
    %c0_i32_1 = arith.constant 0 : i32
    %c0_i32_2 = arith.constant 0 : i32
    return %c0_i32, %c0_i32_0, %c0_i32_1 : i32, i32, i32
  }
  func.func @transform_5(%arg0: i32) -> (i32, i32, i32, i32) {
    %c0_i32 = arith.constant 0 : i32
    %c0_i32_0 = arith.constant 0 : i32
    %c0_i32_1 = arith.constant 0 : i32
    %c0_i32_2 = arith.constant 0 : i32
    %c0_i32_3 = arith.constant 0 : i32
    return %c0_i32, %c0_i32_0, %c0_i32_1, %c0_i32_2 : i32, i32, i32, i32
  }
  func.func @transform_6(%arg0: i32) -> (i32, i32, i32) {
    %c0_i32 = arith.constant 0 : i32
    %c0_i32_0 = arith.constant 0 : i32
    %c0_i32_1 = arith.constant 0 : i32
    %c0_i32_2 = arith.constant 0 : i32
    return %c0_i32, %c0_i32_0, %c0_i32_1 : i32, i32, i32
  }
  func.func @transform_7(%arg0: i32) -> (i32, i32, i32) {
    %c0_i32 = arith.constant 0 : i32
    %c0_i32_0 = arith.constant 0 : i32
    %c0_i32_1 = arith.constant 0 : i32
    %c0_i32_2 = arith.constant 0 : i32
    return %c0_i32, %c0_i32_0, %c0_i32_1 : i32, i32, i32
  }
  func.func @transform_8(%arg0: i32) -> (i32, i32, i32) {
    %c0_i32 = arith.constant 0 : i32
    %c0_i32_0 = arith.constant 0 : i32
    %c0_i32_1 = arith.constant 0 : i32
    %c0_i32_2 = arith.constant 0 : i32
    return %c0_i32, %c0_i32_0, %c0_i32_1 : i32, i32, i32
  }
  func.func @transform_9(%arg0: i32) -> (i32, i32, i32) {
    %c0_i32 = arith.constant 0 : i32
    %c0_i32_0 = arith.constant 0 : i32
    %c0_i32_1 = arith.constant 0 : i32
    %c0_i32_2 = arith.constant 0 : i32
    return %c0_i32, %c0_i32_0, %c0_i32_1 : i32, i32, i32
  }
  func.func @transform_10(%arg0: i32) -> (i32, i32, i32) {
    %c0_i32 = arith.constant 0 : i32
    %c0_i32_0 = arith.constant 0 : i32
    %c0_i32_1 = arith.constant 0 : i32
    %c0_i32_2 = arith.constant 0 : i32
    return %c0_i32, %c0_i32_0, %c0_i32_1 : i32, i32, i32
  }
  func.func @transform_11(%arg0: i32) -> (i32, i32, i32) {
    %c0_i32 = arith.constant 0 : i32
    %c0_i32_0 = arith.constant 0 : i32
    %c0_i32_1 = arith.constant 0 : i32
    return %arg0, %c0_i32, %c0_i32_0 : i32, i32, i32
  }
  func.func @transform_12(%arg0: i32) -> (i32, i32, i32) {
    %c0_i32 = arith.constant 0 : i32
    %c0_i32_0 = arith.constant 0 : i32
    %c0_i32_1 = arith.constant 0 : i32
    return %arg0, %c0_i32, %c0_i32_0 : i32, i32, i32
  }
}

</mosaic_0001>

<llo_original>
// kernel: tpu_custom_call.1
$region0: #{tpu_custom_call.1}
  #allocation0 [shape = 'u32[]', space=smem, size = 0x4, offset = 0x4, fixed_abs, tag = 'smem constant byte address 0x4 - core index']
  #allocation1 [shape = 'u32[144,128]{1,0:T(1,128)}', space=vmem, size = 0x12000, scoped, tag = 'internal scratch']
  #allocation2 [shape = 'f32[32,384]{1,0:T(8,128)}', space=vmem, size = 0xc000, scoped, tag = 'scratch operand']
  %s0 = inlined_call_operand.vmem [shape: f32[2,16,128], index: 0, kind: input, shape index: {}]
  %s1 = inlined_call_operand.vmem [shape: f32[3,32,16], index: 1, kind: input, shape index: {}]
  %s2 = inlined_call_operand.vmem [shape: f32[3,32,1], index: 2, kind: input, shape index: {}]
  %s3 = inlined_call_operand.vmem [shape: f32[3,32,1], index: 3, kind: input, shape index: {}]
  %s4 = inlined_call_operand.vmem [shape: f32[3,32,1], index: 4, kind: input, shape index: {}]
  %s5 = inlined_call_operand.vmem [shape: f32[3,3,32,1], index: 5, kind: input, shape index: {}]
  %s6 = inlined_call_operand.vmem [shape: f32[3,32,1], index: 6, kind: input, shape index: {}]
  %s7 = inlined_call_operand.vmem [shape: f32[3,32,1], index: 7, kind: input, shape index: {}]
  %s8 = inlined_call_operand.vmem [shape: f32[3,32,1], index: 8, kind: input, shape index: {}]
  %s9 = inlined_call_operand.vmem [shape: f32[3,32,32], index: 9, kind: input, shape index: {}]
  %s10 = inlined_call_operand.vmem [shape: f32[3,32,1], index: 10, kind: input, shape index: {}]
  %s11 = inlined_call_operand.hbm [shape: f32[2,16,128], index: 11, kind: output, shape index: {0}]
  %s12 = inlined_call_operand.hbm [shape: f32[2,16,128], index: 12, kind: output, shape index: {1}]
  %13 = xla_tuple %s11, %s12
  %s14 = sld [smem:[#allocation0]]
  $region85: #{tpu_custom_call.1} parent=0
    _
  %s16 = ssub.s32 1, %s14
  %s17 = scalar_select 0, %s16, %s14
  $region1: #{tpu_custom_call.1} parent=0
    #allocation3 [shape = 'u8[16384]{0}', space=vmem, size = 0x4000, scoped, tag = 'output window, operand 0']
    #allocation4 [shape = 's32[2]{0}', space=sflag, size = 0x8, scoped, tag = 'scoped memory for tpu_custom_call.1']
    #allocation5 [shape = 'u8[16384]{0}', space=vmem, size = 0x4000, scoped, tag = 'output window, operand 1']
    #allocation6 [shape = 's32[2]{0}', space=sflag, size = 0x8, scoped, tag = 'scoped memory for tpu_custom_call.1']
    %18 = vsyncpa [#allocation4], 0
    %s19 = scalar_lea.sflag [#allocation4], 1
    %20 = vsyncpa %s19, 0
    %21 = vsyncpa [#allocation6], 0
    %s22 = scalar_lea.sflag [#allocation6], 1
    %23 = vsyncpa %s22, 0
    loop: start=0, step=1, limit=4
    $region2: #{tpu_custom_call.1} parent=1 // loop_pre_header
      _
    $region3: #{tpu_custom_call.1} parent=1 // loop_header
      %s25 = sphi 0, %s29
      %p26 = scmp.ge.s32.totalorder %s25, 4
      %s35 = sphi 0, %s37
      %s38 = sphi 0, %s35
      %s39 = sphi 0, %s38
      %s55 = sphi 0, %s39
      %s59 = sphi 0, %s59
      %s61 = sphi 0, %s59
      %s62 = sphi 0, %s61
      %s76 = sphi 0, %s62
      %s80 = sphi 0, %s80
      %s82 = sphi 0, %s80
      %s83 = sphi 0, %s82
      %s97 = sphi 0, %s83
      %s101 = sphi 0, %s101
      %s103 = sphi 0, %s101
      %s104 = sphi 0, %s103
      %s118 = sphi 0, %s104
      %s122 = sphi 0, %s122
      %s124 = sphi 0, %s122
      %s125 = sphi 0, %s124
      %s139 = sphi 0, %s125
      %s143 = sphi 0, %s143
      %s145 = sphi 0, %s143
      %s146 = sphi 0, %s145
      %s160 = sphi 0, %s146
      %s164 = sphi 0, %s164
      %s166 = sphi 0, %s164
      %s167 = sphi 0, %s166
      %s181 = sphi 0, %s167
      %s185 = sphi 0, %s185
      %s187 = sphi 0, %s185
      %s188 = sphi 0, %s187
      %s202 = sphi 0, %s188
      %s206 = sphi 0, %s206
      %s208 = sphi 0, %s206
      %s209 = sphi 0, %s208
      %s223 = sphi 0, %s209
      %s227 = sphi 0, %s227
      %s229 = sphi 0, %s227
      %s230 = sphi 0, %s229
      %s244 = sphi 0, %s230
      %s248 = sphi 0, %s248
      %s250 = sphi 0, %s248
      %s251 = sphi 0, %s250
      %s265 = sphi 0, %s251
      %s271 = sphi 0, %s273
      %s274 = sphi 0, %s271
      %s275 = sphi 0, %s274
      %s291 = sphi 0, %s275
      %s297 = sphi 0, %s299
      %s300 = sphi 0, %s297
      %s301 = sphi 0, %s300
      %s317 = sphi 0, %s301
    $region4: #{tpu_custom_call.1} parent=1 // loop_header_branch
      %28 = sbr.rel (%p26) target = $region8
    $region5: #{tpu_custom_call.1} parent=1 // loop_body
      %s30 = ssub.s32 %s25, 1
      %s31 = ssub.s32 %s25, 2
      %s32 = sadd.s32 %s25, 1
      %s33 = ssub.s32 %s25, %s32
      %p34 = scmp.eq.s32.totalorder %s33, 0
      %s36 = sadd.s32 %s35, 1
      %s37 = scalar_select %p34, %s35, %s36
      %p40 = pneg %p34
      %p41 = scmp.eq.s32.totalorder %s25, 1
      %p42 = por %p40, %p41
      %p43 = scmp.ne.s32.totalorder %s35, %s38
      %p44 = scmp.eq.s32.totalorder %s25, 0
      %p45 = por %p43, %p44
      %p46 = scmp.ne.s32.totalorder %s35, %s38
      %p47 = scmp.eq.s32.totalorder %s30, 1
      %p48 = por %p46, %p47
      %p49 = scmp.ne.s32.totalorder %s38, %s39
      %p50 = scmp.eq.s32.totalorder %s30, 0
      %p51 = por %p49, %p50
      %p52 = scmp.ne.s32.totalorder %s38, %s39
      %p53 = scmp.eq.s32.totalorder %s31, 1
      %p54 = por %p52, %p53
      %p56 = scmp.ne.s32.totalorder %s39, %s55
      %p57 = scmp.eq.s32.totalorder %s31, 0
      %p58 = por %p56, %p57
      %s60 = sadd.s32 %s59, 1
      %p63 = scmp.eq.s32.totalorder %s25, 1
      %p64 = scmp.ne.s32.totalorder %s59, %s61
      %p65 = scmp.eq.s32.totalorder %s25, 0
      %p66 = por %p64, %p65
      %p67 = scmp.ne.s32.totalorder %s59, %s61
      %p68 = scmp.eq.s32.totalorder %s30, 1
      %p69 = por %p67, %p68
      %p70 = scmp.ne.s32.totalorder %s61, %s62
      %p71 = scmp.eq.s32.totalorder %s30, 0
      %p72 = por %p70, %p71
      %p73 = scmp.ne.s32.totalorder %s61, %s62
      %p74 = scmp.eq.s32.totalorder %s31, 1
      %p75 = por %p73, %p74
      %p77 = scmp.ne.s32.totalorder %s62, %s76
      %p78 = scmp.eq.s32.totalorder %s31, 0
      %p79 = por %p77, %p78
      %s81 = sadd.s32 %s80, 1
      %p84 = scmp.eq.s32.totalorder %s25, 1
      %p85 = scmp.ne.s32.totalorder %s80, %s82
      %p86 = scmp.eq.s32.totalorder %s25, 0
      %p87 = por %p85, %p86
      %p88 = scmp.ne.s32.totalorder %s80, %s82
      %p89 = scmp.eq.s32.totalorder %s30, 1
      %p90 = por %p88, %p89
      %p91 = scmp.ne.s32.totalorder %s82, %s83
      %p92 = scmp.eq.s32.totalorder %s30, 0
      %p93 = por %p91, %p92
      %p94 = scmp.ne.s32.totalorder %s82, %s83
      %p95 = scmp.eq.s32.totalorder %s31, 1
      %p96 = por %p94, %p95
      %p98 = scmp.ne.s32.totalorder %s83, %s97
      %p99 = scmp.eq.s32.totalorder %s31, 0
      %p100 = por %p98, %p99
      %s102 = sadd.s32 %s101, 1
      %p105 = scmp.eq.s32.totalorder %s25, 1
      %p106 = scmp.ne.s32.totalorder %s101, %s103
      %p107 = scmp.eq.s32.totalorder %s25, 0
      %p108 = por %p106, %p107
      %p109 = scmp.ne.s32.totalorder %s101, %s103
      %p110 = scmp.eq.s32.totalorder %s30, 1
      %p111 = por %p109, %p110
      %p112 = scmp.ne.s32.totalorder %s103, %s104
      %p113 = scmp.eq.s32.totalorder %s30, 0
      %p114 = por %p112, %p113
      %p115 = scmp.ne.s32.totalorder %s103, %s104
      %p116 = scmp.eq.s32.totalorder %s31, 1
      %p117 = por %p115, %p116
      %p119 = scmp.ne.s32.totalorder %s104, %s118
      %p120 = scmp.eq.s32.totalorder %s31, 0
      %p121 = por %p119, %p120
      %s123 = sadd.s32 %s122, 1
      %p126 = scmp.eq.s32.totalorder %s25, 1
      %p127 = scmp.ne.s32.totalorder %s122, %s124
      %p128 = scmp.eq.s32.totalorder %s25, 0
      %p129 = por %p127, %p128
      %p130 = scmp.ne.s32.totalorder %s122, %s124
      %p131 = scmp.eq.s32.totalorder %s30, 1
      %p132 = por %p130, %p131
      %p133 = scmp.ne.s32.totalorder %s124, %s125
      %p134 = scmp.eq.s32.totalorder %s30, 0
      %p135 = por %p133, %p134
      %p136 = scmp.ne.s32.totalorder %s124, %s125
      %p137 = scmp.eq.s32.totalorder %s31, 1
      %p138 = por %p136, %p137
      %p140 = scmp.ne.s32.totalorder %s125, %s139
      %p141 = scmp.eq.s32.totalorder %s31, 0
      %p142 = por %p140, %p141
      %s144 = sadd.s32 %s143, 1
      %p147 = scmp.eq.s32.totalorder %s25, 1
      %p148 = scmp.ne.s32.totalorder %s143, %s145
      %p149 = scmp.eq.s32.totalorder %s25, 0
      %p150 = por %p148, %p149
      %p151 = scmp.ne.s32.totalorder %s143, %s145
      %p152 = scmp.eq.s32.totalorder %s30, 1
      %p153 = por %p151, %p152
      %p154 = scmp.ne.s32.totalorder %s145, %s146
      %p155 = scmp.eq.s32.totalorder %s30, 0
      %p156 = por %p154, %p155
      %p157 = scmp.ne.s32.totalorder %s145, %s146
      %p158 = scmp.eq.s32.totalorder %s31, 1
      %p159 = por %p157, %p158
      %p161 = scmp.ne.s32.totalorder %s146, %s160
      %p162 = scmp.eq.s32.totalorder %s31, 0
      %p163 = por %p161, %p162
      %s165 = sadd.s32 %s164, 1
      %p168 = scmp.eq.s32.totalorder %s25, 1
      %p169 = scmp.ne.s32.totalorder %s164, %s166
      %p170 = scmp.eq.s32.totalorder %s25, 0
      %p171 = por %p169, %p170
      %p172 = scmp.ne.s32.totalorder %s164, %s166
      %p173 = scmp.eq.s32.totalorder %s30, 1
      %p174 = por %p172, %p173
      %p175 = scmp.ne.s32.totalorder %s166, %s167
      %p176 = scmp.eq.s32.totalorder %s30, 0
      %p177 = por %p175, %p176
      %p178 = scmp.ne.s32.totalorder %s166, %s167
      %p179 = scmp.eq.s32.totalorder %s31, 1
      %p180 = por %p178, %p179
      %p182 = scmp.ne.s32.totalorder %s167, %s181
      %p183 = scmp.eq.s32.totalorder %s31, 0
      %p184 = por %p182, %p183
      %s186 = sadd.s32 %s185, 1
      %p189 = scmp.eq.s32.totalorder %s25, 1
      %p190 = scmp.ne.s32.totalorder %s185, %s187
      %p191 = scmp.eq.s32.totalorder %s25, 0
      %p192 = por %p190, %p191
      %p193 = scmp.ne.s32.totalorder %s185, %s187
      %p194 = scmp.eq.s32.totalorder %s30, 1
      %p195 = por %p193, %p194
      %p196 = scmp.ne.s32.totalorder %s187, %s188
      %p197 = scmp.eq.s32.totalorder %s30, 0
      %p198 = por %p196, %p197
      %p199 = scmp.ne.s32.totalorder %s187, %s188
      %p200 = scmp.eq.s32.totalorder %s31, 1
      %p201 = por %p199, %p200
      %p203 = scmp.ne.s32.totalorder %s188, %s202
      %p204 = scmp.eq.s32.totalorder %s31, 0
      %p205 = por %p203, %p204
      %s207 = sadd.s32 %s206, 1
      %p210 = scmp.eq.s32.totalorder %s25, 1
      %p211 = scmp.ne.s32.totalorder %s206, %s208
      %p212 = scmp.eq.s32.totalorder %s25, 0
      %p213 = por %p211, %p212
      %p214 = scmp.ne.s32.totalorder %s206, %s208
      %p215 = scmp.eq.s32.totalorder %s30, 1
      %p216 = por %p214, %p215
      %p217 = scmp.ne.s32.totalorder %s208, %s209
      %p218 = scmp.eq.s32.totalorder %s30, 0
      %p219 = por %p217, %p218
      %p220 = scmp.ne.s32.totalorder %s208, %s209
      %p221 = scmp.eq.s32.totalorder %s31, 1
      %p222 = por %p220, %p221
      %p224 = scmp.ne.s32.totalorder %s209, %s223
      %p225 = scmp.eq.s32.totalorder %s31, 0
      %p226 = por %p224, %p225
      %s228 = sadd.s32 %s227, 1
      %p231 = scmp.eq.s32.totalorder %s25, 1
      %p232 = scmp.ne.s32.totalorder %s227, %s229
      %p233 = scmp.eq.s32.totalorder %s25, 0
      %p234 = por %p232, %p233
      %p235 = scmp.ne.s32.totalorder %s227, %s229
      %p236 = scmp.eq.s32.totalorder %s30, 1
      %p237 = por %p235, %p236
      %p238 = scmp.ne.s32.totalorder %s229, %s230
      %p239 = scmp.eq.s32.totalorder %s30, 0
      %p240 = por %p238, %p239
      %p241 = scmp.ne.s32.totalorder %s229, %s230
      %p242 = scmp.eq.s32.totalorder %s31, 1
      %p243 = por %p241, %p242
      %p245 = scmp.ne.s32.totalorder %s230, %s244
      %p246 = scmp.eq.s32.totalorder %s31, 0
      %p247 = por %p245, %p246
      %s249 = sadd.s32 %s248, 1
      %p252 = scmp.eq.s32.totalorder %s25, 1
      %p253 = scmp.ne.s32.totalorder %s248, %s250
      %p254 = scmp.eq.s32.totalorder %s25, 0
      %p255 = por %p253, %p254
      %p256 = scmp.ne.s32.totalorder %s248, %s250
      %p257 = scmp.eq.s32.totalorder %s30, 1
      %p258 = por %p256, %p257
      %p259 = scmp.ne.s32.totalorder %s250, %s251
      %p260 = scmp.eq.s32.totalorder %s30, 0
      %p261 = por %p259, %p260
      %p262 = scmp.ne.s32.totalorder %s250, %s251
      %p263 = scmp.eq.s32.totalorder %s31, 1
      %p264 = por %p262, %p263
      %p266 = scmp.ne.s32.totalorder %s251, %s265
      %p267 = scmp.eq.s32.totalorder %s31, 0
      %p268 = por %p266, %p267
      %s269 = ssub.s32 %s25, %s32
      %p270 = scmp.eq.s32.totalorder %s269, 0
      %s272 = sadd.s32 %s271, 1
      %s273 = scalar_select %p270, %s271, %s272
      %p276 = pneg %p270
      %p277 = scmp.eq.s32.totalorder %s25, 1
      %p278 = por %p276, %p277
      %p279 = scmp.ne.s32.totalorder %s271, %s274
      %p280 = scmp.eq.s32.totalorder %s25, 0
      %p281 = por %p279, %p280
      %p282 = scmp.ne.s32.totalorder %s271, %s274
      %p283 = scmp.eq.s32.totalorder %s30, 1
      %p284 = por %p282, %p283
      %p285 = scmp.ne.s32.totalorder %s274, %s275
      %p286 = scmp.eq.s32.totalorder %s30, 0
      %p287 = por %p285, %p286
      %p288 = scmp.ne.s32.totalorder %s274, %s275
      %p289 = scmp.eq.s32.totalorder %s31, 1
      %p290 = por %p288, %p289
      %p292 = scmp.ne.s32.totalorder %s275, %s291
      %p293 = scmp.eq.s32.totalorder %s31, 0
      %p294 = por %p292, %p293
      %s295 = ssub.s32 %s25, %s32
      %p296 = scmp.eq.s32.totalorder %s295, 0
      %s298 = sadd.s32 %s297, 1
      %s299 = scalar_select %p296, %s297, %s298
      %p302 = pneg %p296
      %p303 = scmp.eq.s32.totalorder %s25, 1
      %p304 = por %p302, %p303
      %p305 = scmp.ne.s32.totalorder %s297, %s300
      %p306 = scmp.eq.s32.totalorder %s25, 0
      %p307 = por %p305, %p306
      %p308 = scmp.ne.s32.totalorder %s297, %s300
      %p309 = scmp.eq.s32.totalorder %s30, 1
      %p310 = por %p308, %p309
      %p311 = scmp.ne.s32.totalorder %s300, %s301
      %p312 = scmp.eq.s32.totalorder %s30, 0
      %p313 = por %p311, %p312
      %p314 = scmp.ne.s32.totalorder %s300, %s301
      %p315 = scmp.eq.s32.totalorder %s31, 1
      %p316 = por %p314, %p315
      %p318 = scmp.ne.s32.totalorder %s301, %s317
      %p319 = scmp.eq.s32.totalorder %s31, 0
      %p320 = por %p318, %p319
      %p321 = scmp.le.s32.totalorder 1, %s25
      %p322 = scmp.lt.s32.totalorder %s25, 3
      %p323 = pnand %p321, %p322
      %p324 = pneg %p323
      // Predicated region
      $region9: #{tpu_custom_call.1} parent=5 // pred_check
        _
      $region10: #{tpu_custom_call.1} parent=5 // pred_check_branch
        %326 = sbr.rel (%p323) target = $region12
      $region11: #{tpu_custom_call.1} parent=5 // pred_region
        %s327 = ssub.s32 %s25, 1
        // Predicated region
        $region13: #{tpu_custom_call.1} parent=11 // pred_check
          %p328 = pneg %p72
        $region14: #{tpu_custom_call.1} parent=11 // pred_check_branch
          %330 = sbr.rel (%p328) target = $region16
        $region15: #{tpu_custom_call.1} parent=11 // pred_region
          _
        $region16: #{tpu_custom_call.1} parent=11 // pred_fallthru
          _
        // Predicated region
        $region17: #{tpu_custom_call.1} parent=11 // pred_check
          %p331 = pneg %p93
        $region18: #{tpu_custom_call.1} parent=11 // pred_check_branch
          %333 = sbr.rel (%p331) target = $region20
        $region19: #{tpu_custom_call.1} parent=11 // pred_region
          _
        $region20: #{tpu_custom_call.1} parent=11 // pred_fallthru
          _
        // Predicated region
        $region21: #{tpu_custom_call.1} parent=11 // pred_check
          %p334 = pneg %p114
        $region22: #{tpu_custom_call.1} parent=11 // pred_check_branch
          %336 = sbr.rel (%p334) target = $region24
        $region23: #{tpu_custom_call.1} parent=11 // pred_region
          _
        $region24: #{tpu_custom_call.1} parent=11 // pred_fallthru
          _
        // Predicated region
        $region25: #{tpu_custom_call.1} parent=11 // pred_check
          %p337 = pneg %p135
        $region26: #{tpu_custom_call.1} parent=11 // pred_check_branch
          %339 = sbr.rel (%p337) target = $region28
        $region27: #{tpu_custom_call.1} parent=11 // pred_region
          _
        $region28: #{tpu_custom_call.1} parent=11 // pred_fallthru
          _
        // Predicated region
        $region29: #{tpu_custom_call.1} parent=11 // pred_check
          %p340 = pneg %p156
        $region30: #{tpu_custom_call.1} parent=11 // pred_check_branch
          %342 = sbr.rel (%p340) target = $region32
        $region31: #{tpu_custom_call.1} parent=11 // pred_region
          _
        $region32: #{tpu_custom_call.1} parent=11 // pred_fallthru
          _
        // Predicated region
        $region33: #{tpu_custom_call.1} parent=11 // pred_check
          %p343 = pneg %p177
        $region34: #{tpu_custom_call.1} parent=11 // pred_check_branch
          %345 = sbr.rel (%p343) target = $region36
        $region35: #{tpu_custom_call.1} parent=11 // pred_region
          _
        $region36: #{tpu_custom_call.1} parent=11 // pred_fallthru
          _
        // Predicated region
        $region37: #{tpu_custom_call.1} parent=11 // pred_check
          %p346 = pneg %p198
        $region38: #{tpu_custom_call.1} parent=11 // pred_check_branch
          %348 = sbr.rel (%p346) target = $region40
        $region39: #{tpu_custom_call.1} parent=11 // pred_region
          _
        $region40: #{tpu_custom_call.1} parent=11 // pred_fallthru
          _
        // Predicated region
        $region41: #{tpu_custom_call.1} parent=11 // pred_check
          %p349 = pneg %p219
        $region42: #{tpu_custom_call.1} parent=11 // pred_check_branch
          %351 = sbr.rel (%p349) target = $region44
        $region43: #{tpu_custom_call.1} parent=11 // pred_region
          _
        $region44: #{tpu_custom_call.1} parent=11 // pred_fallthru
          _
        // Predicated region
        $region45: #{tpu_custom_call.1} parent=11 // pred_check
          %p352 = pneg %p240
        $region46: #{tpu_custom_call.1} parent=11 // pred_check_branch
          %354 = sbr.rel (%p352) target = $region48
        $region47: #{tpu_custom_call.1} parent=11 // pred_region
          _
        $region48: #{tpu_custom_call.1} parent=11 // pred_fallthru
          _
        // Predicated region
        $region49: #{tpu_custom_call.1} parent=11 // pred_check
          %p355 = pneg %p261
        $region50: #{tpu_custom_call.1} parent=11 // pred_check_branch
          %357 = sbr.rel (%p355) target = $region52
        $region51: #{tpu_custom_call.1} parent=11 // pred_region
          _
        $region52: #{tpu_custom_call.1} parent=11 // pred_fallthru
          _
      $region12: #{tpu_custom_call.1} parent=5 // pred_fallthru
        _
      %p358 = scmp.lt.s32.totalorder %s25, 2
      // Predicated region
      $region53: #{tpu_custom_call.1} parent=5 // pred_check
        %p359 = pneg %p358
      $region54: #{tpu_custom_call.1} parent=5 // pred_check_branch
        %361 = sbr.rel (%p359) target = $region56
      $region55: #{tpu_custom_call.1} parent=5 // pred_region
        // Predicated region
        $region57: #{tpu_custom_call.1} parent=55 // pred_check
          %p362 = pneg %p45
        $region58: #{tpu_custom_call.1} parent=55 // pred_check_branch
          %364 = sbr.rel (%p362) target = $region60
        $region59: #{tpu_custom_call.1} parent=55 // pred_region
          %p365 = scmp.lt.s32.totalorder %s25, 1
          %s366 = scalar_select %p365, %s25, 1
          %s367 = smul.addr %s366, 2
          %s368 = smul.addr %s367, 8
          %s369 = scalar_lea.vmem %s0, %s368
        $region60: #{tpu_custom_call.1} parent=55 // pred_fallthru
          _
      $region56: #{tpu_custom_call.1} parent=5 // pred_fallthru
        _
      %p370 = scmp.le.s32.totalorder 1, %s25
      %p371 = scmp.lt.s32.totalorder %s25, 3
      %p372 = pnand %p370, %p371
      %p373 = pneg %p372
      // Predicated region
      $region61: #{tpu_custom_call.1} parent=5 // pred_check
        _
      $region62: #{tpu_custom_call.1} parent=5 // pred_check_branch
        %375 = sbr.rel (%p372) target = $region64
      $region63: #{tpu_custom_call.1} parent=5 // pred_region
        %s376 = ssub.s32 %s25, 1
        %p377 = scmp.lt.s32.totalorder %s30, 1
        %s378 = scalar_select %p377, %s30, 1
        %s379 = smul.addr %s378, 2
        %s380 = smul.addr %s379, 8
        %s381 = scalar_lea.vmem %s0, %s380
        %p382 = pneg %p51
        %p383 = pneg %p48
        %p384 = pneg %p72
        %p385 = pneg %p69
        %p386 = pneg %p93
        %p387 = pneg %p90
        %p388 = pneg %p114
        %p389 = pneg %p111
        %p390 = pneg %p135
        %p391 = pneg %p132
        %p392 = pneg %p156
        %p393 = pneg %p153
        %p394 = pneg %p177
        %p395 = pneg %p174
        %p396 = pneg %p198
        %p397 = pneg %p195
        %p398 = pneg %p219
        %p399 = pneg %p216
        %p400 = pneg %p240
        %p401 = pneg %p237
        %p402 = pneg %p261
        %p403 = pneg %p258
        %p404 = pneg %p287
        %p405 = pneg %p284
        %s406 = sand.u32 %s274, 1
        %s407 = scalar_lea.sflag [#allocation4], %s406
        %s408 = sand.u32 %s274, 1
        %s409 = smul.addr %s408, 16
        %s410 = scalar_lea.vmem [#allocation3], %s409
        %p411 = pneg %p313
        %p412 = pneg %p310
        %s413 = sand.u32 %s300, 1
        %s414 = scalar_lea.sflag [#allocation6], %s413
        %s415 = sand.u32 %s300, 1
        %s416 = smul.addr %s415, 16
        %s417 = scalar_lea.vmem [#allocation5], %s416
        %p418 = scmp.lt.s32.totalorder %s30, 1
        %s419 = scalar_select %p418, %s30, 1
        %s420 = smul.addr %s419, 2
        %s421 = smul.addr %s420, 8
        %s422 = scalar_lea.vmem %s0, %s421
        %423 = vst [vmem:[#allocation2] sm:$0xff] 0.0
        %424 = vst [vmem:[#allocation2 + $0x18] sm:$0xff] 0.0
        %425 = vst [vmem:[#allocation2 + $0x30] sm:$0xff] 0.0
        %426 = vst [vmem:[#allocation2 + $0x48] sm:$0xff] 0.0
        %427 = vst [vmem:[#allocation2 + $0x10] sm:$0xff] 0.0
        %428 = vst [vmem:[#allocation2 + $0x28] sm:$0xff] 0.0
        %429 = vst [vmem:[#allocation2 + $0x40] sm:$0xff] 0.0
        %430 = vst [vmem:[#allocation2 + $0x58] sm:$0xff] 0.0
        %v431 = vlaneseq
        %v432 = vand.u32 %v431, 127
        %vm433 = vcmp.lt.s32.totalorder %v432, 16
        %v434 = vsel %vm433, 1, 0
        %v435 = vcvt.s32.f32 %v434
        %v436 = vld [vmem:[%s422] sm:$0xff]
        %v437 = vld [vmem:[%s422 + $0x8] sm:$0xff]
        %v438 = vld [vmem:[%s1] sm:$0xff]
        %v439 = vld [vmem:[%s1 + $0x8] sm:$0xff]
        %v440 = vld [vmem:[%s1 + $0x10] sm:$0xff]
        %v441 = vld [vmem:[%s1 + $0x18] sm:$0xff]
        %v442 = vld [vmem:[%s2] sm:$0xff]
        %v443 = vld [vmem:[%s2 + $0x8] sm:$0xff]
        %v444 = vld [vmem:[%s2 + $0x10] sm:$0xff]
        %v445 = vld [vmem:[%s2 + $0x18] sm:$0xff]
        %447 = vset.pattern.permute.xlu0 0
        %448 = vperm.xlu0 %447, %v442
        %v449 = vpop.permute.xlu0 %448
        %452 = vset.pattern.permute.xlu0 0
        %453 = vperm.xlu0 %452, %v443
        %v454 = vpop.permute.xlu0 %453
        %457 = vset.pattern.permute.xlu0 0
        %458 = vperm.xlu0 %457, %v444
        %v459 = vpop.permute.xlu0 %458
        %462 = vset.pattern.permute.xlu0 0
        %463 = vperm.xlu0 %462, %v445
        %v464 = vpop.permute.xlu0 %463
        %vm466 = vcmask 130048
        %v468 = vsel %vm466, %v438, 0
        %v471 = vsel %vm466, %v439, 0
        %v474 = vsel %vm466, %v440, 0
        %v477 = vsel %vm466, %v441, 0
        %479 = vmatprep.subr.mxu0 0.0
        %480 = vmatpush1.msra.mxu0 0.0
        %481 = vmatprep.subr.mxu0 0.0
        %482 = vmatpush1.msra.mxu0 0.0
        %483 = vmatprep.subr.mxu0 0.0
        %484 = vmatpush1.msra.mxu0 0.0
        %485 = vmatprep.subr.mxu0 0.0
        %486 = vmatpush1.msra.mxu0 0.0
        %487 = vmatprep.subr.mxu0 0.0
        %488 = vmatpush1.msra.mxu0 0.0
        %489 = vmatprep.subr.mxu0 0.0
        %490 = vmatpush1.msra.mxu0 0.0
        %491 = vmatprep.subr.mxu0 0.0
        %492 = vmatpush1.msra.mxu0 0.0
        %493 = vmatprep.subr.mxu0 0.0
        %494 = vmatpush1.msra.mxu0 0.0
        %495 = vmatprep.subr.mxu0 0.0
        %496 = vmatpush1.msra.mxu0 0.0
        %497 = vmatprep.subr.mxu0 0.0
        %498 = vmatpush1.msra.mxu0 0.0
        %499 = vmatprep.subr.mxu0 0.0
        %500 = vmatpush1.msra.mxu0 0.0
        %501 = vmatprep.subr.mxu0 0.0
        %502 = vmatpush1.msra.mxu0 0.0
        %503 = vmatprep.subr.mxu0 0.0
        %504 = vmatpush1.msra.mxu0 0.0
        %505 = vmatprep.subr.mxu0 0.0
        %506 = vmatpush1.msra.mxu0 0.0
        %507 = vmatprep.subr.mxu0 0.0
        %508 = vmatpush1.msra.mxu0 %v437
        %509 = vmatprep.subr.mxu0 0.0
        %510 = vmatpush1.msra.mxu0 %v436
        %511 = vmatprep.subr.mxu0 0.0
        %512 = vmatpush2.msra.mxu0 0.0
        %513 = vmatprep.subr.mxu0 0.0
        %514 = vmatpush2.msra.mxu0 0.0
        %515 = vmatprep.subr.mxu0 0.0
        %516 = vmatpush2.msra.mxu0 0.0
        %517 = vmatprep.subr.mxu0 0.0
        %518 = vmatpush2.msra.mxu0 0.0
        %519 = vmatprep.subr.mxu0 0.0
        %520 = vmatpush2.msra.mxu0 0.0
        %521 = vmatprep.subr.mxu0 0.0
        %522 = vmatpush2.msra.mxu0 0.0
        %523 = vmatprep.subr.mxu0 0.0
        %524 = vmatpush2.msra.mxu0 0.0
        %525 = vmatprep.subr.mxu0 0.0
        %526 = vmatpush2.msra.mxu0 0.0
        %527 = vmatprep.subr.mxu0 0.0
        %528 = vmatpush2.msra.mxu0 0.0
        %529 = vmatprep.subr.mxu0 0.0
        %530 = vmatpush2.msra.mxu0 0.0
        %531 = vmatprep.subr.mxu0 0.0
        %532 = vmatpush2.msra.mxu0 0.0
        %533 = vmatprep.subr.mxu0 0.0
        %534 = vmatpush2.msra.mxu0 0.0
        %535 = vmatprep.subr.mxu0 0.0
        %536 = vmatpush2.msra.mxu0 0.0
        %537 = vmatprep.subr.mxu0 0.0
        %538 = vmatpush2.msra.mxu0 0.0
        %539 = vmatprep.subr.mxu0 0.0
        %540 = vmatpush2.msra.mxu0 0.0
        %541 = vmatprep.subr.mxu0 0.0
        %542 = vmatpush2.msra.mxu0 0.0
        %543 = vmatprep.mubr.f32.mxu0 0.0
        %544 = vmatmul.mubr.f32.gmra.mxu0 %v468
        %v545 = vpop.f32.mrf.mxu0
        %v546 = vadd.f32 %v449, %v545
        %v547 = vpop.f32.mrf.mxu0
        %548 = vmatprep.mubr.f32.mxu0 0.0
        %549 = vmatmul.mubr.f32.gmra.mxu0 %v471
        %v550 = vpop.f32.mrf.mxu0
        %v551 = vadd.f32 %v454, %v550
        %v552 = vpop.f32.mrf.mxu0
        %553 = vmatprep.mubr.f32.mxu0 0.0
        %554 = vmatmul.mubr.f32.gmra.mxu0 %v474
        %v555 = vpop.f32.mrf.mxu0
        %v556 = vadd.f32 %v459, %v555
        %v557 = vpop.f32.mrf.mxu0
        %558 = vmatprep.mubr.f32.mxu0 0.0
        %559 = vmatmul.mubr.f32.gmra.mxu0 %v477
        %v560 = vpop.f32.mrf.mxu0
        %v561 = vadd.f32 %v464, %v560
        %v562 = vpop.f32.mrf.mxu0
        %563 = vdwg.mxu0
        %v564 = vld [vmem:[%s3] sm:$0xff]
        %v565 = vld [vmem:[%s3 + $0x8] sm:$0xff]
        %v566 = vld [vmem:[%s3 + $0x10] sm:$0xff]
        %v567 = vld [vmem:[%s3 + $0x18] sm:$0xff]
        %v568 = vld [vmem:[%s4] sm:$0xff]
        %v569 = vld [vmem:[%s4 + $0x8] sm:$0xff]
        %v570 = vld [vmem:[%s4 + $0x10] sm:$0xff]
        %v571 = vld [vmem:[%s4 + $0x18] sm:$0xff]
        %v572 = vmul.f32 %v546, %v435
        %v573 = vmul.f32 %v551, %v435
        %v574 = vmul.f32 %v556, %v435
        %v575 = vmul.f32 %v561, %v435
        %v576 = vadd.f32 %v572, %v573
        %v577 = vadd.f32 %v576, %v574
        %v578 = vadd.f32 %v577, %v575
        %579 = vadd.xlane.f32.xlu0 %v578
        %v580 = vpop.xlane.xlu0 %579
        %v581 = vrot.slane %v580, 4
        %v582 = vadd.f32 %v580, %v581
        %v583 = vrot.slane %v582, 2
        %v584 = vadd.f32 %v582, %v583
        %v585 = vrot.slane %v584, 1
        %v586 = vadd.f32 %v584, %v585
        %s587 = vtos %v586
        %v588 = vmul.f32 %v572, %v572
        %v589 = vmul.f32 %v573, %v573
        %v590 = vmul.f32 %v574, %v574
        %v591 = vmul.f32 %v575, %v575
        %v592 = vadd.f32 %v588, %v589
        %v593 = vadd.f32 %v592, %v590
        %v594 = vadd.f32 %v593, %v591
        %595 = vadd.xlane.f32.xlu0 %v594
        %v596 = vpop.xlane.xlu0 %595
        %v597 = vrot.slane %v596, 4
        %v598 = vadd.f32 %v596, %v597
        %v599 = vrot.slane %v598, 2
        %v600 = vadd.f32 %v598, %v599
        %v601 = vrot.slane %v600, 1
        %v602 = vadd.f32 %v600, %v601
        %s603 = vtos %v602
        %s604 = smul.f32 %s587, 0.001953125
        %s605 = smul.f32 %s603, 0.001953125
        %s606 = smul.f32 %s604, %s604
        %s607 = ssub.f32 %s605, %s606
        %s608 = smax.f32 %s607, 0.0
        %v609 = vstv %s604
        %v610 = vsub.f32 %v546, %v609
        %v611 = vsub.f32 %v551, %v609
        %v612 = vsub.f32 %v556, %v609
        %v613 = vsub.f32 %v561, %v609
        %615 = vset.pattern.permute.xlu0 0
        %616 = vperm.xlu0 %615, %v564
        %v617 = vpop.permute.xlu0 %616
        %620 = vset.pattern.permute.xlu0 0
        %621 = vperm.xlu0 %620, %v565
        %v622 = vpop.permute.xlu0 %621
        %625 = vset.pattern.permute.xlu0 0
        %626 = vperm.xlu0 %625, %v566
        %v627 = vpop.permute.xlu0 %626
        %630 = vset.pattern.permute.xlu0 0
        %631 = vperm.xlu0 %630, %v567
        %v632 = vpop.permute.xlu0 %631
        %v634 = vmul.f32 %v617, %v610
        %v635 = vmul.f32 %v622, %v611
        %v636 = vmul.f32 %v627, %v612
        %v637 = vmul.f32 %v632, %v613
        %s638 = sadd.f32 %s608, 1e-12
        %v639 = vstv %s638
        %v640 = vrsqrt.pop %v639
        %s641 = vtos %v640
        %v642 = vstv %s641
        %v643 = vmul.f32 %v634, %v642
        %v644 = vmul.f32 %v635, %v642
        %v645 = vmul.f32 %v636, %v642
        %v646 = vmul.f32 %v637, %v642
        %648 = vset.pattern.permute.xlu0 0
        %649 = vperm.xlu0 %648, %v568
        %v650 = vpop.permute.xlu0 %649
        %653 = vset.pattern.permute.xlu0 0
        %654 = vperm.xlu0 %653, %v569
        %v655 = vpop.permute.xlu0 %654
        %658 = vset.pattern.permute.xlu0 0
        %659 = vperm.xlu0 %658, %v570
        %v660 = vpop.permute.xlu0 %659
        %663 = vset.pattern.permute.xlu0 0
        %664 = vperm.xlu0 %663, %v571
        %v665 = vpop.permute.xlu0 %664
        %v667 = vadd.f32 %v643, %v650
        %v668 = vadd.f32 %v644, %v655
        %v669 = vadd.f32 %v645, %v660
        %v670 = vadd.f32 %v646, %v665
        %v671 = vmul.f32 %v667, %v435
        %v672 = vmul.f32 %v668, %v435
        %v673 = vmul.f32 %v669, %v435
        %v674 = vmul.f32 %v670, %v435
        %675 = vst [vmem:[#allocation2 + $0x8] sm:$0xff] %v671
        %676 = vst [vmem:[#allocation2 + $0x20] sm:$0xff] %v672
        %677 = vst [vmem:[#allocation2 + $0x38] sm:$0xff] %v673
        %678 = vst [vmem:[#allocation2 + $0x50] sm:$0xff] %v674
        %v679 = vld [vmem:[#allocation2] sm:$0xff]
        %v680 = vld [vmem:[#allocation2 + $0x8] sm:$0xff]
        %v681 = vld [vmem:[#allocation2 + $0x18] sm:$0xff]
        %v682 = vld [vmem:[#allocation2 + $0x20] sm:$0xff]
        %v683 = vld [vmem:[#allocation2 + $0x30] sm:$0xff]
        %v684 = vld [vmem:[#allocation2 + $0x38] sm:$0xff]
        %v685 = vld [vmem:[#allocation2 + $0x48] sm:$0xff]
        %v686 = vld [vmem:[#allocation2 + $0x50] sm:$0xff]
        %v687 = vld [vmem:[%s5] sm:$0xff]
        %v688 = vld [vmem:[%s5 + $0x8] sm:$0xff]
        %v689 = vld [vmem:[%s5 + $0x10] sm:$0xff]
        %v690 = vld [vmem:[%s5 + $0x18] sm:$0xff]
        %692 = vset.pattern.permute.xlu0 0
        %693 = vperm.xlu0 %692, %v687
        %v694 = vpop.permute.xlu0 %693
        %697 = vset.pattern.permute.xlu0 0
        %698 = vperm.xlu0 %697, %v688
        %v699 = vpop.permute.xlu0 %698
        %702 = vset.pattern.permute.xlu0 0
        %703 = vperm.xlu0 %702, %v689
        %v704 = vpop.permute.xlu0 %703
        %707 = vset.pattern.permute.xlu0 0
        %708 = vperm.xlu0 %707, %v690
        %v709 = vpop.permute.xlu0 %708
        %v711 = vmul.f32 %v679, %v694
        %v712 = vmul.f32 %v680, %v694
        %v713 = vmul.f32 %v681, %v699
        %v714 = vmul.f32 %v682, %v699
        %v715 = vmul.f32 %v683, %v704
        %v716 = vmul.f32 %v684, %v704
        %v717 = vmul.f32 %v685, %v709
        %v718 = vmul.f32 %v686, %v709
        %s719 = scalar_lea.vmem %s5, 32
        %v720 = vld [vmem:[%s719] sm:$0xff]
        %v721 = vld [vmem:[%s719 + $0x8] sm:$0xff]
        %v722 = vld [vmem:[%s719 + $0x10] sm:$0xff]
        %v723 = vld [vmem:[%s719 + $0x18] sm:$0xff]
        %725 = vset.pattern.permute.xlu0 0
        %726 = vperm.xlu0 %725, %v720
        %v727 = vpop.permute.xlu0 %726
        %730 = vset.pattern.permute.xlu0 0
        %731 = vperm.xlu0 %730, %v721
        %v732 = vpop.permute.xlu0 %731
        %735 = vset.pattern.permute.xlu0 0
        %736 = vperm.xlu0 %735, %v722
        %v737 = vpop.permute.xlu0 %736
        %740 = vset.pattern.permute.xlu0 0
        %741 = vperm.xlu0 %740, %v723
        %v742 = vpop.permute.xlu0 %741
        %v744 = vmul.f32 %v680, %v727
        %v745 = vmul.f32 %v682, %v732
        %v746 = vmul.f32 %v684, %v737
        %v747 = vmul.f32 %v686, %v742
        %752 = vrot.lane.b32.xlu0 %v744, 127
        %v753 = vpop.permute.xlu0 %752
        %754 = vrot.lane.b32.xlu0 %v745, 127
        %v755 = vpop.permute.xlu0 %754
        %756 = vrot.lane.b32.xlu0 %v746, 127
        %v757 = vpop.permute.xlu0 %756
        %758 = vrot.lane.b32.xlu0 %v747, 127
        %v759 = vpop.permute.xlu0 %758
        %v764 = vadd.f32 %v711, %v753
        %v765 = vadd.f32 %v712, %v753
        %v766 = vadd.f32 %v713, %v755
        %v767 = vadd.f32 %v714, %v755
        %v768 = vadd.f32 %v715, %v757
        %v769 = vadd.f32 %v716, %v757
        %v770 = vadd.f32 %v717, %v759
        %v771 = vadd.f32 %v718, %v759
        %v772 = vld [vmem:[#allocation2 + $0x8] sm:$0xff]
        %v773 = vld [vmem:[#allocation2 + $0x10] sm:$0xff]
        %v774 = vld [vmem:[#allocation2 + $0x20] sm:$0xff]
        %v775 = vld [vmem:[#allocation2 + $0x28] sm:$0xff]
        %v776 = vld [vmem:[#allocation2 + $0x38] sm:$0xff]
        %v777 = vld [vmem:[#allocation2 + $0x40] sm:$0xff]
        %v778 = vld [vmem:[#allocation2 + $0x50] sm:$0xff]
        %v779 = vld [vmem:[#allocation2 + $0x58] sm:$0xff]
        %s780 = scalar_lea.vmem %s5, 64
        %v781 = vld [vmem:[%s780] sm:$0xff]
        %v782 = vld [vmem:[%s780 + $0x8] sm:$0xff]
        %v783 = vld [vmem:[%s780 + $0x10] sm:$0xff]
        %v784 = vld [vmem:[%s780 + $0x18] sm:$0xff]
        %786 = vset.pattern.permute.xlu0 0
        %787 = vperm.xlu0 %786, %v781
        %v788 = vpop.permute.xlu0 %787
        %791 = vset.pattern.permute.xlu0 0
        %792 = vperm.xlu0 %791, %v782
        %v793 = vpop.permute.xlu0 %792
        %796 = vset.pattern.permute.xlu0 0
        %797 = vperm.xlu0 %796, %v783
        %v798 = vpop.permute.xlu0 %797
        %801 = vset.pattern.permute.xlu0 0
        %802 = vperm.xlu0 %801, %v784
        %v803 = vpop.permute.xlu0 %802
        %v805 = vmul.f32 %v772, %v788
        %v806 = vmul.f32 %v773, %v788
        %v807 = vmul.f32 %v774, %v793
        %v808 = vmul.f32 %v775, %v793
        %v809 = vmul.f32 %v776, %v798
        %v810 = vmul.f32 %v777, %v798
        %v811 = vmul.f32 %v778, %v803
        %v812 = vmul.f32 %v779, %v803
        %821 = vrot.lane.b32.xlu0 %v805, 126
        %v822 = vpop.permute.xlu0 %821
        %823 = vrot.lane.b32.xlu0 %v806, 126
        %v824 = vpop.permute.xlu0 %823
        %825 = vrot.lane.b32.xlu0 %v807, 126
        %v826 = vpop.permute.xlu0 %825
        %827 = vrot.lane.b32.xlu0 %v808, 126
        %v828 = vpop.permute.xlu0 %827
        %829 = vrot.lane.b32.xlu0 %v809, 126
        %v830 = vpop.permute.xlu0 %829
        %831 = vrot.lane.b32.xlu0 %v810, 126
        %v832 = vpop.permute.xlu0 %831
        %833 = vrot.lane.b32.xlu0 %v811, 126
        %v834 = vpop.permute.xlu0 %833
        %835 = vrot.lane.b32.xlu0 %v812, 126
        %v836 = vpop.permute.xlu0 %835
        %vm837 = vcmask 1031168
        %v838 = vsel %vm837, %v822, %v824
        %v839 = vsel %vm837, %v826, %v828
        %v840 = vsel %vm837, %v830, %v832
        %v841 = vsel %vm837, %v834, %v836
        %v850 = vadd.f32 %v764, %v822
        %v851 = vadd.f32 %v765, %v838
        %v852 = vadd.f32 %v766, %v826
        %v853 = vadd.f32 %v767, %v839
        %v854 = vadd.f32 %v768, %v830
        %v855 = vadd.f32 %v769, %v840
        %v856 = vadd.f32 %v770, %v834
        %v857 = vadd.f32 %v771, %v841
        %v858 = vld [vmem:[%s6] sm:$0xff]
        %v859 = vld [vmem:[%s6 + $0x8] sm:$0xff]
        %v860 = vld [vmem:[%s6 + $0x10] sm:$0xff]
        %v861 = vld [vmem:[%s6 + $0x18] sm:$0xff]
        %863 = vset.pattern.permute.xlu0 0
        %864 = vperm.xlu0 %863, %v858
        %v865 = vpop.permute.xlu0 %864
        %868 = vset.pattern.permute.xlu0 0
        %869 = vperm.xlu0 %868, %v859
        %v870 = vpop.permute.xlu0 %869
        %873 = vset.pattern.permute.xlu0 0
        %874 = vperm.xlu0 %873, %v860
        %v875 = vpop.permute.xlu0 %874
        %878 = vset.pattern.permute.xlu0 0
        %879 = vperm.xlu0 %878, %v861
        %v880 = vpop.permute.xlu0 %879
        %v882 = vadd.f32 %v850, %v865
        %v883 = vadd.f32 %v851, %v865
        %v884 = vadd.f32 %v852, %v870
        %v885 = vadd.f32 %v853, %v870
        %v886 = vadd.f32 %v854, %v875
        %v887 = vadd.f32 %v855, %v875
        %v888 = vadd.f32 %v856, %v880
        %v889 = vadd.f32 %v857, %v880
        %v890 = vld [vmem:[%s7] sm:$0xff]
        %v891 = vld [vmem:[%s7 + $0x8] sm:$0xff]
        %v892 = vld [vmem:[%s7 + $0x10] sm:$0xff]
        %v893 = vld [vmem:[%s7 + $0x18] sm:$0xff]
        %v894 = vld [vmem:[%s8] sm:$0xff]
        %v895 = vld [vmem:[%s8 + $0x8] sm:$0xff]
        %v896 = vld [vmem:[%s8 + $0x10] sm:$0xff]
        %v897 = vld [vmem:[%s8 + $0x18] sm:$0xff]
        %899 = vrot.lane.b32.xlu0 %v435, 127
        %v900 = vpop.permute.xlu0 %899
        %v902 = vmul.f32 %v882, %v900
        %v903 = vmul.f32 %v883, %v900
        %v904 = vmul.f32 %v884, %v900
        %v905 = vmul.f32 %v885, %v900
        %v906 = vmul.f32 %v886, %v900
        %v907 = vmul.f32 %v887, %v900
        %v908 = vmul.f32 %v888, %v900
        %v909 = vmul.f32 %v889, %v900
        %918 = vrot.lane.b32.xlu0 %v902, 1
        %v919 = vpop.permute.xlu0 %918
        %920 = vrot.lane.b32.xlu0 %v903, 1
        %v921 = vpop.permute.xlu0 %920
        %922 = vrot.lane.b32.xlu0 %v904, 1
        %v923 = vpop.permute.xlu0 %922
        %924 = vrot.lane.b32.xlu0 %v905, 1
        %v925 = vpop.permute.xlu0 %924
        %926 = vrot.lane.b32.xlu0 %v906, 1
        %v927 = vpop.permute.xlu0 %926
        %928 = vrot.lane.b32.xlu0 %v907, 1
        %v929 = vpop.permute.xlu0 %928
        %930 = vrot.lane.b32.xlu0 %v908, 1
        %v931 = vpop.permute.xlu0 %930
        %932 = vrot.lane.b32.xlu0 %v909, 1
        %v933 = vpop.permute.xlu0 %932
        %vm934 = vcmask 7168
        %v935 = vsel %vm934, %v919, %v921
        %v936 = vsel %vm934, %v923, %v925
        %v937 = vsel %vm934, %v927, %v929
        %v938 = vsel %vm934, %v931, %v933
        %v943 = vadd.f32 %v935, %v936
        %v944 = vadd.f32 %v943, %v937
        %v945 = vadd.f32 %v944, %v938
        %946 = vadd.xlane.f32.xlu0 %v945
        %v947 = vpop.xlane.xlu0 %946
        %v948 = vrot.slane %v947, 4
        %v949 = vadd.f32 %v947, %v948
        %v950 = vrot.slane %v949, 2
        %v951 = vadd.f32 %v949, %v950
        %v952 = vrot.slane %v951, 1
        %v953 = vadd.f32 %v951, %v952
        %s954 = vtos %v953
        %v955 = vmul.f32 %v902, %v902
        %v956 = vmul.f32 %v903, %v903
        %v957 = vmul.f32 %v904, %v904
        %v958 = vmul.f32 %v905, %v905
        %v959 = vmul.f32 %v906, %v906
        %v960 = vmul.f32 %v907, %v907
        %v961 = vmul.f32 %v908, %v908
        %v962 = vmul.f32 %v909, %v909
        %971 = vrot.lane.b32.xlu0 %v955, 1
        %v972 = vpop.permute.xlu0 %971
        %973 = vrot.lane.b32.xlu0 %v956, 1
        %v974 = vpop.permute.xlu0 %973
        %975 = vrot.lane.b32.xlu0 %v957, 1
        %v976 = vpop.permute.xlu0 %975
        %977 = vrot.lane.b32.xlu0 %v958, 1
        %v978 = vpop.permute.xlu0 %977
        %979 = vrot.lane.b32.xlu0 %v959, 1
        %v980 = vpop.permute.xlu0 %979
        %981 = vrot.lane.b32.xlu0 %v960, 1
        %v982 = vpop.permute.xlu0 %981
        %983 = vrot.lane.b32.xlu0 %v961, 1
        %v984 = vpop.permute.xlu0 %983
        %985 = vrot.lane.b32.xlu0 %v962, 1
        %v986 = vpop.permute.xlu0 %985
        %v987 = vsel %vm934, %v972, %v974
        %v988 = vsel %vm934, %v976, %v978
        %v989 = vsel %vm934, %v980, %v982
        %v990 = vsel %vm934, %v984, %v986
        %v995 = vadd.f32 %v987, %v988
        %v996 = vadd.f32 %v995, %v989
        %v997 = vadd.f32 %v996, %v990
        %998 = vadd.xlane.f32.xlu0 %v997
        %v999 = vpop.xlane.xlu0 %998
        %v1000 = vrot.slane %v999, 4
        %v1001 = vadd.f32 %v999, %v1000
        %v1002 = vrot.slane %v1001, 2
        %v1003 = vadd.f32 %v1001, %v1002
        %v1004 = vrot.slane %v1003, 1
        %v1005 = vadd.f32 %v1003, %v1004
        %s1006 = vtos %v1005
        %s1007 = smul.f32 %s954, 0.001953125
        %s1008 = smul.f32 %s1006, 0.001953125
        %s1009 = smul.f32 %s1007, %s1007
        %s1010 = ssub.f32 %s1008, %s1009
        %s1011 = smax.f32 %s1010, 0.0
        %v1012 = vstv %s1007
        %v1013 = vsub.f32 %v882, %v1012
        %v1014 = vsub.f32 %v883, %v1012
        %v1015 = vsub.f32 %v884, %v1012
        %v1016 = vsub.f32 %v885, %v1012
        %v1017 = vsub.f32 %v886, %v1012
        %v1018 = vsub.f32 %v887, %v1012
        %v1019 = vsub.f32 %v888, %v1012
        %v1020 = vsub.f32 %v889, %v1012
        %1022 = vset.pattern.permute.xlu0 0
        %1023 = vperm.xlu0 %1022, %v890
        %v1024 = vpop.permute.xlu0 %1023
        %1027 = vset.pattern.permute.xlu0 0
        %1028 = vperm.xlu0 %1027, %v891
        %v1029 = vpop.permute.xlu0 %1028
        %1032 = vset.pattern.permute.xlu0 0
        %1033 = vperm.xlu0 %1032, %v892
        %v1034 = vpop.permute.xlu0 %1033
        %1037 = vset.pattern.permute.xlu0 0
        %1038 = vperm.xlu0 %1037, %v893
        %v1039 = vpop.permute.xlu0 %1038
        %v1041 = vmul.f32 %v1024, %v1013
        %v1042 = vmul.f32 %v1024, %v1014
        %v1043 = vmul.f32 %v1029, %v1015
        %v1044 = vmul.f32 %v1029, %v1016
        %v1045 = vmul.f32 %v1034, %v1017
        %v1046 = vmul.f32 %v1034, %v1018
        %v1047 = vmul.f32 %v1039, %v1019
        %v1048 = vmul.f32 %v1039, %v1020
        %s1049 = sadd.f32 %s1011, 1e-12
        %v1050 = vstv %s1049
        %v1051 = vrsqrt.pop %v1050
        %s1052 = vtos %v1051
        %v1053 = vstv %s1052
        %v1054 = vmul.f32 %v1041, %v1053
        %v1055 = vmul.f32 %v1042, %v1053
        %v1056 = vmul.f32 %v1043, %v1053
        %v1057 = vmul.f32 %v1044, %v1053
        %v1058 = vmul.f32 %v1045, %v1053
        %v1059 = vmul.f32 %v1046, %v1053
        %v1060 = vmul.f32 %v1047, %v1053
        %v1061 = vmul.f32 %v1048, %v1053
        %1063 = vset.pattern.permute.xlu0 0
        %1064 = vperm.xlu0 %1063, %v894
        %v1065 = vpop.permute.xlu0 %1064
        %1068 = vset.pattern.permute.xlu0 0
        %1069 = vperm.xlu0 %1068, %v895
        %v1070 = vpop.permute.xlu0 %1069
        %1073 = vset.pattern.permute.xlu0 0
        %1074 = vperm.xlu0 %1073, %v896
        %v1075 = vpop.permute.xlu0 %1074
        %1078 = vset.pattern.permute.xlu0 0
        %1079 = vperm.xlu0 %1078, %v897
        %v1080 = vpop.permute.xlu0 %1079
        %v1082 = vadd.f32 %v1054, %v1065
        %v1083 = vadd.f32 %v1055, %v1065
        %v1084 = vadd.f32 %v1056, %v1070
        %v1085 = vadd.f32 %v1057, %v1070
        %v1086 = vadd.f32 %v1058, %v1075
        %v1087 = vadd.f32 %v1059, %v1075
        %v1088 = vadd.f32 %v1060, %v1080
        %v1089 = vadd.f32 %v1061, %v1080
        %v1090 = vmul.f32 %v1082, %v900
        %v1091 = vmul.f32 %v1083, %v900
        %v1092 = vmul.f32 %v1084, %v900
        %v1093 = vmul.f32 %v1085, %v900
        %v1094 = vmul.f32 %v1086, %v900
        %v1095 = vmul.f32 %v1087, %v900
        %v1096 = vmul.f32 %v1088, %v900
        %v1097 = vmul.f32 %v1089, %v900
        %v1098 = vld [vmem:[%s9] sm:$0xff]
        %v1099 = vld [vmem:[%s9 + $0x8] sm:$0xff]
        %v1100 = vld [vmem:[%s9 + $0x10] sm:$0xff]
        %v1101 = vld [vmem:[%s9 + $0x18] sm:$0xff]
        %v1102 = vld [vmem:[%s10] sm:$0xff]
        %v1103 = vld [vmem:[%s10 + $0x8] sm:$0xff]
        %v1104 = vld [vmem:[%s10 + $0x10] sm:$0xff]
        %v1105 = vld [vmem:[%s10 + $0x18] sm:$0xff]
        %1107 = vset.pattern.permute.xlu0 0
        %1108 = vperm.xlu0 %1107, %v1102
        %v1109 = vpop.permute.xlu0 %1108
        %1112 = vset.pattern.permute.xlu0 0
        %1113 = vperm.xlu0 %1112, %v1103
        %v1114 = vpop.permute.xlu0 %1113
        %1117 = vset.pattern.permute.xlu0 0
        %1118 = vperm.xlu0 %1117, %v1104
        %v1119 = vpop.permute.xlu0 %1118
        %1122 = vset.pattern.permute.xlu0 0
        %1123 = vperm.xlu0 %1122, %v1105
        %v1124 = vpop.permute.xlu0 %1123
        %1134 = vrot.lane.b32.xlu0 %v1090, 1
        %v1135 = vpop.permute.xlu0 %1134
        %1136 = vrot.lane.b32.xlu0 %v1091, 1
        %v1137 = vpop.permute.xlu0 %1136
        %1138 = vrot.lane.b32.xlu0 %v1092, 1
        %v1139 = vpop.permute.xlu0 %1138
        %1140 = vrot.lane.b32.xlu0 %v1093, 1
        %v1141 = vpop.permute.xlu0 %1140
        %1142 = vrot.lane.b32.xlu0 %v1094, 1
        %v1143 = vpop.permute.xlu0 %1142
        %1144 = vrot.lane.b32.xlu0 %v1095, 1
        %v1145 = vpop.permute.xlu0 %1144
        %1146 = vrot.lane.b32.xlu0 %v1096, 1
        %v1147 = vpop.permute.xlu0 %1146
        %1148 = vrot.lane.b32.xlu0 %v1097, 1
        %v1149 = vpop.permute.xlu0 %1148
        %v1150 = vsel %vm934, %v1135, %v1137
        %v1151 = vsel %vm934, %v1139, %v1141
        %v1152 = vsel %vm934, %v1143, %v1145
        %v1153 = vsel %vm934, %v1147, %v1149
        %vm1158 = vcmask 261120
        %v1160 = vsel %vm1158, %v1098, 0
        %v1163 = vsel %vm1158, %v1099, 0
        %v1166 = vsel %vm1158, %v1100, 0
        %v1169 = vsel %vm1158, %v1101, 0
        %1171 = vmatprep.subr.mxu0 0.0
        %1172 = vmatpush1.msra.mxu0 0.0
        %1173 = vmatprep.subr.mxu0 0.0
        %1174 = vmatpush1.msra.mxu0 0.0
        %1175 = vmatprep.subr.mxu0 0.0
        %1176 = vmatpush1.msra.mxu0 0.0
        %1177 = vmatprep.subr.mxu0 0.0
        %1178 = vmatpush1.msra.mxu0 0.0
        %1179 = vmatprep.subr.mxu0 0.0
        %1180 = vmatpush1.msra.mxu0 0.0
        %1181 = vmatprep.subr.mxu0 0.0
        %1182 = vmatpush1.msra.mxu0 0.0
        %1183 = vmatprep.subr.mxu0 0.0
        %1184 = vmatpush1.msra.mxu0 0.0
        %1185 = vmatprep.subr.mxu0 0.0
        %1186 = vmatpush1.msra.mxu0 0.0
        %1187 = vmatprep.subr.mxu0 0.0
        %1188 = vmatpush1.msra.mxu0 0.0
        %1189 = vmatprep.subr.mxu0 0.0
        %1190 = vmatpush1.msra.mxu0 0.0
        %1191 = vmatprep.subr.mxu0 0.0
        %1192 = vmatpush1.msra.mxu0 0.0
        %1193 = vmatprep.subr.mxu0 0.0
        %1194 = vmatpush1.msra.mxu0 0.0
        %1195 = vmatprep.subr.mxu0 0.0
        %1196 = vmatpush1.msra.mxu0 %v1153
        %1197 = vmatprep.subr.mxu0 0.0
        %1198 = vmatpush1.msra.mxu0 %v1152
        %1199 = vmatprep.subr.mxu0 0.0
        %1200 = vmatpush1.msra.mxu0 %v1151
        %1201 = vmatprep.subr.mxu0 0.0
        %1202 = vmatpush1.msra.mxu0 %v1150
        %1203 = vmatprep.subr.mxu0 0.0
        %1204 = vmatpush2.msra.mxu0 0.0
        %1205 = vmatprep.subr.mxu0 0.0
        %1206 = vmatpush2.msra.mxu0 0.0
        %1207 = vmatprep.subr.mxu0 0.0
        %1208 = vmatpush2.msra.mxu0 0.0
        %1209 = vmatprep.subr.mxu0 0.0
        %1210 = vmatpush2.msra.mxu0 0.0
        %1211 = vmatprep.subr.mxu0 0.0
        %1212 = vmatpush2.msra.mxu0 0.0
        %1213 = vmatprep.subr.mxu0 0.0
        %1214 = vmatpush2.msra.mxu0 0.0
        %1215 = vmatprep.subr.mxu0 0.0
        %1216 = vmatpush2.msra.mxu0 0.0
        %1217 = vmatprep.subr.mxu0 0.0
        %1218 = vmatpush2.msra.mxu0 0.0
        %1219 = vmatprep.subr.mxu0 0.0
        %1220 = vmatpush2.msra.mxu0 0.0
        %1221 = vmatprep.subr.mxu0 0.0
        %1222 = vmatpush2.msra.mxu0 0.0
        %1223 = vmatprep.subr.mxu0 0.0
        %1224 = vmatpush2.msra.mxu0 0.0
        %1225 = vmatprep.subr.mxu0 0.0
        %1226 = vmatpush2.msra.mxu0 0.0
        %1227 = vmatprep.subr.mxu0 0.0
        %1228 = vmatpush2.msra.mxu0 0.0
        %1229 = vmatprep.subr.mxu0 0.0
        %1230 = vmatpush2.msra.mxu0 0.0
        %1231 = vmatprep.subr.mxu0 0.0
        %1232 = vmatpush2.msra.mxu0 0.0
        %1233 = vmatprep.subr.mxu0 0.0
        %1234 = vmatpush2.msra.mxu0 0.0
        %1235 = vmatprep.mubr.f32.mxu0 0.0
        %1236 = vmatmul.mubr.f32.gmra.mxu0 %v1160
        %v1237 = vpop.f32.mrf.mxu0
        %v1238 = vadd.f32 %v1109, %v1237
        %v1239 = vpop.f32.mrf.mxu0
        %1240 = vmatprep.mubr.f32.mxu0 0.0
        %1241 = vmatmul.mubr.f32.gmra.mxu0 %v1163
        %v1242 = vpop.f32.mrf.mxu0
        %v1243 = vadd.f32 %v1114, %v1242
        %v1244 = vpop.f32.mrf.mxu0
        %1245 = vmatprep.mubr.f32.mxu0 0.0
        %1246 = vmatmul.mubr.f32.gmra.mxu0 %v1166
        %v1247 = vpop.f32.mrf.mxu0
        %v1248 = vadd.f32 %v1119, %v1247
        %v1249 = vpop.f32.mrf.mxu0
        %1250 = vmatprep.mubr.f32.mxu0 0.0
        %1251 = vmatmul.mubr.f32.gmra.mxu0 %v1169
        %v1252 = vpop.f32.mrf.mxu0
        %v1253 = vadd.f32 %v1124, %v1252
        %v1254 = vpop.f32.mrf.mxu0
        %1255 = vdwg.mxu0
        %v1256 = vadd.f32 %v1238, %v436
        %v1257 = vadd.f32 %v1243, %v437
        %v1258 = vadd.f32 %v1248, 0.0
        %v1259 = vadd.f32 %v1253, 0.0
        %s1260 = scalar_lea.vmem %s1, 32
        %v1261 = vld [vmem:[%s1260] sm:$0xff]
        %v1262 = vld [vmem:[%s1260 + $0x8] sm:$0xff]
        %v1263 = vld [vmem:[%s1260 + $0x10] sm:$0xff]
        %v1264 = vld [vmem:[%s1260 + $0x18] sm:$0xff]
        %s1265 = scalar_lea.vmem %s2, 32
        %v1266 = vld [vmem:[%s1265] sm:$0xff]
        %v1267 = vld [vmem:[%s1265 + $0x8] sm:$0xff]
        %v1268 = vld [vmem:[%s1265 + $0x10] sm:$0xff]
        %v1269 = vld [vmem:[%s1265 + $0x18] sm:$0xff]
        %1271 = vset.pattern.permute.xlu0 0
        %1272 = vperm.xlu0 %1271, %v1266
        %v1273 = vpop.permute.xlu0 %1272
        %1276 = vset.pattern.permute.xlu0 0
        %1277 = vperm.xlu0 %1276, %v1267
        %v1278 = vpop.permute.xlu0 %1277
        %1281 = vset.pattern.permute.xlu0 0
        %1282 = vperm.xlu0 %1281, %v1268
        %v1283 = vpop.permute.xlu0 %1282
        %1286 = vset.pattern.permute.xlu0 0
        %1287 = vperm.xlu0 %1286, %v1269
        %v1288 = vpop.permute.xlu0 %1287
        %v1291 = vsel %vm466, %v1261, 0
        %v1294 = vsel %vm466, %v1262, 0
        %v1297 = vsel %vm466, %v1263, 0
        %v1300 = vsel %vm466, %v1264, 0
        %1302 = vmatprep.subr.mxu0 0.0
        %1303 = vmatpush1.msra.mxu0 0.0
        %1304 = vmatprep.subr.mxu0 0.0
        %1305 = vmatpush1.msra.mxu0 0.0
        %1306 = vmatprep.subr.mxu0 0.0
        %1307 = vmatpush1.msra.mxu0 0.0
        %1308 = vmatprep.subr.mxu0 0.0
        %1309 = vmatpush1.msra.mxu0 0.0
        %1310 = vmatprep.subr.mxu0 0.0
        %1311 = vmatpush1.msra.mxu0 0.0
        %1312 = vmatprep.subr.mxu0 0.0
        %1313 = vmatpush1.msra.mxu0 0.0
        %1314 = vmatprep.subr.mxu0 0.0
        %1315 = vmatpush1.msra.mxu0 0.0
        %1316 = vmatprep.subr.mxu0 0.0
        %1317 = vmatpush1.msra.mxu0 0.0
        %1318 = vmatprep.subr.mxu0 0.0
        %1319 = vmatpush1.msra.mxu0 0.0
        %1320 = vmatprep.subr.mxu0 0.0
        %1321 = vmatpush1.msra.mxu0 0.0
        %1322 = vmatprep.subr.mxu0 0.0
        %1323 = vmatpush1.msra.mxu0 0.0
        %1324 = vmatprep.subr.mxu0 0.0
        %1325 = vmatpush1.msra.mxu0 0.0
        %1326 = vmatprep.subr.mxu0 0.0
        %1327 = vmatpush1.msra.mxu0 0.0
        %1328 = vmatprep.subr.mxu0 0.0
        %1329 = vmatpush1.msra.mxu0 0.0
        %1330 = vmatprep.subr.mxu0 0.0
        %1331 = vmatpush1.msra.mxu0 %v1257
        %1332 = vmatprep.subr.mxu0 0.0
        %1333 = vmatpush1.msra.mxu0 %v1256
        %1334 = vmatprep.subr.mxu0 0.0
        %1335 = vmatpush2.msra.mxu0 0.0
        %1336 = vmatprep.subr.mxu0 0.0
        %1337 = vmatpush2.msra.mxu0 0.0
        %1338 = vmatprep.subr.mxu0 0.0
        %1339 = vmatpush2.msra.mxu0 0.0
        %1340 = vmatprep.subr.mxu0 0.0
        %1341 = vmatpush2.msra.mxu0 0.0
        %1342 = vmatprep.subr.mxu0 0.0
        %1343 = vmatpush2.msra.mxu0 0.0
        %1344 = vmatprep.subr.mxu0 0.0
        %1345 = vmatpush2.msra.mxu0 0.0
        %1346 = vmatprep.subr.mxu0 0.0
        %1347 = vmatpush2.msra.mxu0 0.0
        %1348 = vmatprep.subr.mxu0 0.0
        %1349 = vmatpush2.msra.mxu0 0.0
        %1350 = vmatprep.subr.mxu0 0.0
        %1351 = vmatpush2.msra.mxu0 0.0
        %1352 = vmatprep.subr.mxu0 0.0
        %1353 = vmatpush2.msra.mxu0 0.0
        %1354 = vmatprep.subr.mxu0 0.0
        %1355 = vmatpush2.msra.mxu0 0.0
        %1356 = vmatprep.subr.mxu0 0.0
        %1357 = vmatpush2.msra.mxu0 0.0
        %1358 = vmatprep.subr.mxu0 0.0
        %1359 = vmatpush2.msra.mxu0 0.0
        %1360 = vmatprep.subr.mxu0 0.0
        %1361 = vmatpush2.msra.mxu0 0.0
        %1362 = vmatprep.subr.mxu0 0.0
        %1363 = vmatpush2.msra.mxu0 0.0
        %1364 = vmatprep.subr.mxu0 0.0
        %1365 = vmatpush2.msra.mxu0 0.0
        %1366 = vmatprep.mubr.f32.mxu0 0.0
        %1367 = vmatmul.mubr.f32.gmra.mxu0 %v1291
        %v1368 = vpop.f32.mrf.mxu0
        %v1369 = vadd.f32 %v1273, %v1368
        %v1370 = vpop.f32.mrf.mxu0
        %1371 = vmatprep.mubr.f32.mxu0 0.0
        %1372 = vmatmul.mubr.f32.gmra.mxu0 %v1294
        %v1373 = vpop.f32.mrf.mxu0
        %v1374 = vadd.f32 %v1278, %v1373
        %v1375 = vpop.f32.mrf.mxu0
        %1376 = vmatprep.mubr.f32.mxu0 0.0
        %1377 = vmatmul.mubr.f32.gmra.mxu0 %v1297
        %v1378 = vpop.f32.mrf.mxu0
        %v1379 = vadd.f32 %v1283, %v1378
        %v1380 = vpop.f32.mrf.mxu0
        %1381 = vmatprep.mubr.f32.mxu0 0.0
        %1382 = vmatmul.mubr.f32.gmra.mxu0 %v1300
        %v1383 = vpop.f32.mrf.mxu0
        %v1384 = vadd.f32 %v1288, %v1383
        %v1385 = vpop.f32.mrf.mxu0
        %1386 = vdwg.mxu0
        %s1387 = scalar_lea.vmem %s3, 32
        %v1388 = vld [vmem:[%s1387] sm:$0xff]
        %v1389 = vld [vmem:[%s1387 + $0x8] sm:$0xff]
        %v1390 = vld [vmem:[%s1387 + $0x10] sm:$0xff]
        %v1391 = vld [vmem:[%s1387 + $0x18] sm:$0xff]
        %s1392 = scalar_lea.vmem %s4, 32
        %v1393 = vld [vmem:[%s1392] sm:$0xff]
        %v1394 = vld [vmem:[%s1392 + $0x8] sm:$0xff]
        %v1395 = vld [vmem:[%s1392 + $0x10] sm:$0xff]
        %v1396 = vld [vmem:[%s1392 + $0x18] sm:$0xff]
        %v1397 = vmul.f32 %v1369, %v435
        %v1398 = vmul.f32 %v1374, %v435
        %v1399 = vmul.f32 %v1379, %v435
        %v1400 = vmul.f32 %v1384, %v435
        %v1401 = vadd.f32 %v1397, %v1398
        %v1402 = vadd.f32 %v1401, %v1399
        %v1403 = vadd.f32 %v1402, %v1400
        %1404 = vadd.xlane.f32.xlu0 %v1403
        %v1405 = vpop.xlane.xlu0 %1404
        %v1406 = vrot.slane %v1405, 4
        %v1407 = vadd.f32 %v1405, %v1406
        %v1408 = vrot.slane %v1407, 2
        %v1409 = vadd.f32 %v1407, %v1408
        %v1410 = vrot.slane %v1409, 1
        %v1411 = vadd.f32 %v1409, %v1410
        %s1412 = vtos %v1411
        %v1413 = vmul.f32 %v1397, %v1397
        %v1414 = vmul.f32 %v1398, %v1398
        %v1415 = vmul.f32 %v1399, %v1399
        %v1416 = vmul.f32 %v1400, %v1400
        %v1417 = vadd.f32 %v1413, %v1414
        %v1418 = vadd.f32 %v1417, %v1415
        %v1419 = vadd.f32 %v1418, %v1416
        %1420 = vadd.xlane.f32.xlu0 %v1419
        %v1421 = vpop.xlane.xlu0 %1420
        %v1422 = vrot.slane %v1421, 4
        %v1423 = vadd.f32 %v1421, %v1422
        %v1424 = vrot.slane %v1423, 2
        %v1425 = vadd.f32 %v1423, %v1424
        %v1426 = vrot.slane %v1425, 1
        %v1427 = vadd.f32 %v1425, %v1426
        %s1428 = vtos %v1427
        %s1429 = smul.f32 %s1412, 0.001953125
        %s1430 = smul.f32 %s1428, 0.001953125
        %s1431 = smul.f32 %s1429, %s1429
        %s1432 = ssub.f32 %s1430, %s1431
        %s1433 = smax.f32 %s1432, 0.0
        %v1434 = vstv %s1429
        %v1435 = vsub.f32 %v1369, %v1434
        %v1436 = vsub.f32 %v1374, %v1434
        %v1437 = vsub.f32 %v1379, %v1434
        %v1438 = vsub.f32 %v1384, %v1434
        %1440 = vset.pattern.permute.xlu0 0
        %1441 = vperm.xlu0 %1440, %v1388
        %v1442 = vpop.permute.xlu0 %1441
        %1445 = vset.pattern.permute.xlu0 0
        %1446 = vperm.xlu0 %1445, %v1389
        %v1447 = vpop.permute.xlu0 %1446
        %1450 = vset.pattern.permute.xlu0 0
        %1451 = vperm.xlu0 %1450, %v1390
        %v1452 = vpop.permute.xlu0 %1451
        %1455 = vset.pattern.permute.xlu0 0
        %1456 = vperm.xlu0 %1455, %v1391
        %v1457 = vpop.permute.xlu0 %1456
        %v1459 = vmul.f32 %v1442, %v1435
        %v1460 = vmul.f32 %v1447, %v1436
        %v1461 = vmul.f32 %v1452, %v1437
        %v1462 = vmul.f32 %v1457, %v1438
        %s1463 = sadd.f32 %s1433, 1e-12
        %v1464 = vstv %s1463
        %v1465 = vrsqrt.pop %v1464
        %s1466 = vtos %v1465
        %v1467 = vstv %s1466
        %v1468 = vmul.f32 %v1459, %v1467
        %v1469 = vmul.f32 %v1460, %v1467
        %v1470 = vmul.f32 %v1461, %v1467
        %v1471 = vmul.f32 %v1462, %v1467
        %1473 = vset.pattern.permute.xlu0 0
        %1474 = vperm.xlu0 %1473, %v1393
        %v1475 = vpop.permute.xlu0 %1474
        %1478 = vset.pattern.permute.xlu0 0
        %1479 = vperm.xlu0 %1478, %v1394
        %v1480 = vpop.permute.xlu0 %1479
        %1483 = vset.pattern.permute.xlu0 0
        %1484 = vperm.xlu0 %1483, %v1395
        %v1485 = vpop.permute.xlu0 %1484
        %1488 = vset.pattern.permute.xlu0 0
        %1489 = vperm.xlu0 %1488, %v1396
        %v1490 = vpop.permute.xlu0 %1489
        %v1492 = vadd.f32 %v1468, %v1475
        %v1493 = vadd.f32 %v1469, %v1480
        %v1494 = vadd.f32 %v1470, %v1485
        %v1495 = vadd.f32 %v1471, %v1490
        %v1496 = vmul.f32 %v1492, %v435
        %v1497 = vmul.f32 %v1493, %v435
        %v1498 = vmul.f32 %v1494, %v435
        %v1499 = vmul.f32 %v1495, %v435
        %1500 = vst [vmem:[#allocation2 + $0x8] sm:$0xff] %v1496
        %1501 = vst [vmem:[#allocation2 + $0x20] sm:$0xff] %v1497
        %1502 = vst [vmem:[#allocation2 + $0x38] sm:$0xff] %v1498
        %1503 = vst [vmem:[#allocation2 + $0x50] sm:$0xff] %v1499
        %v1504 = vld [vmem:[#allocation2] sm:$0xff]
        %v1505 = vld [vmem:[#allocation2 + $0x8] sm:$0xff]
        %v1506 = vld [vmem:[#allocation2 + $0x18] sm:$0xff]
        %v1507 = vld [vmem:[#allocation2 + $0x20] sm:$0xff]
        %v1508 = vld [vmem:[#allocation2 + $0x30] sm:$0xff]
        %v1509 = vld [vmem:[#allocation2 + $0x38] sm:$0xff]
        %v1510 = vld [vmem:[#allocation2 + $0x48] sm:$0xff]
        %v1511 = vld [vmem:[#allocation2 + $0x50] sm:$0xff]
        %s1512 = scalar_lea.vmem %s5, 96
        %v1513 = vld [vmem:[%s1512] sm:$0xff]
        %v1514 = vld [vmem:[%s1512 + $0x8] sm:$0xff]
        %v1515 = vld [vmem:[%s1512 + $0x10] sm:$0xff]
        %v1516 = vld [vmem:[%s1512 + $0x18] sm:$0xff]
        %1518 = vset.pattern.permute.xlu0 0
        %1519 = vperm.xlu0 %1518, %v1513
        %v1520 = vpop.permute.xlu0 %1519
        %1523 = vset.pattern.permute.xlu0 0
        %1524 = vperm.xlu0 %1523, %v1514
        %v1525 = vpop.permute.xlu0 %1524
        %1528 = vset.pattern.permute.xlu0 0
        %1529 = vperm.xlu0 %1528, %v1515
        %v1530 = vpop.permute.xlu0 %1529
        %1533 = vset.pattern.permute.xlu0 0
        %1534 = vperm.xlu0 %1533, %v1516
        %v1535 = vpop.permute.xlu0 %1534
        %v1537 = vmul.f32 %v1504, %v1520
        %v1538 = vmul.f32 %v1505, %v1520
        %v1539 = vmul.f32 %v1506, %v1525
        %v1540 = vmul.f32 %v1507, %v1525
        %v1541 = vmul.f32 %v1508, %v1530
        %v1542 = vmul.f32 %v1509, %v1530
        %v1543 = vmul.f32 %v1510, %v1535
        %v1544 = vmul.f32 %v1511, %v1535
        %s1545 = scalar_lea.vmem %s5, 128
        %v1546 = vld [vmem:[%s1545] sm:$0xff]
        %v1547 = vld [vmem:[%s1545 + $0x8] sm:$0xff]
        %v1548 = vld [vmem:[%s1545 + $0x10] sm:$0xff]
        %v1549 = vld [vmem:[%s1545 + $0x18] sm:$0xff]
        %1551 = vset.pattern.permute.xlu0 0
        %1552 = vperm.xlu0 %1551, %v1546
        %v1553 = vpop.permute.xlu0 %1552
        %1556 = vset.pattern.permute.xlu0 0
        %1557 = vperm.xlu0 %1556, %v1547
        %v1558 = vpop.permute.xlu0 %1557
        %1561 = vset.pattern.permute.xlu0 0
        %1562 = vperm.xlu0 %1561, %v1548
        %v1563 = vpop.permute.xlu0 %1562
        %1566 = vset.pattern.permute.xlu0 0
        %1567 = vperm.xlu0 %1566, %v1549
        %v1568 = vpop.permute.xlu0 %1567
        %v1570 = vmul.f32 %v1505, %v1553
        %v1571 = vmul.f32 %v1507, %v1558
        %v1572 = vmul.f32 %v1509, %v1563
        %v1573 = vmul.f32 %v1511, %v1568
        %1578 = vrot.lane.b32.xlu0 %v1570, 126
        %v1579 = vpop.permute.xlu0 %1578
        %1580 = vrot.lane.b32.xlu0 %v1571, 126
        %v1581 = vpop.permute.xlu0 %1580
        %1582 = vrot.lane.b32.xlu0 %v1572, 126
        %v1583 = vpop.permute.xlu0 %1582
        %1584 = vrot.lane.b32.xlu0 %v1573, 126
        %v1585 = vpop.permute.xlu0 %1584
        %v1590 = vadd.f32 %v1537, %v1579
        %v1591 = vadd.f32 %v1538, %v1579
        %v1592 = vadd.f32 %v1539, %v1581
        %v1593 = vadd.f32 %v1540, %v1581
        %v1594 = vadd.f32 %v1541, %v1583
        %v1595 = vadd.f32 %v1542, %v1583
        %v1596 = vadd.f32 %v1543, %v1585
        %v1597 = vadd.f32 %v1544, %v1585
        %v1598 = vld [vmem:[#allocation2 + $0x8] sm:$0xff]
        %v1599 = vld [vmem:[#allocation2 + $0x10] sm:$0xff]
        %v1600 = vld [vmem:[#allocation2 + $0x20] sm:$0xff]
        %v1601 = vld [vmem:[#allocation2 + $0x28] sm:$0xff]
        %v1602 = vld [vmem:[#allocation2 + $0x38] sm:$0xff]
        %v1603 = vld [vmem:[#allocation2 + $0x40] sm:$0xff]
        %v1604 = vld [vmem:[#allocation2 + $0x50] sm:$0xff]
        %v1605 = vld [vmem:[#allocation2 + $0x58] sm:$0xff]
        %s1606 = scalar_lea.vmem %s5, 160
        %v1607 = vld [vmem:[%s1606] sm:$0xff]
        %v1608 = vld [vmem:[%s1606 + $0x8] sm:$0xff]
        %v1609 = vld [vmem:[%s1606 + $0x10] sm:$0xff]
        %v1610 = vld [vmem:[%s1606 + $0x18] sm:$0xff]
        %1612 = vset.pattern.permute.xlu0 0
        %1613 = vperm.xlu0 %1612, %v1607
        %v1614 = vpop.permute.xlu0 %1613
        %1617 = vset.pattern.permute.xlu0 0
        %1618 = vperm.xlu0 %1617, %v1608
        %v1619 = vpop.permute.xlu0 %1618
        %1622 = vset.pattern.permute.xlu0 0
        %1623 = vperm.xlu0 %1622, %v1609
        %v1624 = vpop.permute.xlu0 %1623
        %1627 = vset.pattern.permute.xlu0 0
        %1628 = vperm.xlu0 %1627, %v1610
        %v1629 = vpop.permute.xlu0 %1628
        %v1631 = vmul.f32 %v1598, %v1614
        %v1632 = vmul.f32 %v1599, %v1614
        %v1633 = vmul.f32 %v1600, %v1619
        %v1634 = vmul.f32 %v1601, %v1619
        %v1635 = vmul.f32 %v1602, %v1624
        %v1636 = vmul.f32 %v1603, %v1624
        %v1637 = vmul.f32 %v1604, %v1629
        %v1638 = vmul.f32 %v1605, %v1629
        %1647 = vrot.lane.b32.xlu0 %v1631, 124
        %v1648 = vpop.permute.xlu0 %1647
        %1649 = vrot.lane.b32.xlu0 %v1632, 124
        %v1650 = vpop.permute.xlu0 %1649
        %1651 = vrot.lane.b32.xlu0 %v1633, 124
        %v1652 = vpop.permute.xlu0 %1651
        %1653 = vrot.lane.b32.xlu0 %v1634, 124
        %v1654 = vpop.permute.xlu0 %1653
        %1655 = vrot.lane.b32.xlu0 %v1635, 124
        %v1656 = vpop.permute.xlu0 %1655
        %1657 = vrot.lane.b32.xlu0 %v1636, 124
        %v1658 = vpop.permute.xlu0 %1657
        %1659 = vrot.lane.b32.xlu0 %v1637, 124
        %v1660 = vpop.permute.xlu0 %1659
        %1661 = vrot.lane.b32.xlu0 %v1638, 124
        %v1662 = vpop.permute.xlu0 %1661
        %vm1663 = vcmask 1014784
        %v1664 = vsel %vm1663, %v1648, %v1650
        %v1665 = vsel %vm1663, %v1652, %v1654
        %v1666 = vsel %vm1663, %v1656, %v1658
        %v1667 = vsel %vm1663, %v1660, %v1662
        %v1676 = vadd.f32 %v1590, %v1648
        %v1677 = vadd.f32 %v1591, %v1664
        %v1678 = vadd.f32 %v1592, %v1652
        %v1679 = vadd.f32 %v1593, %v1665
        %v1680 = vadd.f32 %v1594, %v1656
        %v1681 = vadd.f32 %v1595, %v1666
        %v1682 = vadd.f32 %v1596, %v1660
        %v1683 = vadd.f32 %v1597, %v1667
        %s1684 = scalar_lea.vmem %s6, 32
        %v1685 = vld [vmem:[%s1684] sm:$0xff]
        %v1686 = vld [vmem:[%s1684 + $0x8] sm:$0xff]
        %v1687 = vld [vmem:[%s1684 + $0x10] sm:$0xff]
        %v1688 = vld [vmem:[%s1684 + $0x18] sm:$0xff]
        %1690 = vset.pattern.permute.xlu0 0
        %1691 = vperm.xlu0 %1690, %v1685
        %v1692 = vpop.permute.xlu0 %1691
        %1695 = vset.pattern.permute.xlu0 0
        %1696 = vperm.xlu0 %1695, %v1686
        %v1697 = vpop.permute.xlu0 %1696
        %1700 = vset.pattern.permute.xlu0 0
        %1701 = vperm.xlu0 %1700, %v1687
        %v1702 = vpop.permute.xlu0 %1701
        %1705 = vset.pattern.permute.xlu0 0
        %1706 = vperm.xlu0 %1705, %v1688
        %v1707 = vpop.permute.xlu0 %1706
        %v1709 = vadd.f32 %v1676, %v1692
        %v1710 = vadd.f32 %v1677, %v1692
        %v1711 = vadd.f32 %v1678, %v1697
        %v1712 = vadd.f32 %v1679, %v1697
        %v1713 = vadd.f32 %v1680, %v1702
        %v1714 = vadd.f32 %v1681, %v1702
        %v1715 = vadd.f32 %v1682, %v1707
        %v1716 = vadd.f32 %v1683, %v1707
        %s1717 = scalar_lea.vmem %s7, 32
        %v1718 = vld [vmem:[%s1717] sm:$0xff]
        %v1719 = vld [vmem:[%s1717 + $0x8] sm:$0xff]
        %v1720 = vld [vmem:[%s1717 + $0x10] sm:$0xff]
        %v1721 = vld [vmem:[%s1717 + $0x18] sm:$0xff]
        %s1722 = scalar_lea.vmem %s8, 32
        %v1723 = vld [vmem:[%s1722] sm:$0xff]
        %v1724 = vld [vmem:[%s1722 + $0x8] sm:$0xff]
        %v1725 = vld [vmem:[%s1722 + $0x10] sm:$0xff]
        %v1726 = vld [vmem:[%s1722 + $0x18] sm:$0xff]
        %1727 = vrot.lane.b32.xlu0 %v435, 126
        %v1728 = vpop.permute.xlu0 %1727
        %v1730 = vmul.f32 %v1709, %v1728
        %v1731 = vmul.f32 %v1710, %v1728
        %v1732 = vmul.f32 %v1711, %v1728
        %v1733 = vmul.f32 %v1712, %v1728
        %v1734 = vmul.f32 %v1713, %v1728
        %v1735 = vmul.f32 %v1714, %v1728
        %v1736 = vmul.f32 %v1715, %v1728
        %v1737 = vmul.f32 %v1716, %v1728
        %1746 = vrot.lane.b32.xlu0 %v1730, 2
        %v1747 = vpop.permute.xlu0 %1746
        %1748 = vrot.lane.b32.xlu0 %v1731, 2
        %v1749 = vpop.permute.xlu0 %1748
        %1750 = vrot.lane.b32.xlu0 %v1732, 2
        %v1751 = vpop.permute.xlu0 %1750
        %1752 = vrot.lane.b32.xlu0 %v1733, 2
        %v1753 = vpop.permute.xlu0 %1752
        %1754 = vrot.lane.b32.xlu0 %v1734, 2
        %v1755 = vpop.permute.xlu0 %1754
        %1756 = vrot.lane.b32.xlu0 %v1735, 2
        %v1757 = vpop.permute.xlu0 %1756
        %1758 = vrot.lane.b32.xlu0 %v1736, 2
        %v1759 = vpop.permute.xlu0 %1758
        %1760 = vrot.lane.b32.xlu0 %v1737, 2
        %v1761 = vpop.permute.xlu0 %1760
        %vm1762 = vcmask 15360
        %v1763 = vsel %vm1762, %v1747, %v1749
        %v1764 = vsel %vm1762, %v1751, %v1753
        %v1765 = vsel %vm1762, %v1755, %v1757
        %v1766 = vsel %vm1762, %v1759, %v1761
        %v1771 = vadd.f32 %v1763, %v1764
        %v1772 = vadd.f32 %v1771, %v1765
        %v1773 = vadd.f32 %v1772, %v1766
        %1774 = vadd.xlane.f32.xlu0 %v1773
        %v1775 = vpop.xlane.xlu0 %1774
        %v1776 = vrot.slane %v1775, 4
        %v1777 = vadd.f32 %v1775, %v1776
        %v1778 = vrot.slane %v1777, 2
        %v1779 = vadd.f32 %v1777, %v1778
        %v1780 = vrot.slane %v1779, 1
        %v1781 = vadd.f32 %v1779, %v1780
        %s1782 = vtos %v1781
        %v1783 = vmul.f32 %v1730, %v1730
        %v1784 = vmul.f32 %v1731, %v1731
        %v1785 = vmul.f32 %v1732, %v1732
        %v1786 = vmul.f32 %v1733, %v1733
        %v1787 = vmul.f32 %v1734, %v1734
        %v1788 = vmul.f32 %v1735, %v1735
        %v1789 = vmul.f32 %v1736, %v1736
        %v1790 = vmul.f32 %v1737, %v1737
        %1799 = vrot.lane.b32.xlu0 %v1783, 2
        %v1800 = vpop.permute.xlu0 %1799
        %1801 = vrot.lane.b32.xlu0 %v1784, 2
        %v1802 = vpop.permute.xlu0 %1801
        %1803 = vrot.lane.b32.xlu0 %v1785, 2
        %v1804 = vpop.permute.xlu0 %1803
        %1805 = vrot.lane.b32.xlu0 %v1786, 2
        %v1806 = vpop.permute.xlu0 %1805
        %1807 = vrot.lane.b32.xlu0 %v1787, 2
        %v1808 = vpop.permute.xlu0 %1807
        %1809 = vrot.lane.b32.xlu0 %v1788, 2
        %v1810 = vpop.permute.xlu0 %1809
        %1811 = vrot.lane.b32.xlu0 %v1789, 2
        %v1812 = vpop.permute.xlu0 %1811
        %1813 = vrot.lane.b32.xlu0 %v1790, 2
        %v1814 = vpop.permute.xlu0 %1813
        %v1815 = vsel %vm1762, %v1800, %v1802
        %v1816 = vsel %vm1762, %v1804, %v1806
        %v1817 = vsel %vm1762, %v1808, %v1810
        %v1818 = vsel %vm1762, %v1812, %v1814
        %v1823 = vadd.f32 %v1815, %v1816
        %v1824 = vadd.f32 %v1823, %v1817
        %v1825 = vadd.f32 %v1824, %v1818
        %1826 = vadd.xlane.f32.xlu0 %v1825
        %v1827 = vpop.xlane.xlu0 %1826
        %v1828 = vrot.slane %v1827, 4
        %v1829 = vadd.f32 %v1827, %v1828
        %v1830 = vrot.slane %v1829, 2
        %v1831 = vadd.f32 %v1829, %v1830
        %v1832 = vrot.slane %v1831, 1
        %v1833 = vadd.f32 %v1831, %v1832
        %s1834 = vtos %v1833
        %s1835 = smul.f32 %s1782, 0.001953125
        %s1836 = smul.f32 %s1834, 0.001953125
        %s1837 = smul.f32 %s1835, %s1835
        %s1838 = ssub.f32 %s1836, %s1837
        %s1839 = smax.f32 %s1838, 0.0
        %v1840 = vstv %s1835
        %v1841 = vsub.f32 %v1709, %v1840
        %v1842 = vsub.f32 %v1710, %v1840
        %v1843 = vsub.f32 %v1711, %v1840
        %v1844 = vsub.f32 %v1712, %v1840
        %v1845 = vsub.f32 %v1713, %v1840
        %v1846 = vsub.f32 %v1714, %v1840
        %v1847 = vsub.f32 %v1715, %v1840
        %v1848 = vsub.f32 %v1716, %v1840
        %1850 = vset.pattern.permute.xlu0 0
        %1851 = vperm.xlu0 %1850, %v1718
        %v1852 = vpop.permute.xlu0 %1851
        %1855 = vset.pattern.permute.xlu0 0
        %1856 = vperm.xlu0 %1855, %v1719
        %v1857 = vpop.permute.xlu0 %1856
        %1860 = vset.pattern.permute.xlu0 0
        %1861 = vperm.xlu0 %1860, %v1720
        %v1862 = vpop.permute.xlu0 %1861
        %1865 = vset.pattern.permute.xlu0 0
        %1866 = vperm.xlu0 %1865, %v1721
        %v1867 = vpop.permute.xlu0 %1866
        %v1869 = vmul.f32 %v1852, %v1841
        %v1870 = vmul.f32 %v1852, %v1842
        %v1871 = vmul.f32 %v1857, %v1843
        %v1872 = vmul.f32 %v1857, %v1844
        %v1873 = vmul.f32 %v1862, %v1845
        %v1874 = vmul.f32 %v1862, %v1846
        %v1875 = vmul.f32 %v1867, %v1847
        %v1876 = vmul.f32 %v1867, %v1848
        %s1877 = sadd.f32 %s1839, 1e-12
        %v1878 = vstv %s1877
        %v1879 = vrsqrt.pop %v1878
        %s1880 = vtos %v1879
        %v1881 = vstv %s1880
        %v1882 = vmul.f32 %v1869, %v1881
        %v1883 = vmul.f32 %v1870, %v1881
        %v1884 = vmul.f32 %v1871, %v1881
        %v1885 = vmul.f32 %v1872, %v1881
        %v1886 = vmul.f32 %v1873, %v1881
        %v1887 = vmul.f32 %v1874, %v1881
        %v1888 = vmul.f32 %v1875, %v1881
        %v1889 = vmul.f32 %v1876, %v1881
        %1891 = vset.pattern.permute.xlu0 0
        %1892 = vperm.xlu0 %1891, %v1723
        %v1893 = vpop.permute.xlu0 %1892
        %1896 = vset.pattern.permute.xlu0 0
        %1897 = vperm.xlu0 %1896, %v1724
        %v1898 = vpop.permute.xlu0 %1897
        %1901 = vset.pattern.permute.xlu0 0
        %1902 = vperm.xlu0 %1901, %v1725
        %v1903 = vpop.permute.xlu0 %1902
        %1906 = vset.pattern.permute.xlu0 0
        %1907 = vperm.xlu0 %1906, %v1726
        %v1908 = vpop.permute.xlu0 %1907
        %v1910 = vadd.f32 %v1882, %v1893
        %v1911 = vadd.f32 %v1883, %v1893
        %v1912 = vadd.f32 %v1884, %v1898
        %v1913 = vadd.f32 %v1885, %v1898
        %v1914 = vadd.f32 %v1886, %v1903
        %v1915 = vadd.f32 %v1887, %v1903
        %v1916 = vadd.f32 %v1888, %v1908
        %v1917 = vadd.f32 %v1889, %v1908
        %v1918 = vmul.f32 %v1910, %v1728
        %v1919 = vmul.f32 %v1911, %v1728
        %v1920 = vmul.f32 %v1912, %v1728
        %v1921 = vmul.f32 %v1913, %v1728
        %v1922 = vmul.f32 %v1914, %v1728
        %v1923 = vmul.f32 %v1915, %v1728
        %v1924 = vmul.f32 %v1916, %v1728
        %v1925 = vmul.f32 %v1917, %v1728
        %s1926 = scalar_lea.vmem %s9, 32
        %v1927 = vld [vmem:[%s1926] sm:$0xff]
        %v1928 = vld [vmem:[%s1926 + $0x8] sm:$0xff]
        %v1929 = vld [vmem:[%s1926 + $0x10] sm:$0xff]
        %v1930 = vld [vmem:[%s1926 + $0x18] sm:$0xff]
        %s1931 = scalar_lea.vmem %s10, 32
        %v1932 = vld [vmem:[%s1931] sm:$0xff]
        %v1933 = vld [vmem:[%s1931 + $0x8] sm:$0xff]
        %v1934 = vld [vmem:[%s1931 + $0x10] sm:$0xff]
        %v1935 = vld [vmem:[%s1931 + $0x18] sm:$0xff]
        %1937 = vset.pattern.permute.xlu0 0
        %1938 = vperm.xlu0 %1937, %v1932
        %v1939 = vpop.permute.xlu0 %1938
        %1942 = vset.pattern.permute.xlu0 0
        %1943 = vperm.xlu0 %1942, %v1933
        %v1944 = vpop.permute.xlu0 %1943
        %1947 = vset.pattern.permute.xlu0 0
        %1948 = vperm.xlu0 %1947, %v1934
        %v1949 = vpop.permute.xlu0 %1948
        %1952 = vset.pattern.permute.xlu0 0
        %1953 = vperm.xlu0 %1952, %v1935
        %v1954 = vpop.permute.xlu0 %1953
        %1964 = vrot.lane.b32.xlu0 %v1918, 2
        %v1965 = vpop.permute.xlu0 %1964
        %1966 = vrot.lane.b32.xlu0 %v1919, 2
        %v1967 = vpop.permute.xlu0 %1966
        %1968 = vrot.lane.b32.xlu0 %v1920, 2
        %v1969 = vpop.permute.xlu0 %1968
        %1970 = vrot.lane.b32.xlu0 %v1921, 2
        %v1971 = vpop.permute.xlu0 %1970
        %1972 = vrot.lane.b32.xlu0 %v1922, 2
        %v1973 = vpop.permute.xlu0 %1972
        %1974 = vrot.lane.b32.xlu0 %v1923, 2
        %v1975 = vpop.permute.xlu0 %1974
        %1976 = vrot.lane.b32.xlu0 %v1924, 2
        %v1977 = vpop.permute.xlu0 %1976
        %1978 = vrot.lane.b32.xlu0 %v1925, 2
        %v1979 = vpop.permute.xlu0 %1978
        %v1980 = vsel %vm1762, %v1965, %v1967
        %v1981 = vsel %vm1762, %v1969, %v1971
        %v1982 = vsel %vm1762, %v1973, %v1975
        %v1983 = vsel %vm1762, %v1977, %v1979
        %v1989 = vsel %vm1158, %v1927, 0
        %v1992 = vsel %vm1158, %v1928, 0
        %v1995 = vsel %vm1158, %v1929, 0
        %v1998 = vsel %vm1158, %v1930, 0
        %2000 = vmatprep.subr.mxu0 0.0
        %2001 = vmatpush1.msra.mxu0 0.0
        %2002 = vmatprep.subr.mxu0 0.0
        %2003 = vmatpush1.msra.mxu0 0.0
        %2004 = vmatprep.subr.mxu0 0.0
        %2005 = vmatpush1.msra.mxu0 0.0
        %2006 = vmatprep.subr.mxu0 0.0
        %2007 = vmatpush1.msra.mxu0 0.0
        %2008 = vmatprep.subr.mxu0 0.0
        %2009 = vmatpush1.msra.mxu0 0.0
        %2010 = vmatprep.subr.mxu0 0.0
        %2011 = vmatpush1.msra.mxu0 0.0
        %2012 = vmatprep.subr.mxu0 0.0
        %2013 = vmatpush1.msra.mxu0 0.0
        %2014 = vmatprep.subr.mxu0 0.0
        %2015 = vmatpush1.msra.mxu0 0.0
        %2016 = vmatprep.subr.mxu0 0.0
        %2017 = vmatpush1.msra.mxu0 0.0
        %2018 = vmatprep.subr.mxu0 0.0
        %2019 = vmatpush1.msra.mxu0 0.0
        %2020 = vmatprep.subr.mxu0 0.0
        %2021 = vmatpush1.msra.mxu0 0.0
        %2022 = vmatprep.subr.mxu0 0.0
        %2023 = vmatpush1.msra.mxu0 0.0
        %2024 = vmatprep.subr.mxu0 0.0
        %2025 = vmatpush1.msra.mxu0 %v1983
        %2026 = vmatprep.subr.mxu0 0.0
        %2027 = vmatpush1.msra.mxu0 %v1982
        %2028 = vmatprep.subr.mxu0 0.0
        %2029 = vmatpush1.msra.mxu0 %v1981
        %2030 = vmatprep.subr.mxu0 0.0
        %2031 = vmatpush1.msra.mxu0 %v1980
        %2032 = vmatprep.subr.mxu0 0.0
        %2033 = vmatpush2.msra.mxu0 0.0
        %2034 = vmatprep.subr.mxu0 0.0
        %2035 = vmatpush2.msra.mxu0 0.0
        %2036 = vmatprep.subr.mxu0 0.0
        %2037 = vmatpush2.msra.mxu0 0.0
        %2038 = vmatprep.subr.mxu0 0.0
        %2039 = vmatpush2.msra.mxu0 0.0
        %2040 = vmatprep.subr.mxu0 0.0
        %2041 = vmatpush2.msra.mxu0 0.0
        %2042 = vmatprep.subr.mxu0 0.0
        %2043 = vmatpush2.msra.mxu0 0.0
        %2044 = vmatprep.subr.mxu0 0.0
        %2045 = vmatpush2.msra.mxu0 0.0
        %2046 = vmatprep.subr.mxu0 0.0
        %2047 = vmatpush2.msra.mxu0 0.0
        %2048 = vmatprep.subr.mxu0 0.0
        %2049 = vmatpush2.msra.mxu0 0.0
        %2050 = vmatprep.subr.mxu0 0.0
        %2051 = vmatpush2.msra.mxu0 0.0
        %2052 = vmatprep.subr.mxu0 0.0
        %2053 = vmatpush2.msra.mxu0 0.0
        %2054 = vmatprep.subr.mxu0 0.0
        %2055 = vmatpush2.msra.mxu0 0.0
        %2056 = vmatprep.subr.mxu0 0.0
        %2057 = vmatpush2.msra.mxu0 0.0
        %2058 = vmatprep.subr.mxu0 0.0
        %2059 = vmatpush2.msra.mxu0 0.0
        %2060 = vmatprep.subr.mxu0 0.0
        %2061 = vmatpush2.msra.mxu0 0.0
        %2062 = vmatprep.subr.mxu0 0.0
        %2063 = vmatpush2.msra.mxu0 0.0
        %2064 = vmatprep.mubr.f32.mxu0 0.0
        %2065 = vmatmul.mubr.f32.gmra.mxu0 %v1989
        %v2066 = vpop.f32.mrf.mxu0
        %v2067 = vadd.f32 %v1939, %v2066
        %v2068 = vpop.f32.mrf.mxu0
        %2069 = vmatprep.mubr.f32.mxu0 0.0
        %2070 = vmatmul.mubr.f32.gmra.mxu0 %v1992
        %v2071 = vpop.f32.mrf.mxu0
        %v2072 = vadd.f32 %v1944, %v2071
        %v2073 = vpop.f32.mrf.mxu0
        %2074 = vmatprep.mubr.f32.mxu0 0.0
        %2075 = vmatmul.mubr.f32.gmra.mxu0 %v1995
        %v2076 = vpop.f32.mrf.mxu0
        %v2077 = vadd.f32 %v1949, %v2076
        %v2078 = vpop.f32.mrf.mxu0
        %2079 = vmatprep.mubr.f32.mxu0 0.0
        %2080 = vmatmul.mubr.f32.gmra.mxu0 %v1998
        %v2081 = vpop.f32.mrf.mxu0
        %v2082 = vadd.f32 %v1954, %v2081
        %v2083 = vpop.f32.mrf.mxu0
        %2084 = vdwg.mxu0
        %v2085 = vadd.f32 %v2067, %v1256
        %v2086 = vadd.f32 %v2072, %v1257
        %v2087 = vadd.f32 %v1258, %v2077
        %v2088 = vadd.f32 %v1259, %v2082
        %s2089 = scalar_lea.vmem %s1, 64
        %v2090 = vld [vmem:[%s2089] sm:$0xff]
        %v2091 = vld [vmem:[%s2089 + $0x8] sm:$0xff]
        %v2092 = vld [vmem:[%s2089 + $0x10] sm:$0xff]
        %v2093 = vld [vmem:[%s2089 + $0x18] sm:$0xff]
        %s2094 = scalar_lea.vmem %s2, 64
        %v2095 = vld [vmem:[%s2094] sm:$0xff]
        %v2096 = vld [vmem:[%s2094 + $0x8] sm:$0xff]
        %v2097 = vld [vmem:[%s2094 + $0x10] sm:$0xff]
        %v2098 = vld [vmem:[%s2094 + $0x18] sm:$0xff]
        %2100 = vset.pattern.permute.xlu0 0
        %2101 = vperm.xlu0 %2100, %v2095
        %v2102 = vpop.permute.xlu0 %2101
        %2105 = vset.pattern.permute.xlu0 0
        %2106 = vperm.xlu0 %2105, %v2096
        %v2107 = vpop.permute.xlu0 %2106
        %2110 = vset.pattern.permute.xlu0 0
        %2111 = vperm.xlu0 %2110, %v2097
        %v2112 = vpop.permute.xlu0 %2111
        %2115 = vset.pattern.permute.xlu0 0
        %2116 = vperm.xlu0 %2115, %v2098
        %v2117 = vpop.permute.xlu0 %2116
        %v2120 = vsel %vm466, %v2090, 0
        %v2123 = vsel %vm466, %v2091, 0
        %v2126 = vsel %vm466, %v2092, 0
        %v2129 = vsel %vm466, %v2093, 0
        %2131 = vmatprep.subr.mxu0 0.0
        %2132 = vmatpush1.msra.mxu0 0.0
        %2133 = vmatprep.subr.mxu0 0.0
        %2134 = vmatpush1.msra.mxu0 0.0
        %2135 = vmatprep.subr.mxu0 0.0
        %2136 = vmatpush1.msra.mxu0 0.0
        %2137 = vmatprep.subr.mxu0 0.0
        %2138 = vmatpush1.msra.mxu0 0.0
        %2139 = vmatprep.subr.mxu0 0.0
        %2140 = vmatpush1.msra.mxu0 0.0
        %2141 = vmatprep.subr.mxu0 0.0
        %2142 = vmatpush1.msra.mxu0 0.0
        %2143 = vmatprep.subr.mxu0 0.0
        %2144 = vmatpush1.msra.mxu0 0.0
        %2145 = vmatprep.subr.mxu0 0.0
        %2146 = vmatpush1.msra.mxu0 0.0
        %2147 = vmatprep.subr.mxu0 0.0
        %2148 = vmatpush1.msra.mxu0 0.0
        %2149 = vmatprep.subr.mxu0 0.0
        %2150 = vmatpush1.msra.mxu0 0.0
        %2151 = vmatprep.subr.mxu0 0.0
        %2152 = vmatpush1.msra.mxu0 0.0
        %2153 = vmatprep.subr.mxu0 0.0
        %2154 = vmatpush1.msra.mxu0 0.0
        %2155 = vmatprep.subr.mxu0 0.0
        %2156 = vmatpush1.msra.mxu0 0.0
        %2157 = vmatprep.subr.mxu0 0.0
        %2158 = vmatpush1.msra.mxu0 0.0
        %2159 = vmatprep.subr.mxu0 0.0
        %2160 = vmatpush1.msra.mxu0 %v2086
        %2161 = vmatprep.subr.mxu0 0.0
        %2162 = vmatpush1.msra.mxu0 %v2085
        %2163 = vmatprep.subr.mxu0 0.0
        %2164 = vmatpush2.msra.mxu0 0.0
        %2165 = vmatprep.subr.mxu0 0.0
        %2166 = vmatpush2.msra.mxu0 0.0
        %2167 = vmatprep.subr.mxu0 0.0
        %2168 = vmatpush2.msra.mxu0 0.0
        %2169 = vmatprep.subr.mxu0 0.0
        %2170 = vmatpush2.msra.mxu0 0.0
        %2171 = vmatprep.subr.mxu0 0.0
        %2172 = vmatpush2.msra.mxu0 0.0
        %2173 = vmatprep.subr.mxu0 0.0
        %2174 = vmatpush2.msra.mxu0 0.0
        %2175 = vmatprep.subr.mxu0 0.0
        %2176 = vmatpush2.msra.mxu0 0.0
        %2177 = vmatprep.subr.mxu0 0.0
        %2178 = vmatpush2.msra.mxu0 0.0
        %2179 = vmatprep.subr.mxu0 0.0
        %2180 = vmatpush2.msra.mxu0 0.0
        %2181 = vmatprep.subr.mxu0 0.0
        %2182 = vmatpush2.msra.mxu0 0.0
        %2183 = vmatprep.subr.mxu0 0.0
        %2184 = vmatpush2.msra.mxu0 0.0
        %2185 = vmatprep.subr.mxu0 0.0
        %2186 = vmatpush2.msra.mxu0 0.0
        %2187 = vmatprep.subr.mxu0 0.0
        %2188 = vmatpush2.msra.mxu0 0.0
        %2189 = vmatprep.subr.mxu0 0.0
        %2190 = vmatpush2.msra.mxu0 0.0
        %2191 = vmatprep.subr.mxu0 0.0
        %2192 = vmatpush2.msra.mxu0 0.0
        %2193 = vmatprep.subr.mxu0 0.0
        %2194 = vmatpush2.msra.mxu0 0.0
        %2195 = vmatprep.mubr.f32.mxu0 0.0
        %2196 = vmatmul.mubr.f32.gmra.mxu0 %v2120
        %v2197 = vpop.f32.mrf.mxu0
        %v2198 = vadd.f32 %v2102, %v2197
        %v2199 = vpop.f32.mrf.mxu0
        %2200 = vmatprep.mubr.f32.mxu0 0.0
        %2201 = vmatmul.mubr.f32.gmra.mxu0 %v2123
        %v2202 = vpop.f32.mrf.mxu0
        %v2203 = vadd.f32 %v2107, %v2202
        %v2204 = vpop.f32.mrf.mxu0
        %2205 = vmatprep.mubr.f32.mxu0 0.0
        %2206 = vmatmul.mubr.f32.gmra.mxu0 %v2126
        %v2207 = vpop.f32.mrf.mxu0
        %v2208 = vadd.f32 %v2112, %v2207
        %v2209 = vpop.f32.mrf.mxu0
        %2210 = vmatprep.mubr.f32.mxu0 0.0
        %2211 = vmatmul.mubr.f32.gmra.mxu0 %v2129
        %v2212 = vpop.f32.mrf.mxu0
        %v2213 = vadd.f32 %v2117, %v2212
        %v2214 = vpop.f32.mrf.mxu0
        %2215 = vdwg.mxu0
        %s2216 = scalar_lea.vmem %s3, 64
        %v2217 = vld [vmem:[%s2216] sm:$0xff]
        %v2218 = vld [vmem:[%s2216 + $0x8] sm:$0xff]
        %v2219 = vld [vmem:[%s2216 + $0x10] sm:$0xff]
        %v2220 = vld [vmem:[%s2216 + $0x18] sm:$0xff]
        %s2221 = scalar_lea.vmem %s4, 64
        %v2222 = vld [vmem:[%s2221] sm:$0xff]
        %v2223 = vld [vmem:[%s2221 + $0x8] sm:$0xff]
        %v2224 = vld [vmem:[%s2221 + $0x10] sm:$0xff]
        %v2225 = vld [vmem:[%s2221 + $0x18] sm:$0xff]
        %v2226 = vmul.f32 %v2198, %v435
        %v2227 = vmul.f32 %v2203, %v435
        %v2228 = vmul.f32 %v2208, %v435
        %v2229 = vmul.f32 %v2213, %v435
        %v2230 = vadd.f32 %v2226, %v2227
        %v2231 = vadd.f32 %v2230, %v2228
        %v2232 = vadd.f32 %v2231, %v2229
        %2233 = vadd.xlane.f32.xlu0 %v2232
        %v2234 = vpop.xlane.xlu0 %2233
        %v2235 = vrot.slane %v2234, 4
        %v2236 = vadd.f32 %v2234, %v2235
        %v2237 = vrot.slane %v2236, 2
        %v2238 = vadd.f32 %v2236, %v2237
        %v2239 = vrot.slane %v2238, 1
        %v2240 = vadd.f32 %v2238, %v2239
        %s2241 = vtos %v2240
        %v2242 = vmul.f32 %v2226, %v2226
        %v2243 = vmul.f32 %v2227, %v2227
        %v2244 = vmul.f32 %v2228, %v2228
        %v2245 = vmul.f32 %v2229, %v2229
        %v2246 = vadd.f32 %v2242, %v2243
        %v2247 = vadd.f32 %v2246, %v2244
        %v2248 = vadd.f32 %v2247, %v2245
        %2249 = vadd.xlane.f32.xlu0 %v2248
        %v2250 = vpop.xlane.xlu0 %2249
        %v2251 = vrot.slane %v2250, 4
        %v2252 = vadd.f32 %v2250, %v2251
        %v2253 = vrot.slane %v2252, 2
        %v2254 = vadd.f32 %v2252, %v2253
        %v2255 = vrot.slane %v2254, 1
        %v2256 = vadd.f32 %v2254, %v2255
        %s2257 = vtos %v2256
        %s2258 = smul.f32 %s2241, 0.001953125
        %s2259 = smul.f32 %s2257, 0.001953125
        %s2260 = smul.f32 %s2258, %s2258
        %s2261 = ssub.f32 %s2259, %s2260
        %s2262 = smax.f32 %s2261, 0.0
        %v2263 = vstv %s2258
        %v2264 = vsub.f32 %v2198, %v2263
        %v2265 = vsub.f32 %v2203, %v2263
        %v2266 = vsub.f32 %v2208, %v2263
        %v2267 = vsub.f32 %v2213, %v2263
        %2269 = vset.pattern.permute.xlu0 0
        %2270 = vperm.xlu0 %2269, %v2217
        %v2271 = vpop.permute.xlu0 %2270
        %2274 = vset.pattern.permute.xlu0 0
        %2275 = vperm.xlu0 %2274, %v2218
        %v2276 = vpop.permute.xlu0 %2275
        %2279 = vset.pattern.permute.xlu0 0
        %2280 = vperm.xlu0 %2279, %v2219
        %v2281 = vpop.permute.xlu0 %2280
        %2284 = vset.pattern.permute.xlu0 0
        %2285 = vperm.xlu0 %2284, %v2220
        %v2286 = vpop.permute.xlu0 %2285
        %v2288 = vmul.f32 %v2271, %v2264
        %v2289 = vmul.f32 %v2276, %v2265
        %v2290 = vmul.f32 %v2281, %v2266
        %v2291 = vmul.f32 %v2286, %v2267
        %s2292 = sadd.f32 %s2262, 1e-12
        %v2293 = vstv %s2292
        %v2294 = vrsqrt.pop %v2293
        %s2295 = vtos %v2294
        %v2296 = vstv %s2295
        %v2297 = vmul.f32 %v2288, %v2296
        %v2298 = vmul.f32 %v2289, %v2296
        %v2299 = vmul.f32 %v2290, %v2296
        %v2300 = vmul.f32 %v2291, %v2296
        %2302 = vset.pattern.permute.xlu0 0
        %2303 = vperm.xlu0 %2302, %v2222
        %v2304 = vpop.permute.xlu0 %2303
        %2307 = vset.pattern.permute.xlu0 0
        %2308 = vperm.xlu0 %2307, %v2223
        %v2309 = vpop.permute.xlu0 %2308
        %2312 = vset.pattern.permute.xlu0 0
        %2313 = vperm.xlu0 %2312, %v2224
        %v2314 = vpop.permute.xlu0 %2313
        %2317 = vset.pattern.permute.xlu0 0
        %2318 = vperm.xlu0 %2317, %v2225
        %v2319 = vpop.permute.xlu0 %2318
        %v2321 = vadd.f32 %v2297, %v2304
        %v2322 = vadd.f32 %v2298, %v2309
        %v2323 = vadd.f32 %v2299, %v2314
        %v2324 = vadd.f32 %v2300, %v2319
        %v2325 = vmul.f32 %v2321, %v435
        %v2326 = vmul.f32 %v2322, %v435
        %v2327 = vmul.f32 %v2323, %v435
        %v2328 = vmul.f32 %v2324, %v435
        %2329 = vst [vmem:[#allocation2 + $0x8] sm:$0xff] %v2325
        %2330 = vst [vmem:[#allocation2 + $0x20] sm:$0xff] %v2326
        %2331 = vst [vmem:[#allocation2 + $0x38] sm:$0xff] %v2327
        %2332 = vst [vmem:[#allocation2 + $0x50] sm:$0xff] %v2328
        %v2333 = vld [vmem:[#allocation2] sm:$0xff]
        %v2334 = vld [vmem:[#allocation2 + $0x8] sm:$0xff]
        %v2335 = vld [vmem:[#allocation2 + $0x18] sm:$0xff]
        %v2336 = vld [vmem:[#allocation2 + $0x20] sm:$0xff]
        %v2337 = vld [vmem:[#allocation2 + $0x30] sm:$0xff]
        %v2338 = vld [vmem:[#allocation2 + $0x38] sm:$0xff]
        %v2339 = vld [vmem:[#allocation2 + $0x48] sm:$0xff]
        %v2340 = vld [vmem:[#allocation2 + $0x50] sm:$0xff]
        %s2341 = scalar_lea.vmem %s5, 192
        %v2342 = vld [vmem:[%s2341] sm:$0xff]
        %v2343 = vld [vmem:[%s2341 + $0x8] sm:$0xff]
        %v2344 = vld [vmem:[%s2341 + $0x10] sm:$0xff]
        %v2345 = vld [vmem:[%s2341 + $0x18] sm:$0xff]
        %2347 = vset.pattern.permute.xlu0 0
        %2348 = vperm.xlu0 %2347, %v2342
        %v2349 = vpop.permute.xlu0 %2348
        %2352 = vset.pattern.permute.xlu0 0
        %2353 = vperm.xlu0 %2352, %v2343
        %v2354 = vpop.permute.xlu0 %2353
        %2357 = vset.pattern.permute.xlu0 0
        %2358 = vperm.xlu0 %2357, %v2344
        %v2359 = vpop.permute.xlu0 %2358
        %2362 = vset.pattern.permute.xlu0 0
        %2363 = vperm.xlu0 %2362, %v2345
        %v2364 = vpop.permute.xlu0 %2363
        %v2366 = vmul.f32 %v2333, %v2349
        %v2367 = vmul.f32 %v2334, %v2349
        %v2368 = vmul.f32 %v2335, %v2354
        %v2369 = vmul.f32 %v2336, %v2354
        %v2370 = vmul.f32 %v2337, %v2359
        %v2371 = vmul.f32 %v2338, %v2359
        %v2372 = vmul.f32 %v2339, %v2364
        %v2373 = vmul.f32 %v2340, %v2364
        %s2374 = scalar_lea.vmem %s5, 224
        %v2375 = vld [vmem:[%s2374] sm:$0xff]
        %v2376 = vld [vmem:[%s2374 + $0x8] sm:$0xff]
        %v2377 = vld [vmem:[%s2374 + $0x10] sm:$0xff]
        %v2378 = vld [vmem:[%s2374 + $0x18] sm:$0xff]
        %2380 = vset.pattern.permute.xlu0 0
        %2381 = vperm.xlu0 %2380, %v2375
        %v2382 = vpop.permute.xlu0 %2381
        %2385 = vset.pattern.permute.xlu0 0
        %2386 = vperm.xlu0 %2385, %v2376
        %v2387 = vpop.permute.xlu0 %2386
        %2390 = vset.pattern.permute.xlu0 0
        %2391 = vperm.xlu0 %2390, %v2377
        %v2392 = vpop.permute.xlu0 %2391
        %2395 = vset.pattern.permute.xlu0 0
        %2396 = vperm.xlu0 %2395, %v2378
        %v2397 = vpop.permute.xlu0 %2396
        %v2399 = vmul.f32 %v2334, %v2382
        %v2400 = vmul.f32 %v2336, %v2387
        %v2401 = vmul.f32 %v2338, %v2392
        %v2402 = vmul.f32 %v2340, %v2397
        %2407 = vrot.lane.b32.xlu0 %v2399, 124
        %v2408 = vpop.permute.xlu0 %2407
        %2409 = vrot.lane.b32.xlu0 %v2400, 124
        %v2410 = vpop.permute.xlu0 %2409
        %2411 = vrot.lane.b32.xlu0 %v2401, 124
        %v2412 = vpop.permute.xlu0 %2411
        %2413 = vrot.lane.b32.xlu0 %v2402, 124
        %v2414 = vpop.permute.xlu0 %2413
        %v2419 = vadd.f32 %v2366, %v2408
        %v2420 = vadd.f32 %v2367, %v2408
        %v2421 = vadd.f32 %v2368, %v2410
        %v2422 = vadd.f32 %v2369, %v2410
        %v2423 = vadd.f32 %v2370, %v2412
        %v2424 = vadd.f32 %v2371, %v2412
        %v2425 = vadd.f32 %v2372, %v2414
        %v2426 = vadd.f32 %v2373, %v2414
        %v2427 = vld [vmem:[#allocation2 + $0x8] sm:$0xff]
        %v2428 = vld [vmem:[#allocation2 + $0x10] sm:$0xff]
        %v2429 = vld [vmem:[#allocation2 + $0x20] sm:$0xff]
        %v2430 = vld [vmem:[#allocation2 + $0x28] sm:$0xff]
        %v2431 = vld [vmem:[#allocation2 + $0x38] sm:$0xff]
        %v2432 = vld [vmem:[#allocation2 + $0x40] sm:$0xff]
        %v2433 = vld [vmem:[#allocation2 + $0x50] sm:$0xff]
        %v2434 = vld [vmem:[#allocation2 + $0x58] sm:$0xff]
        %s2435 = scalar_lea.vmem %s5, 256
        %v2436 = vld [vmem:[%s2435] sm:$0xff]
        %v2437 = vld [vmem:[%s2435 + $0x8] sm:$0xff]
        %v2438 = vld [vmem:[%s2435 + $0x10] sm:$0xff]
        %v2439 = vld [vmem:[%s2435 + $0x18] sm:$0xff]
        %2441 = vset.pattern.permute.xlu0 0
        %2442 = vperm.xlu0 %2441, %v2436
        %v2443 = vpop.permute.xlu0 %2442
        %2446 = vset.pattern.permute.xlu0 0
        %2447 = vperm.xlu0 %2446, %v2437
        %v2448 = vpop.permute.xlu0 %2447
        %2451 = vset.pattern.permute.xlu0 0
        %2452 = vperm.xlu0 %2451, %v2438
        %v2453 = vpop.permute.xlu0 %2452
        %2456 = vset.pattern.permute.xlu0 0
        %2457 = vperm.xlu0 %2456, %v2439
        %v2458 = vpop.permute.xlu0 %2457
        %v2460 = vmul.f32 %v2427, %v2443
        %v2461 = vmul.f32 %v2428, %v2443
        %v2462 = vmul.f32 %v2429, %v2448
        %v2463 = vmul.f32 %v2430, %v2448
        %v2464 = vmul.f32 %v2431, %v2453
        %v2465 = vmul.f32 %v2432, %v2453
        %v2466 = vmul.f32 %v2433, %v2458
        %v2467 = vmul.f32 %v2434, %v2458
        %2476 = vrot.lane.b32.xlu0 %v2460, 120
        %v2477 = vpop.permute.xlu0 %2476
        %2478 = vrot.lane.b32.xlu0 %v2461, 120
        %v2479 = vpop.permute.xlu0 %2478
        %2480 = vrot.lane.b32.xlu0 %v2462, 120
        %v2481 = vpop.permute.xlu0 %2480
        %2482 = vrot.lane.b32.xlu0 %v2463, 120
        %v2483 = vpop.permute.xlu0 %2482
        %2484 = vrot.lane.b32.xlu0 %v2464, 120
        %v2485 = vpop.permute.xlu0 %2484
        %2486 = vrot.lane.b32.xlu0 %v2465, 120
        %v2487 = vpop.permute.xlu0 %2486
        %2488 = vrot.lane.b32.xlu0 %v2466, 120
        %v2489 = vpop.permute.xlu0 %2488
        %2490 = vrot.lane.b32.xlu0 %v2467, 120
        %v2491 = vpop.permute.xlu0 %2490
        %vm2492 = vcmask 982016
        %v2493 = vsel %vm2492, %v2477, %v2479
        %v2494 = vsel %vm2492, %v2481, %v2483
        %v2495 = vsel %vm2492, %v2485, %v2487
        %v2496 = vsel %vm2492, %v2489, %v2491
        %v2505 = vadd.f32 %v2419, %v2477
        %v2506 = vadd.f32 %v2420, %v2493
        %v2507 = vadd.f32 %v2421, %v2481
        %v2508 = vadd.f32 %v2422, %v2494
        %v2509 = vadd.f32 %v2423, %v2485
        %v2510 = vadd.f32 %v2424, %v2495
        %v2511 = vadd.f32 %v2425, %v2489
        %v2512 = vadd.f32 %v2426, %v2496
        %s2513 = scalar_lea.vmem %s6, 64
        %v2514 = vld [vmem:[%s2513] sm:$0xff]
        %v2515 = vld [vmem:[%s2513 + $0x8] sm:$0xff]
        %v2516 = vld [vmem:[%s2513 + $0x10] sm:$0xff]
        %v2517 = vld [vmem:[%s2513 + $0x18] sm:$0xff]
        %2519 = vset.pattern.permute.xlu0 0
        %2520 = vperm.xlu0 %2519, %v2514
        %v2521 = vpop.permute.xlu0 %2520
        %2524 = vset.pattern.permute.xlu0 0
        %2525 = vperm.xlu0 %2524, %v2515
        %v2526 = vpop.permute.xlu0 %2525
        %2529 = vset.pattern.permute.xlu0 0
        %2530 = vperm.xlu0 %2529, %v2516
        %v2531 = vpop.permute.xlu0 %2530
        %2534 = vset.pattern.permute.xlu0 0
        %2535 = vperm.xlu0 %2534, %v2517
        %v2536 = vpop.permute.xlu0 %2535
        %v2538 = vadd.f32 %v2505, %v2521
        %v2539 = vadd.f32 %v2506, %v2521
        %v2540 = vadd.f32 %v2507, %v2526
        %v2541 = vadd.f32 %v2508, %v2526
        %v2542 = vadd.f32 %v2509, %v2531
        %v2543 = vadd.f32 %v2510, %v2531
        %v2544 = vadd.f32 %v2511, %v2536
        %v2545 = vadd.f32 %v2512, %v2536
        %s2546 = scalar_lea.vmem %s7, 64
        %v2547 = vld [vmem:[%s2546] sm:$0xff]
        %v2548 = vld [vmem:[%s2546 + $0x8] sm:$0xff]
        %v2549 = vld [vmem:[%s2546 + $0x10] sm:$0xff]
        %v2550 = vld [vmem:[%s2546 + $0x18] sm:$0xff]
        %s2551 = scalar_lea.vmem %s8, 64
        %v2552 = vld [vmem:[%s2551] sm:$0xff]
        %v2553 = vld [vmem:[%s2551 + $0x8] sm:$0xff]
        %v2554 = vld [vmem:[%s2551 + $0x10] sm:$0xff]
        %v2555 = vld [vmem:[%s2551 + $0x18] sm:$0xff]
        %2556 = vrot.lane.b32.xlu0 %v435, 124
        %v2557 = vpop.permute.xlu0 %2556
        %v2559 = vmul.f32 %v2538, %v2557
        %v2560 = vmul.f32 %v2539, %v2557
        %v2561 = vmul.f32 %v2540, %v2557
        %v2562 = vmul.f32 %v2541, %v2557
        %v2563 = vmul.f32 %v2542, %v2557
        %v2564 = vmul.f32 %v2543, %v2557
        %v2565 = vmul.f32 %v2544, %v2557
        %v2566 = vmul.f32 %v2545, %v2557
        %2575 = vrot.lane.b32.xlu0 %v2559, 4
        %v2576 = vpop.permute.xlu0 %2575
        %2577 = vrot.lane.b32.xlu0 %v2560, 4
        %v2578 = vpop.permute.xlu0 %2577
        %2579 = vrot.lane.b32.xlu0 %v2561, 4
        %v2580 = vpop.permute.xlu0 %2579
        %2581 = vrot.lane.b32.xlu0 %v2562, 4
        %v2582 = vpop.permute.xlu0 %2581
        %2583 = vrot.lane.b32.xlu0 %v2563, 4
        %v2584 = vpop.permute.xlu0 %2583
        %2585 = vrot.lane.b32.xlu0 %v2564, 4
        %v2586 = vpop.permute.xlu0 %2585
        %2587 = vrot.lane.b32.xlu0 %v2565, 4
        %v2588 = vpop.permute.xlu0 %2587
        %2589 = vrot.lane.b32.xlu0 %v2566, 4
        %v2590 = vpop.permute.xlu0 %2589
        %vm2591 = vcmask 31744
        %v2592 = vsel %vm2591, %v2576, %v2578
        %v2593 = vsel %vm2591, %v2580, %v2582
        %v2594 = vsel %vm2591, %v2584, %v2586
        %v2595 = vsel %vm2591, %v2588, %v2590
        %v2600 = vadd.f32 %v2592, %v2593
        %v2601 = vadd.f32 %v2600, %v2594
        %v2602 = vadd.f32 %v2601, %v2595
        %2603 = vadd.xlane.f32.xlu0 %v2602
        %v2604 = vpop.xlane.xlu0 %2603
        %v2605 = vrot.slane %v2604, 4
        %v2606 = vadd.f32 %v2604, %v2605
        %v2607 = vrot.slane %v2606, 2
        %v2608 = vadd.f32 %v2606, %v2607
        %v2609 = vrot.slane %v2608, 1
        %v2610 = vadd.f32 %v2608, %v2609
        %s2611 = vtos %v2610
        %v2612 = vmul.f32 %v2559, %v2559
        %v2613 = vmul.f32 %v2560, %v2560
        %v2614 = vmul.f32 %v2561, %v2561
        %v2615 = vmul.f32 %v2562, %v2562
        %v2616 = vmul.f32 %v2563, %v2563
        %v2617 = vmul.f32 %v2564, %v2564
        %v2618 = vmul.f32 %v2565, %v2565
        %v2619 = vmul.f32 %v2566, %v2566
        %2628 = vrot.lane.b32.xlu0 %v2612, 4
        %v2629 = vpop.permute.xlu0 %2628
        %2630 = vrot.lane.b32.xlu0 %v2613, 4
        %v2631 = vpop.permute.xlu0 %2630
        %2632 = vrot.lane.b32.xlu0 %v2614, 4
        %v2633 = vpop.permute.xlu0 %2632
        %2634 = vrot.lane.b32.xlu0 %v2615, 4
        %v2635 = vpop.permute.xlu0 %2634
        %2636 = vrot.lane.b32.xlu0 %v2616, 4
        %v2637 = vpop.permute.xlu0 %2636
        %2638 = vrot.lane.b32.xlu0 %v2617, 4
        %v2639 = vpop.permute.xlu0 %2638
        %2640 = vrot.lane.b32.xlu0 %v2618, 4
        %v2641 = vpop.permute.xlu0 %2640
        %2642 = vrot.lane.b32.xlu0 %v2619, 4
        %v2643 = vpop.permute.xlu0 %2642
        %v2644 = vsel %vm2591, %v2629, %v2631
        %v2645 = vsel %vm2591, %v2633, %v2635
        %v2646 = vsel %vm2591, %v2637, %v2639
        %v2647 = vsel %vm2591, %v2641, %v2643
        %v2652 = vadd.f32 %v2644, %v2645
        %v2653 = vadd.f32 %v2652, %v2646
        %v2654 = vadd.f32 %v2653, %v2647
        %2655 = vadd.xlane.f32.xlu0 %v2654
        %v2656 = vpop.xlane.xlu0 %2655
        %v2657 = vrot.slane %v2656, 4
        %v2658 = vadd.f32 %v2656, %v2657
        %v2659 = vrot.slane %v2658, 2
        %v2660 = vadd.f32 %v2658, %v2659
        %v2661 = vrot.slane %v2660, 1
        %v2662 = vadd.f32 %v2660, %v2661
        %s2663 = vtos %v2662
        %s2664 = smul.f32 %s2611, 0.001953125
        %s2665 = smul.f32 %s2663, 0.001953125
        %s2666 = smul.f32 %s2664, %s2664
        %s2667 = ssub.f32 %s2665, %s2666
        %s2668 = smax.f32 %s2667, 0.0
        %v2669 = vstv %s2664
        %v2670 = vsub.f32 %v2538, %v2669
        %v2671 = vsub.f32 %v2539, %v2669
        %v2672 = vsub.f32 %v2540, %v2669
        %v2673 = vsub.f32 %v2541, %v2669
        %v2674 = vsub.f32 %v2542, %v2669
        %v2675 = vsub.f32 %v2543, %v2669
        %v2676 = vsub.f32 %v2544, %v2669
        %v2677 = vsub.f32 %v2545, %v2669
        %2679 = vset.pattern.permute.xlu0 0
        %2680 = vperm.xlu0 %2679, %v2547
        %v2681 = vpop.permute.xlu0 %2680
        %2684 = vset.pattern.permute.xlu0 0
        %2685 = vperm.xlu0 %2684, %v2548
        %v2686 = vpop.permute.xlu0 %2685
        %2689 = vset.pattern.permute.xlu0 0
        %2690 = vperm.xlu0 %2689, %v2549
        %v2691 = vpop.permute.xlu0 %2690
        %2694 = vset.pattern.permute.xlu0 0
        %2695 = vperm.xlu0 %2694, %v2550
        %v2696 = vpop.permute.xlu0 %2695
        %v2698 = vmul.f32 %v2681, %v2670
        %v2699 = vmul.f32 %v2681, %v2671
        %v2700 = vmul.f32 %v2686, %v2672
        %v2701 = vmul.f32 %v2686, %v2673
        %v2702 = vmul.f32 %v2691, %v2674
        %v2703 = vmul.f32 %v2691, %v2675
        %v2704 = vmul.f32 %v2696, %v2676
        %v2705 = vmul.f32 %v2696, %v2677
        %s2706 = sadd.f32 %s2668, 1e-12
        %v2707 = vstv %s2706
        %v2708 = vrsqrt.pop %v2707
        %s2709 = vtos %v2708
        %v2710 = vstv %s2709
        %v2711 = vmul.f32 %v2698, %v2710
        %v2712 = vmul.f32 %v2699, %v2710
        %v2713 = vmul.f32 %v2700, %v2710
        %v2714 = vmul.f32 %v2701, %v2710
        %v2715 = vmul.f32 %v2702, %v2710
        %v2716 = vmul.f32 %v2703, %v2710
        %v2717 = vmul.f32 %v2704, %v2710
        %v2718 = vmul.f32 %v2705, %v2710
        %2720 = vset.pattern.permute.xlu0 0
        %2721 = vperm.xlu0 %2720, %v2552
        %v2722 = vpop.permute.xlu0 %2721
        %2725 = vset.pattern.permute.xlu0 0
        %2726 = vperm.xlu0 %2725, %v2553
        %v2727 = vpop.permute.xlu0 %2726
        %2730 = vset.pattern.permute.xlu0 0
        %2731 = vperm.xlu0 %2730, %v2554
        %v2732 = vpop.permute.xlu0 %2731
        %2735 = vset.pattern.permute.xlu0 0
        %2736 = vperm.xlu0 %2735, %v2555
        %v2737 = vpop.permute.xlu0 %2736
        %v2739 = vadd.f32 %v2711, %v2722
        %v2740 = vadd.f32 %v2712, %v2722
        %v2741 = vadd.f32 %v2713, %v2727
        %v2742 = vadd.f32 %v2714, %v2727
        %v2743 = vadd.f32 %v2715, %v2732
        %v2744 = vadd.f32 %v2716, %v2732
        %v2745 = vadd.f32 %v2717, %v2737
        %v2746 = vadd.f32 %v2718, %v2737
        %v2747 = vmul.f32 %v2739, %v2557
        %v2748 = vmul.f32 %v2740, %v2557
        %v2749 = vmul.f32 %v2741, %v2557
        %v2750 = vmul.f32 %v2742, %v2557
        %v2751 = vmul.f32 %v2743, %v2557
        %v2752 = vmul.f32 %v2744, %v2557
        %v2753 = vmul.f32 %v2745, %v2557
        %v2754 = vmul.f32 %v2746, %v2557
        %s2755 = scalar_lea.vmem %s9, 64
        %v2756 = vld [vmem:[%s2755] sm:$0xff]
        %v2757 = vld [vmem:[%s2755 + $0x8] sm:$0xff]
        %v2758 = vld [vmem:[%s2755 + $0x10] sm:$0xff]
        %v2759 = vld [vmem:[%s2755 + $0x18] sm:$0xff]
        %s2760 = scalar_lea.vmem %s10, 64
        %v2761 = vld [vmem:[%s2760] sm:$0xff]
        %v2762 = vld [vmem:[%s2760 + $0x8] sm:$0xff]
        %v2763 = vld [vmem:[%s2760 + $0x10] sm:$0xff]
        %v2764 = vld [vmem:[%s2760 + $0x18] sm:$0xff]
        %2766 = vset.pattern.permute.xlu0 0
        %2767 = vperm.xlu0 %2766, %v2761
        %v2768 = vpop.permute.xlu0 %2767
        %2771 = vset.pattern.permute.xlu0 0
        %2772 = vperm.xlu0 %2771, %v2762
        %v2773 = vpop.permute.xlu0 %2772
        %2776 = vset.pattern.permute.xlu0 0
        %2777 = vperm.xlu0 %2776, %v2763
        %v2778 = vpop.permute.xlu0 %2777
        %2781 = vset.pattern.permute.xlu0 0
        %2782 = vperm.xlu0 %2781, %v2764
        %v2783 = vpop.permute.xlu0 %2782
        %2793 = vrot.lane.b32.xlu0 %v2747, 4
        %v2794 = vpop.permute.xlu0 %2793
        %2795 = vrot.lane.b32.xlu0 %v2748, 4
        %v2796 = vpop.permute.xlu0 %2795
        %2797 = vrot.lane.b32.xlu0 %v2749, 4
        %v2798 = vpop.permute.xlu0 %2797
        %2799 = vrot.lane.b32.xlu0 %v2750, 4
        %v2800 = vpop.permute.xlu0 %2799
        %2801 = vrot.lane.b32.xlu0 %v2751, 4
        %v2802 = vpop.permute.xlu0 %2801
        %2803 = vrot.lane.b32.xlu0 %v2752, 4
        %v2804 = vpop.permute.xlu0 %2803
        %2805 = vrot.lane.b32.xlu0 %v2753, 4
        %v2806 = vpop.permute.xlu0 %2805
        %2807 = vrot.lane.b32.xlu0 %v2754, 4
        %v2808 = vpop.permute.xlu0 %2807
        %v2809 = vsel %vm2591, %v2794, %v2796
        %v2810 = vsel %vm2591, %v2798, %v2800
        %v2811 = vsel %vm2591, %v2802, %v2804
        %v2812 = vsel %vm2591, %v2806, %v2808
        %v2818 = vsel %vm1158, %v2756, 0
        %v2821 = vsel %vm1158, %v2757, 0
        %v2824 = vsel %vm1158, %v2758, 0
        %v2827 = vsel %vm1158, %v2759, 0
        %2829 = vmatprep.subr.mxu0 0.0
        %2830 = vmatpush1.msra.mxu0 0.0
        %2831 = vmatprep.subr.mxu0 0.0
        %2832 = vmatpush1.msra.mxu0 0.0
        %2833 = vmatprep.subr.mxu0 0.0
        %2834 = vmatpush1.msra.mxu0 0.0
        %2835 = vmatprep.subr.mxu0 0.0
        %2836 = vmatpush1.msra.mxu0 0.0
        %2837 = vmatprep.subr.mxu0 0.0
        %2838 = vmatpush1.msra.mxu0 0.0
        %2839 = vmatprep.subr.mxu0 0.0
        %2840 = vmatpush1.msra.mxu0 0.0
        %2841 = vmatprep.subr.mxu0 0.0
        %2842 = vmatpush1.msra.mxu0 0.0
        %2843 = vmatprep.subr.mxu0 0.0
        %2844 = vmatpush1.msra.mxu0 0.0
        %2845 = vmatprep.subr.mxu0 0.0
        %2846 = vmatpush1.msra.mxu0 0.0
        %2847 = vmatprep.subr.mxu0 0.0
        %2848 = vmatpush1.msra.mxu0 0.0
        %2849 = vmatprep.subr.mxu0 0.0
        %2850 = vmatpush1.msra.mxu0 0.0
        %2851 = vmatprep.subr.mxu0 0.0
        %2852 = vmatpush1.msra.mxu0 0.0
        %2853 = vmatprep.subr.mxu0 0.0
        %2854 = vmatpush1.msra.mxu0 %v2812
        %2855 = vmatprep.subr.mxu0 0.0
        %2856 = vmatpush1.msra.mxu0 %v2811
        %2857 = vmatprep.subr.mxu0 0.0
        %2858 = vmatpush1.msra.mxu0 %v2810
        %2859 = vmatprep.subr.mxu0 0.0
        %2860 = vmatpush1.msra.mxu0 %v2809
        %2861 = vmatprep.subr.mxu0 0.0
        %2862 = vmatpush2.msra.mxu0 0.0
        %2863 = vmatprep.subr.mxu0 0.0
        %2864 = vmatpush2.msra.mxu0 0.0
        %2865 = vmatprep.subr.mxu0 0.0
        %2866 = vmatpush2.msra.mxu0 0.0
        %2867 = vmatprep.subr.mxu0 0.0
        %2868 = vmatpush2.msra.mxu0 0.0
        %2869 = vmatprep.subr.mxu0 0.0
        %2870 = vmatpush2.msra.mxu0 0.0
        %2871 = vmatprep.subr.mxu0 0.0
        %2872 = vmatpush2.msra.mxu0 0.0
        %2873 = vmatprep.subr.mxu0 0.0
        %2874 = vmatpush2.msra.mxu0 0.0
        %2875 = vmatprep.subr.mxu0 0.0
        %2876 = vmatpush2.msra.mxu0 0.0
        %2877 = vmatprep.subr.mxu0 0.0
        %2878 = vmatpush2.msra.mxu0 0.0
        %2879 = vmatprep.subr.mxu0 0.0
        %2880 = vmatpush2.msra.mxu0 0.0
        %2881 = vmatprep.subr.mxu0 0.0
        %2882 = vmatpush2.msra.mxu0 0.0
        %2883 = vmatprep.subr.mxu0 0.0
        %2884 = vmatpush2.msra.mxu0 0.0
        %2885 = vmatprep.subr.mxu0 0.0
        %2886 = vmatpush2.msra.mxu0 0.0
        %2887 = vmatprep.subr.mxu0 0.0
        %2888 = vmatpush2.msra.mxu0 0.0
        %2889 = vmatprep.subr.mxu0 0.0
        %2890 = vmatpush2.msra.mxu0 0.0
        %2891 = vmatprep.subr.mxu0 0.0
        %2892 = vmatpush2.msra.mxu0 0.0
        %2893 = vmatprep.mubr.f32.mxu0 0.0
        %2894 = vmatmul.mubr.f32.gmra.mxu0 %v2818
        %v2895 = vpop.f32.mrf.mxu0
        %v2896 = vadd.f32 %v2768, %v2895
        %v2897 = vpop.f32.mrf.mxu0
        %2898 = vmatprep.mubr.f32.mxu0 0.0
        %2899 = vmatmul.mubr.f32.gmra.mxu0 %v2821
        %v2900 = vpop.f32.mrf.mxu0
        %v2901 = vadd.f32 %v2773, %v2900
        %v2902 = vpop.f32.mrf.mxu0
        %2903 = vmatprep.mubr.f32.mxu0 0.0
        %2904 = vmatmul.mubr.f32.gmra.mxu0 %v2824
        %v2905 = vpop.f32.mrf.mxu0
        %v2906 = vadd.f32 %v2778, %v2905
        %v2907 = vpop.f32.mrf.mxu0
        %2908 = vmatprep.mubr.f32.mxu0 0.0
        %2909 = vmatmul.mubr.f32.gmra.mxu0 %v2827
        %v2910 = vpop.f32.mrf.mxu0
        %v2911 = vadd.f32 %v2783, %v2910
        %v2912 = vpop.f32.mrf.mxu0
        %2913 = vdwg.mxu0
        %v2914 = vadd.f32 %v2896, %v2085
        %v2915 = vadd.f32 %v2901, %v2086
        %v2916 = vadd.f32 %v2087, %v2906
        %v2917 = vadd.f32 %v2088, %v2911
        %2918 = vst [vmem:[%s410] sm:$0xff] %v2914
        %2919 = vst [vmem:[%s410 + $0x8] sm:$0xff] %v2915
        %2920 = vst [vmem:[%s417] sm:$0xff] %v2916
        %2921 = vst [vmem:[%s417 + $0x8] sm:$0xff] %v2917
        %s2922 = sand.u32 %s274, 1
        %s2923 = scalar_lea.sflag [#allocation4], %s2922
        %s2924 = sand.u32 %s274, 1
        %s2925 = smul.addr %s2924, 16
        %s2926 = scalar_lea.vmem [#allocation3], %s2925
        %s2927 = sand.u32 %s300, 1
        %s2928 = scalar_lea.sflag [#allocation6], %s2927
        %s2929 = sand.u32 %s300, 1
        %s2930 = smul.addr %s2929, 16
        %s2931 = scalar_lea.vmem [#allocation5], %s2930
        // Predicated region
        $region65: #{tpu_custom_call.1} parent=63 // pred_check
          %p2932 = pneg %p284
        $region66: #{tpu_custom_call.1} parent=63 // pred_check_branch
          %2934 = sbr.rel (%p2932) target = $region68
        $region67: #{tpu_custom_call.1} parent=63 // pred_region
          %s2936 = ssub.s32 256, 256
          %2937 = vsyncadd %s2923, %s2936
          %s2938 = smul.addr %s30, 2
          %s2939 = smul.addr %s2938, 128
          %s2940 = scalar_lea.hbm %s11, %s2939
          %s2941 = sshll.u32 %s2926, 4
          %s2942 = int_to_ptr.vmem [resolvable:$true] %s2941
          %2947 = dma.vmem_to_hbm [thread:$0]  %s2942, 256, %s2940, %s2923, 128, 128, 8
        $region68: #{tpu_custom_call.1} parent=63 // pred_fallthru
          _
        // Predicated region
        $region69: #{tpu_custom_call.1} parent=63 // pred_check
          %p2948 = pneg %p310
        $region70: #{tpu_custom_call.1} parent=63 // pred_check_branch
          %2950 = sbr.rel (%p2948) target = $region72
        $region71: #{tpu_custom_call.1} parent=63 // pred_region
          %s2952 = ssub.s32 256, 256
          %2953 = vsyncadd %s2928, %s2952
          %s2954 = smul.addr %s30, 2
          %s2955 = smul.addr %s2954, 128
          %s2956 = scalar_lea.hbm %s12, %s2955
          %s2957 = sshll.u32 %s2931, 4
          %s2958 = int_to_ptr.vmem [resolvable:$true] %s2957
          %2963 = dma.vmem_to_hbm [thread:$0]  %s2958, 256, %s2956, %s2928, 128, 128, 8
        $region72: #{tpu_custom_call.1} parent=63 // pred_fallthru
          _
      $region64: #{tpu_custom_call.1} parent=5 // pred_fallthru
        _
      %p2964 = scmp.le.s32.totalorder 2, %s25
      // Predicated region
      $region73: #{tpu_custom_call.1} parent=5 // pred_check
        %p2965 = pneg %p2964
      $region74: #{tpu_custom_call.1} parent=5 // pred_check_branch
        %2967 = sbr.rel (%p2965) target = $region76
      $region75: #{tpu_custom_call.1} parent=5 // pred_region
        %s2968 = ssub.s32 %s25, 2
        // Predicated region
        $region77: #{tpu_custom_call.1} parent=75 // pred_check
          %p2969 = pneg %p290
        $region78: #{tpu_custom_call.1} parent=75 // pred_check_branch
          %2971 = sbr.rel (%p2969) target = $region80
        $region79: #{tpu_custom_call.1} parent=75 // pred_region
          %s2972 = sand.u32 %s275, 1
          %s2973 = scalar_lea.sflag [#allocation4], %s2972
          %s2974 = sand.u32 %s275, 1
          %s2975 = smul.addr %s2974, 16
          %s2976 = scalar_lea.vmem [#allocation3], %s2975
          %2977 = dma.done %s2973, 256
        $region80: #{tpu_custom_call.1} parent=75 // pred_fallthru
          _
        // Predicated region
        $region81: #{tpu_custom_call.1} parent=75 // pred_check
          %p2978 = pneg %p316
        $region82: #{tpu_custom_call.1} parent=75 // pred_check_branch
          %2980 = sbr.rel (%p2978) target = $region84
        $region83: #{tpu_custom_call.1} parent=75 // pred_region
          %s2981 = sand.u32 %s301, 1
          %s2982 = scalar_lea.sflag [#allocation6], %s2981
          %s2983 = sand.u32 %s301, 1
          %s2984 = smul.addr %s2983, 16
          %s2985 = scalar_lea.vmem [#allocation5], %s2984
          %2986 = dma.done %s2982, 256
        $region84: #{tpu_custom_call.1} parent=75 // pred_fallthru
          _
      $region76: #{tpu_custom_call.1} parent=5 // pred_fallthru
        _
    $region6: #{tpu_custom_call.1} parent=1 // loop_footer
      %s29 = sadd.s32 1, %s25
    $region7: #{tpu_custom_call.1} parent=1 // loop_footer_branch
      %24 = sbr.rel target = $region3
    $region8: #{tpu_custom_call.1} parent=1 // loop_exit
      _
    %2987 = vsyncpa [#allocation4], 1
    %s2988 = scalar_lea.sflag [#allocation4], 1
    %2989 = vsyncpa %s2988, 1
    %2990 = vsyncpa [#allocation6], 1
    %s2991 = scalar_lea.sflag [#allocation6], 1
    %2992 = vsyncpa %s2991, 1

</llo_original>
